<compile_context>
chip_gen: v6e
topology: v6e:2x2x1
jax: 0.10.0
libtpu: 0.0.40
codegen_flags: <defaults>
</compile_context>

<pallas_src>
import jax
import jax.numpy as jnp
import numpy as np
from jax import lax
from jax.experimental import pallas as pl
from jax.experimental.pallas import tpu as pltpu

NUM_CHANNELS = 8
MANDEL_ITERS = 3


def _mandelbrot(x):
    # TODO(synk): MandelbrotActivation's source was not included in the snippet;
    # implemented as the bounded Mandelbrot iteration z <- clip(z*z + x, -2, 2),
    # z_0 = 0, 3 iterations.
    z = jnp.zeros_like(x)
    for _ in range(MANDEL_ITERS):
        z = jnp.clip(z * z + x, -2.0, 2.0)
    return z


# ----------------------------- fused Pallas kernel -----------------------------

def _fused_forward_kernel(
    x_ref,
    w1b_ref, cb1_ref, w2b_ref, cb2_ref, w3b_ref, cb3_ref,
    p1e_ref, p1o_ref, p3e_ref, p3o_ref,
    a96_ref, a32_ref,
    g1_ref, be1_ref, g2_ref, be2_ref, g3_ref, be3_ref,
    w1p_ref, fb1_ref, w2p_ref, fb2_ref,
    ma_ref, mb_ref, sel_ref,
    o_ref,
):
    R = x_ref.shape[0]          # n * 28 folded rows
    n = o_ref.shape[0]

    def rrows(y, d):
        # y'[r] = y[(r + d) mod R]: cyclic row shift on the folded batch; any row
        # that crosses a sample boundary only ever lands in a dead (masked) row.
        if d % R == 0:
            return y
        return pltpu.roll(y, shift=(-d) % R, axis=0)

    def mmb(a, w):
        # bf16 operands, f32 accumulation on the MXU (w is pre-converted to bf16).
        return jnp.dot(a.astype(jnp.bfloat16), w, preferred_element_type=jnp.float32)

    def mmf(a, w):
        # exact f32 matmul for 0/1 selection / statistics matrices.
        return jnp.dot(a, w, preferred_element_type=jnp.float32)

    def bn_act(y, mask, a_ref, g_ref, b_ref, cnt):
        # training-mode BatchNorm2d (batch stats, biased variance, eps=1e-5) over
        # the valid rows only (row mask), followed by the Mandelbrot activation.
        ym = y * mask
        s = mmf(jnp.sum(ym, axis=0, keepdims=True), a_ref[...])        # per-channel sum
        q = mmf(jnp.sum(ym * y, axis=0, keepdims=True), a_ref[...])    # per-channel sum sq
        mean = s * (1.0 / cnt)
        var = q * (1.0 / cnt) - mean * mean
        scale = g_ref[...] * lax.rsqrt(var + 1e-5)
        shift = b_ref[...] - mean * scale
        return _mandelbrot(y * scale + shift)

    mask_a = ma_ref[...]        # valid rows for the 12x12 stages (even offsets 0..22)
    mask_b = mb_ref[...]        # valid rows for the 4x4 stage (offsets 0,4,8,12)
    x = x_ref[...]

    # block 1: Conv2d(1->8, k=5) -> MaxPool2d(2) -> BatchNorm2d -> Mandelbrot
    acc = cb1_ref[...]
    for kh in range(5):
        acc = acc + mmb(rrows(x, kh), w1b_ref[kh])                     # (R, 192)
    acc = jnp.maximum(acc, rrows(acc, 1))                              # pool rows
    y = jnp.maximum(mmf(acc, p1e_ref[...]), mmf(acc, p1o_ref[...]))    # pool width -> (R, 96)
    y = bn_act(y, mask_a, a96_ref, g1_ref, be1_ref, 144.0 * n)
    y = y * mask_a          # zero dead rows: conv2's padding=1 reads them as zeros

    # block 2: Conv2d(8->8, k=3, padding=1) -> BatchNorm2d -> Mandelbrot
    acc = cb2_ref[...]
    for kh in range(3):
        acc = acc + mmb(rrows(y, 2 * (kh - 1)), w2b_ref[kh])           # (R, 96)
    y = bn_act(acc, mask_a, a96_ref, g2_ref, be2_ref, 144.0 * n)

    # block 3: Conv2d(8->8, k=5) -> MaxPool2d(2) -> BatchNorm2d -> Mandelbrot
    acc = cb3_ref[...]
    for kh in range(5):
        acc = acc + mmb(rrows(y, 2 * kh), w3b_ref[kh])                 # (R, 64)
    acc = jnp.maximum(acc, rrows(acc, 2))                              # pool rows
    y = jnp.maximum(mmf(acc, p3e_ref[...]), mmf(acc, p3o_ref[...]))    # pool width -> (R, 32)
    y = bn_act(y, mask_b, a32_ref, g3_ref, be3_ref, 16.0 * n)

    # classifier: fc1 (+ Mandelbrot) then fc2 (PyTorch NCHW flatten folded into w1p)
    h = mmb(y, w1p_ref[0])
    for hh in range(1, 4):
        h = h + mmb(rrows(y, 4 * hh), w1p_ref[hh])                     # (R, 20)
    h = mmf(sel_ref[...], h) + fb1_ref[...]                            # (n, 20): one valid row/sample
    h = _mandelbrot(h)
    out = mmb(h, w2p_ref[...]) + fb2_ref[...]                          # (n, 10)
    o_ref[...] = out.astype(o_ref.dtype)


# ------------------------- one-time weight/layout preparation -------------------------

def _banded_conv_weights(w, out_w, pad):
    # PyTorch (Cout, Cin, KH, KW) -> (KH, in_w*Cin, out_w*Cout) banded weights with
    # all KW taps merged (and the width zero-padding folded in for pad > 0).
    w = jnp.asarray(w, jnp.float32)
    cout, cin, k, _ = w.shape
    in_w = out_w + k - 1 - 2 * pad
    kw_i, ow_i, ci_i, co_i = np.meshgrid(
        np.arange(k), np.arange(out_w), np.arange(cin), np.arange(cout), indexing="ij")
    iw_i = ow_i + kw_i - pad
    valid = (iw_i >= 0) & (iw_i < in_w)
    kw_v, ow_v, ci_v, co_v, iw_v = (a[valid] for a in (kw_i, ow_i, ci_i, co_i, iw_i))
    rows = iw_v * cin + ci_v
    cols = ow_v * cout + co_v
    taps = []
    for kh in range(k):
        vals = w[co_v, ci_v, kh, kw_v]
        taps.append(jnp.zeros((in_w * cin, out_w * cout), jnp.float32).at[rows, cols].set(vals))
    return jnp.stack(taps).astype(jnp.bfloat16)


def _lane_pool_select(out_w, c):
    # (2*out_w*c, out_w*c) even / odd width-position selection (channel-minor lanes).
    src = np.arange(2 * out_w * c)
    dst = np.arange(out_w * c)
    same_c = (src[:, None] % c) == (dst[None, :] % c)
    e = (same_c & ((src[:, None] // c) == 2 * (dst[None, :] // c))).astype(np.float32)
    o = (same_c & ((src[:, None] // c) == 2 * (dst[None, :] // c) + 1)).astype(np.float32)
    return jnp.asarray(e), jnp.asarray(o)


def _channel_indicator(w, c):
    i = np.arange(w * c)
    return jnp.asarray(((i[:, None] % c) == (i[None, :] % c)).astype(np.float32))


def _lane_tile(v, w):
    return jnp.tile(v.astype(jnp.float32), w).reshape(1, -1)


def prepare_params(params):
    C = NUM_CHANNELS
    p = {}
    p["w1b"] = _banded_conv_weights(params["conv1_w"], out_w=24, pad=0)   # (5, 28, 192)
    p["cb1"] = _lane_tile(params["conv1_b"], 24)
    p["w2b"] = _banded_conv_weights(params["conv2_w"], out_w=12, pad=1)   # (3, 96, 96)
    p["cb2"] = _lane_tile(params["conv2_b"], 12)
    p["w3b"] = _banded_conv_weights(params["conv3_w"], out_w=8, pad=0)    # (5, 96, 64)
    p["cb3"] = _lane_tile(params["conv3_b"], 8)

    p["p1e"], p["p1o"] = _lane_pool_select(12, C)                         # (192, 96)
    p["p3e"], p["p3o"] = _lane_pool_select(4, C)                          # (64, 32)

    p["a96"] = _channel_indicator(12, C)                                  # BN channel-sum
    p["a32"] = _channel_indicator(4, C)
    p["g1"], p["be1"] = _lane_tile(params["bn1_g"], 12), _lane_tile(params["bn1_b"], 12)
    p["g2"], p["be2"] = _lane_tile(params["bn2_g"], 12), _lane_tile(params["bn2_b"], 12)
    p["g3"], p["be3"] = _lane_tile(params["bn3_g"], 4), _lane_tile(params["bn3_b"], 4)

    # fc1: fold the PyTorch NCHW flatten (f = c*16 + h*4 + w) into the (h, w*8+c) layout
    w1 = params["fc1_w"].reshape(20, C, 4, 4)                             # (m, c, h, w)
    p["w1p"] = jnp.transpose(w1, (2, 3, 1, 0)).reshape(4, 4 * C, 20).astype(jnp.bfloat16)
    p["fb1"] = params["fc1_b"].reshape(1, 20).astype(jnp.float32)
    p["w2p"] = params["fc2_w"].T.astype(jnp.bfloat16)                     # (20, 10)
    p["fb2"] = params["fc2_b"].reshape(1, 10).astype(jnp.float32)
    return p


# ------------------------------------ model ------------------------------------

def init_params(key):
    C = NUM_CHANNELS
    ks = jax.random.split(key, 10)

    def u(k, shape, fan_in):
        bound = 1.0 / jnp.sqrt(jnp.float32(fan_in))
        return jax.random.uniform(k, shape, jnp.float32, -bound, bound)

    return {
        "conv1_w": u(ks[0], (C, 1, 5, 5), 1 * 5 * 5),
        "conv1_b": u(ks[1], (C,), 1 * 5 * 5),
        "conv2_w": u(ks[2], (C, C, 3, 3), C * 3 * 3),
        "conv2_b": u(ks[3], (C,), C * 3 * 3),
        "conv3_w": u(ks[4], (C, C, 5, 5), C * 5 * 5),
        "conv3_b": u(ks[5], (C,), C * 5 * 5),
        "fc1_w": u(ks[6], (20, C * 4 * 4), C * 4 * 4),
        "fc1_b": u(ks[7], (20,), C * 4 * 4),
        "fc2_w": u(ks[8], (10, 20), 20),
        "fc2_b": u(ks[9], (10,), 20),
        "bn1_g": jnp.ones((C,), jnp.float32), "bn1_b": jnp.zeros((C,), jnp.float32),
        "bn2_g": jnp.ones((C,), jnp.float32), "bn2_b": jnp.zeros((C,), jnp.float32),
        "bn3_g": jnp.ones((C,), jnp.float32), "bn3_b": jnp.zeros((C,), jnp.float32),
    }


def neural_model_forward(prep, x_nchw):
    n = x_nchw.shape[0]
    R = n * 28
    # Cin == 1, so NCHW -> folded (N*28, 28) is a pure reshape (no data movement).
    x2 = x_nchw.reshape(R, 28).astype(jnp.float32)

    # per-sample row-validity masks and the final one-valid-row-per-sample selector
    # (n is static under jit, so these are baked-in constants).
    offs = np.arange(28)
    mask_a = np.tile(((offs % 2 == 0) & (offs <= 22)).astype(np.float32), n).reshape(R, 1)
    mask_b = np.tile(((offs % 4 == 0) & (offs <= 12)).astype(np.float32), n).reshape(R, 1)
    sel = np.zeros((n, R), np.float32)
    sel[np.arange(n), 28 * np.arange(n)] = 1.0

    out = pl.pallas_call(
        _fused_forward_kernel,
        out_shape=jax.ShapeDtypeStruct((n, 10), jnp.float32),
    )(
        x2,
        prep["w1b"], prep["cb1"], prep["w2b"], prep["cb2"], prep["w3b"], prep["cb3"],
        prep["p1e"], prep["p1o"], prep["p3e"], prep["p3o"],
        prep["a96"], prep["a32"],
        prep["g1"], prep["be1"], prep["g2"], prep["be2"], prep["g3"], prep["be3"],
        prep["w1p"], prep["fb1"], prep["w2p"], prep["fb2"],
        jnp.asarray(mask_a), jnp.asarray(mask_b), jnp.asarray(sel),
    )
    return out


if __name__ == "__main__":
    key = jax.random.PRNGKey(0)
    pkey, xkey = jax.random.split(key)
    params = init_params(pkey)
    prep = prepare_params(params)          # one-time weight/layout preparation (hoisted)
    # NeuralModel requires 1-channel 28x28 inputs (fc1 expects 8 * 4 * 4 features).
    x = jax.random.normal(xkey, (2, 1, 28, 28), jnp.float32)

    fwd = jax.jit(neural_model_forward)
    out = fwd(prep, x)
    jax.block_until_ready(out)
    assert out.shape == (2, 10) and out.dtype == jnp.float32
    print("KERNEL_OK")
</pallas_src>

<mosaic_0001>
module attributes {stable_mosaic.version = 11 : i64} {
  func.func @_fused_forward_kernel(%arg0: memref<56x28xf32, #tpu.memory_space<vmem>>, %arg1: memref<5x28x192xbf16, #tpu.memory_space<vmem>>, %arg2: memref<1x192xf32, #tpu.memory_space<vmem>>, %arg3: memref<3x96x96xbf16, #tpu.memory_space<vmem>>, %arg4: memref<1x96xf32, #tpu.memory_space<vmem>>, %arg5: memref<5x96x64xbf16, #tpu.memory_space<vmem>>, %arg6: memref<1x64xf32, #tpu.memory_space<vmem>>, %arg7: memref<192x96xf32, #tpu.memory_space<vmem>>, %arg8: memref<192x96xf32, #tpu.memory_space<vmem>>, %arg9: memref<64x32xf32, #tpu.memory_space<vmem>>, %arg10: memref<64x32xf32, #tpu.memory_space<vmem>>, %arg11: memref<96x96xf32, #tpu.memory_space<vmem>>, %arg12: memref<32x32xf32, #tpu.memory_space<vmem>>, %arg13: memref<1x96xf32, #tpu.memory_space<vmem>>, %arg14: memref<1x96xf32, #tpu.memory_space<vmem>>, %arg15: memref<1x96xf32, #tpu.memory_space<vmem>>, %arg16: memref<1x96xf32, #tpu.memory_space<vmem>>, %arg17: memref<1x32xf32, #tpu.memory_space<vmem>>, %arg18: memref<1x32xf32, #tpu.memory_space<vmem>>, %arg19: memref<4x32x20xbf16, #tpu.memory_space<vmem>>, %arg20: memref<1x20xf32, #tpu.memory_space<vmem>>, %arg21: memref<20x10xbf16, #tpu.memory_space<vmem>>, %arg22: memref<1x10xf32, #tpu.memory_space<vmem>>, %arg23: memref<56x1xf32, #tpu.memory_space<vmem>>, %arg24: memref<56x1xf32, #tpu.memory_space<vmem>>, %arg25: memref<2x56xf32, #tpu.memory_space<vmem>>, %arg26: memref<2x10xf32, #tpu.memory_space<vmem>>) attributes {dimension_semantics = [], scalar_prefetch = 0 : i64, scratch_operands = 0 : i64, tpu.core_type = #tpu.core_type<tc>} {
    %c0 = arith.constant 0 : index
    %c0_0 = arith.constant 0 : index
    %0 = vector.load %arg23[%c0, %c0_0] : memref<56x1xf32, #tpu.memory_space<vmem>>, vector<56x1xf32>
    %c0_1 = arith.constant 0 : index
    %c0_2 = arith.constant 0 : index
    %1 = vector.load %arg24[%c0_1, %c0_2] : memref<56x1xf32, #tpu.memory_space<vmem>>, vector<56x1xf32>
    %c0_3 = arith.constant 0 : index
    %c0_4 = arith.constant 0 : index
    %2 = vector.load %arg0[%c0_3, %c0_4] : memref<56x28xf32, #tpu.memory_space<vmem>>, vector<56x28xf32>
    %c0_5 = arith.constant 0 : index
    %c0_6 = arith.constant 0 : index
    %3 = vector.load %arg2[%c0_5, %c0_6] : memref<1x192xf32, #tpu.memory_space<vmem>>, vector<1x192xf32>
    %c0_7 = arith.constant 0 : index
    %c0_8 = arith.constant 0 : index
    %c0_9 = arith.constant 0 : index
    %4 = vector.load %arg1[%c0_7, %c0_8, %c0_9] : memref<5x28x192xbf16, #tpu.memory_space<vmem>>, vector<1x28x192xbf16>
    %5 = vector.shape_cast %4 : vector<1x28x192xbf16> to vector<28x192xbf16>
    %6 = arith.truncf %2 : vector<56x28xf32> to vector<56x28xbf16>
    %cst = arith.constant dense<0.000000e+00> : vector<56x192xf32>
    %7 = tpu.matmul %6, %5, %cst {dimension_numbers = #tpu.dot_dimension_numbers<[1], [0], [0], [1], [0, 0, 1, 1], [], []>} : vector<56x28xbf16>, vector<28x192xbf16>, vector<56x192xf32> -> vector<56x192xf32>
    %8 = vector.broadcast %3 : vector<1x192xf32> to vector<56x192xf32>
    %9 = arith.addf %8, %7 : vector<56x192xf32>
    %c55_i32 = arith.constant 55 : i32
    %10 = tpu.dynamic_rotate %2 by %c55_i32 dim 0 : vector<56x28xf32>, i32 -> vector<56x28xf32>
    %c1 = arith.constant 1 : index
    %c0_10 = arith.constant 0 : index
    %c0_11 = arith.constant 0 : index
    %11 = vector.load %arg1[%c1, %c0_10, %c0_11] : memref<5x28x192xbf16, #tpu.memory_space<vmem>>, vector<1x28x192xbf16>
    %12 = vector.shape_cast %11 : vector<1x28x192xbf16> to vector<28x192xbf16>
    %13 = arith.truncf %10 : vector<56x28xf32> to vector<56x28xbf16>
    %cst_12 = arith.constant dense<0.000000e+00> : vector<56x192xf32>
    %14 = tpu.matmul %13, %12, %cst_12 {dimension_numbers = #tpu.dot_dimension_numbers<[1], [0], [0], [1], [0, 0, 1, 1], [], []>} : vector<56x28xbf16>, vector<28x192xbf16>, vector<56x192xf32> -> vector<56x192xf32>
    %15 = arith.addf %9, %14 : vector<56x192xf32>
    %c54_i32 = arith.constant 54 : i32
    %16 = tpu.dynamic_rotate %2 by %c54_i32 dim 0 : vector<56x28xf32>, i32 -> vector<56x28xf32>
    %c2 = arith.constant 2 : index
    %c0_13 = arith.constant 0 : index
    %c0_14 = arith.constant 0 : index
    %17 = vector.load %arg1[%c2, %c0_13, %c0_14] : memref<5x28x192xbf16, #tpu.memory_space<vmem>>, vector<1x28x192xbf16>
    %18 = vector.shape_cast %17 : vector<1x28x192xbf16> to vector<28x192xbf16>
    %19 = arith.truncf %16 : vector<56x28xf32> to vector<56x28xbf16>
    %cst_15 = arith.constant dense<0.000000e+00> : vector<56x192xf32>
    %20 = tpu.matmul %19, %18, %cst_15 {dimension_numbers = #tpu.dot_dimension_numbers<[1], [0], [0], [1], [0, 0, 1, 1], [], []>} : vector<56x28xbf16>, vector<28x192xbf16>, vector<56x192xf32> -> vector<56x192xf32>
    %21 = arith.addf %15, %20 : vector<56x192xf32>
    %c53_i32 = arith.constant 53 : i32
    %22 = tpu.dynamic_rotate %2 by %c53_i32 dim 0 : vector<56x28xf32>, i32 -> vector<56x28xf32>
    %c3 = arith.constant 3 : index
    %c0_16 = arith.constant 0 : index
    %c0_17 = arith.constant 0 : index
    %23 = vector.load %arg1[%c3, %c0_16, %c0_17] : memref<5x28x192xbf16, #tpu.memory_space<vmem>>, vector<1x28x192xbf16>
    %24 = vector.shape_cast %23 : vector<1x28x192xbf16> to vector<28x192xbf16>
    %25 = arith.truncf %22 : vector<56x28xf32> to vector<56x28xbf16>
    %cst_18 = arith.constant dense<0.000000e+00> : vector<56x192xf32>
    %26 = tpu.matmul %25, %24, %cst_18 {dimension_numbers = #tpu.dot_dimension_numbers<[1], [0], [0], [1], [0, 0, 1, 1], [], []>} : vector<56x28xbf16>, vector<28x192xbf16>, vector<56x192xf32> -> vector<56x192xf32>
    %27 = arith.addf %21, %26 : vector<56x192xf32>
    %c52_i32 = arith.constant 52 : i32
    %28 = tpu.dynamic_rotate %2 by %c52_i32 dim 0 : vector<56x28xf32>, i32 -> vector<56x28xf32>
    %c4 = arith.constant 4 : index
    %c0_19 = arith.constant 0 : index
    %c0_20 = arith.constant 0 : index
    %29 = vector.load %arg1[%c4, %c0_19, %c0_20] : memref<5x28x192xbf16, #tpu.memory_space<vmem>>, vector<1x28x192xbf16>
    %30 = vector.shape_cast %29 : vector<1x28x192xbf16> to vector<28x192xbf16>
    %31 = arith.truncf %28 : vector<56x28xf32> to vector<56x28xbf16>
    %cst_21 = arith.constant dense<0.000000e+00> : vector<56x192xf32>
    %32 = tpu.matmul %31, %30, %cst_21 {dimension_numbers = #tpu.dot_dimension_numbers<[1], [0], [0], [1], [0, 0, 1, 1], [], []>} : vector<56x28xbf16>, vector<28x192xbf16>, vector<56x192xf32> -> vector<56x192xf32>
    %33 = arith.addf %27, %32 : vector<56x192xf32>
    %c55_i32_22 = arith.constant 55 : i32
    %34 = tpu.dynamic_rotate %33 by %c55_i32_22 dim 0 : vector<56x192xf32>, i32 -> vector<56x192xf32>
    %35 = arith.maximumf %33, %34 : vector<56x192xf32>
    %c0_23 = arith.constant 0 : index
    %c0_24 = arith.constant 0 : index
    %36 = vector.load %arg7[%c0_23, %c0_24] : memref<192x96xf32, #tpu.memory_space<vmem>>, vector<192x96xf32>
    %cst_25 = arith.constant dense<0.000000e+00> : vector<56x96xf32>
    %37 = tpu.matmul %35, %36, %cst_25 {dimension_numbers = #tpu.dot_dimension_numbers<[1], [0], [0], [1], [0, 0, 1, 1], [], []>} : vector<56x192xf32>, vector<192x96xf32>, vector<56x96xf32> -> vector<56x96xf32>
    %c0_26 = arith.constant 0 : index
    %c0_27 = arith.constant 0 : index
    %38 = vector.load %arg8[%c0_26, %c0_27] : memref<192x96xf32, #tpu.memory_space<vmem>>, vector<192x96xf32>
    %cst_28 = arith.constant dense<0.000000e+00> : vector<56x96xf32>
    %39 = tpu.matmul %35, %38, %cst_28 {dimension_numbers = #tpu.dot_dimension_numbers<[1], [0], [0], [1], [0, 0, 1, 1], [], []>} : vector<56x192xf32>, vector<192x96xf32>, vector<56x96xf32> -> vector<56x96xf32>
    %40 = arith.maximumf %37, %39 : vector<56x96xf32>
    %41 = vector.broadcast %0 : vector<56x1xf32> to vector<56x96xf32>
    %42 = arith.mulf %40, %41 : vector<56x96xf32>
    %cst_29 = arith.constant dense<0.000000e+00> : vector<96xf32>
    %43 = vector.multi_reduction <add>, %42, %cst_29 [0] : vector<56x96xf32> to vector<96xf32>
    %44 = vector.shape_cast %43 : vector<96xf32> to vector<1x96xf32>
    %c0_30 = arith.constant 0 : index
    %c0_31 = arith.constant 0 : index
    %45 = vector.load %arg11[%c0_30, %c0_31] : memref<96x96xf32, #tpu.memory_space<vmem>>, vector<96x96xf32>
    %cst_32 = arith.constant dense<0.000000e+00> : vector<1x96xf32>
    %46 = tpu.matmul %44, %45, %cst_32 {dimension_numbers = #tpu.dot_dimension_numbers<[1], [0], [0], [1], [0, 0, 1, 1], [], []>} : vector<1x96xf32>, vector<96x96xf32>, vector<1x96xf32> -> vector<1x96xf32>
    %47 = arith.mulf %42, %40 : vector<56x96xf32>
    %cst_33 = arith.constant dense<0.000000e+00> : vector<96xf32>
    %48 = vector.multi_reduction <add>, %47, %cst_33 [0] : vector<56x96xf32> to vector<96xf32>
    %49 = vector.shape_cast %48 : vector<96xf32> to vector<1x96xf32>
    %c0_34 = arith.constant 0 : index
    %c0_35 = arith.constant 0 : index
    %50 = vector.load %arg11[%c0_34, %c0_35] : memref<96x96xf32, #tpu.memory_space<vmem>>, vector<96x96xf32>
    %cst_36 = arith.constant dense<0.000000e+00> : vector<1x96xf32>
    %51 = tpu.matmul %49, %50, %cst_36 {dimension_numbers = #tpu.dot_dimension_numbers<[1], [0], [0], [1], [0, 0, 1, 1], [], []>} : vector<1x96xf32>, vector<96x96xf32>, vector<1x96xf32> -> vector<1x96xf32>
    %cst_37 = arith.constant 0.00347222225 : f32
    %52 = vector.broadcast %cst_37 : f32 to vector<1x96xf32>
    %53 = arith.mulf %46, %52 : vector<1x96xf32>
    %cst_38 = arith.constant 0.00347222225 : f32
    %54 = vector.broadcast %cst_38 : f32 to vector<1x96xf32>
    %55 = arith.mulf %51, %54 : vector<1x96xf32>
    %56 = arith.mulf %53, %53 : vector<1x96xf32>
    %57 = arith.subf %55, %56 : vector<1x96xf32>
    %c0_39 = arith.constant 0 : index
    %c0_40 = arith.constant 0 : index
    %58 = vector.load %arg13[%c0_39, %c0_40] : memref<1x96xf32, #tpu.memory_space<vmem>>, vector<1x96xf32>
    %cst_41 = arith.constant 9.99999974E-6 : f32
    %59 = vector.broadcast %cst_41 : f32 to vector<1x96xf32>
    %60 = arith.addf %57, %59 : vector<1x96xf32>
    %61 = math.rsqrt %60 : vector<1x96xf32>
    %62 = arith.mulf %58, %61 : vector<1x96xf32>
    %c0_42 = arith.constant 0 : index
    %c0_43 = arith.constant 0 : index
    %63 = vector.load %arg14[%c0_42, %c0_43] : memref<1x96xf32, #tpu.memory_space<vmem>>, vector<1x96xf32>
    %64 = arith.mulf %53, %62 : vector<1x96xf32>
    %65 = arith.subf %63, %64 : vector<1x96xf32>
    %66 = vector.broadcast %62 : vector<1x96xf32> to vector<56x96xf32>
    %67 = arith.mulf %40, %66 : vector<56x96xf32>
    %68 = vector.broadcast %65 : vector<1x96xf32> to vector<56x96xf32>
    %69 = arith.addf %67, %68 : vector<56x96xf32>
    %cst_44 = arith.constant 0.000000e+00 : f32
    %70 = vector.broadcast %cst_44 : f32 to vector<56x96xf32>
    %71 = arith.mulf %70, %70 : vector<56x96xf32>
    %72 = arith.addf %71, %69 : vector<56x96xf32>
    %cst_45 = arith.constant -2.000000e+00 : f32
    %cst_46 = arith.constant 2.000000e+00 : f32
    %73 = vector.broadcast %cst_45 : f32 to vector<56x96xf32>
    %74 = arith.maximumf %73, %72 : vector<56x96xf32>
    %75 = vector.broadcast %cst_46 : f32 to vector<56x96xf32>
    %76 = arith.minimumf %75, %74 : vector<56x96xf32>
    %77 = arith.mulf %76, %76 : vector<56x96xf32>
    %78 = arith.addf %77, %69 : vector<56x96xf32>
    %cst_47 = arith.constant -2.000000e+00 : f32
    %cst_48 = arith.constant 2.000000e+00 : f32
    %79 = vector.broadcast %cst_47 : f32 to vector<56x96xf32>
    %80 = arith.maximumf %79, %78 : vector<56x96xf32>
    %81 = vector.broadcast %cst_48 : f32 to vector<56x96xf32>
    %82 = arith.minimumf %81, %80 : vector<56x96xf32>
    %83 = arith.mulf %82, %82 : vector<56x96xf32>
    %84 = arith.addf %83, %69 : vector<56x96xf32>
    %cst_49 = arith.constant -2.000000e+00 : f32
    %cst_50 = arith.constant 2.000000e+00 : f32
    %85 = vector.broadcast %cst_49 : f32 to vector<56x96xf32>
    %86 = arith.maximumf %85, %84 : vector<56x96xf32>
    %87 = vector.broadcast %cst_50 : f32 to vector<56x96xf32>
    %88 = arith.minimumf %87, %86 : vector<56x96xf32>
    %89 = vector.broadcast %0 : vector<56x1xf32> to vector<56x96xf32>
    %90 = arith.mulf %88, %89 : vector<56x96xf32>
    %c0_51 = arith.constant 0 : index
    %c0_52 = arith.constant 0 : index
    %91 = vector.load %arg4[%c0_51, %c0_52] : memref<1x96xf32, #tpu.memory_space<vmem>>, vector<1x96xf32>
    %c2_i32 = arith.constant 2 : i32
    %92 = tpu.dynamic_rotate %90 by %c2_i32 dim 0 : vector<56x96xf32>, i32 -> vector<56x96xf32>
    %c0_53 = arith.constant 0 : index
    %c0_54 = arith.constant 0 : index
    %c0_55 = arith.constant 0 : index
    %93 = vector.load %arg3[%c0_53, %c0_54, %c0_55] : memref<3x96x96xbf16, #tpu.memory_space<vmem>>, vector<1x96x96xbf16>
    %94 = vector.shape_cast %93 : vector<1x96x96xbf16> to vector<96x96xbf16>
    %95 = arith.truncf %92 : vector<56x96xf32> to vector<56x96xbf16>
    %cst_56 = arith.constant dense<0.000000e+00> : vector<56x96xf32>
    %96 = tpu.matmul %95, %94, %cst_56 {dimension_numbers = #tpu.dot_dimension_numbers<[1], [0], [0], [1], [0, 0, 1, 1], [], []>} : vector<56x96xbf16>, vector<96x96xbf16>, vector<56x96xf32> -> vector<56x96xf32>
    %97 = vector.broadcast %91 : vector<1x96xf32> to vector<56x96xf32>
    %98 = arith.addf %97, %96 : vector<56x96xf32>
    %c1_57 = arith.constant 1 : index
    %c0_58 = arith.constant 0 : index
    %c0_59 = arith.constant 0 : index
    %99 = vector.load %arg3[%c1_57, %c0_58, %c0_59] : memref<3x96x96xbf16, #tpu.memory_space<vmem>>, vector<1x96x96xbf16>
    %100 = vector.shape_cast %99 : vector<1x96x96xbf16> to vector<96x96xbf16>
    %101 = arith.truncf %90 : vector<56x96xf32> to vector<56x96xbf16>
    %cst_60 = arith.constant dense<0.000000e+00> : vector<56x96xf32>
    %102 = tpu.matmul %101, %100, %cst_60 {dimension_numbers = #tpu.dot_dimension_numbers<[1], [0], [0], [1], [0, 0, 1, 1], [], []>} : vector<56x96xbf16>, vector<96x96xbf16>, vector<56x96xf32> -> vector<56x96xf32>
    %103 = arith.addf %98, %102 : vector<56x96xf32>
    %c54_i32_61 = arith.constant 54 : i32
    %104 = tpu.dynamic_rotate %90 by %c54_i32_61 dim 0 : vector<56x96xf32>, i32 -> vector<56x96xf32>
    %c2_62 = arith.constant 2 : index
    %c0_63 = arith.constant 0 : index
    %c0_64 = arith.constant 0 : index
    %105 = vector.load %arg3[%c2_62, %c0_63, %c0_64] : memref<3x96x96xbf16, #tpu.memory_space<vmem>>, vector<1x96x96xbf16>
    %106 = vector.shape_cast %105 : vector<1x96x96xbf16> to vector<96x96xbf16>
    %107 = arith.truncf %104 : vector<56x96xf32> to vector<56x96xbf16>
    %cst_65 = arith.constant dense<0.000000e+00> : vector<56x96xf32>
    %108 = tpu.matmul %107, %106, %cst_65 {dimension_numbers = #tpu.dot_dimension_numbers<[1], [0], [0], [1], [0, 0, 1, 1], [], []>} : vector<56x96xbf16>, vector<96x96xbf16>, vector<56x96xf32> -> vector<56x96xf32>
    %109 = arith.addf %103, %108 : vector<56x96xf32>
    %110 = vector.broadcast %0 : vector<56x1xf32> to vector<56x96xf32>
    %111 = arith.mulf %109, %110 : vector<56x96xf32>
    %cst_66 = arith.constant dense<0.000000e+00> : vector<96xf32>
    %112 = vector.multi_reduction <add>, %111, %cst_66 [0] : vector<56x96xf32> to vector<96xf32>
    %113 = vector.shape_cast %112 : vector<96xf32> to vector<1x96xf32>
    %c0_67 = arith.constant 0 : index
    %c0_68 = arith.constant 0 : index
    %114 = vector.load %arg11[%c0_67, %c0_68] : memref<96x96xf32, #tpu.memory_space<vmem>>, vector<96x96xf32>
    %cst_69 = arith.constant dense<0.000000e+00> : vector<1x96xf32>
    %115 = tpu.matmul %113, %114, %cst_69 {dimension_numbers = #tpu.dot_dimension_numbers<[1], [0], [0], [1], [0, 0, 1, 1], [], []>} : vector<1x96xf32>, vector<96x96xf32>, vector<1x96xf32> -> vector<1x96xf32>
    %116 = arith.mulf %111, %109 : vector<56x96xf32>
    %cst_70 = arith.constant dense<0.000000e+00> : vector<96xf32>
    %117 = vector.multi_reduction <add>, %116, %cst_70 [0] : vector<56x96xf32> to vector<96xf32>
    %118 = vector.shape_cast %117 : vector<96xf32> to vector<1x96xf32>
    %c0_71 = arith.constant 0 : index
    %c0_72 = arith.constant 0 : index
    %119 = vector.load %arg11[%c0_71, %c0_72] : memref<96x96xf32, #tpu.memory_space<vmem>>, vector<96x96xf32>
    %cst_73 = arith.constant dense<0.000000e+00> : vector<1x96xf32>
    %120 = tpu.matmul %118, %119, %cst_73 {dimension_numbers = #tpu.dot_dimension_numbers<[1], [0], [0], [1], [0, 0, 1, 1], [], []>} : vector<1x96xf32>, vector<96x96xf32>, vector<1x96xf32> -> vector<1x96xf32>
    %cst_74 = arith.constant 0.00347222225 : f32
    %121 = vector.broadcast %cst_74 : f32 to vector<1x96xf32>
    %122 = arith.mulf %115, %121 : vector<1x96xf32>
    %cst_75 = arith.constant 0.00347222225 : f32
    %123 = vector.broadcast %cst_75 : f32 to vector<1x96xf32>
    %124 = arith.mulf %120, %123 : vector<1x96xf32>
    %125 = arith.mulf %122, %122 : vector<1x96xf32>
    %126 = arith.subf %124, %125 : vector<1x96xf32>
    %c0_76 = arith.constant 0 : index
    %c0_77 = arith.constant 0 : index
    %127 = vector.load %arg15[%c0_76, %c0_77] : memref<1x96xf32, #tpu.memory_space<vmem>>, vector<1x96xf32>
    %cst_78 = arith.constant 9.99999974E-6 : f32
    %128 = vector.broadcast %cst_78 : f32 to vector<1x96xf32>
    %129 = arith.addf %126, %128 : vector<1x96xf32>
    %130 = math.rsqrt %129 : vector<1x96xf32>
    %131 = arith.mulf %127, %130 : vector<1x96xf32>
    %c0_79 = arith.constant 0 : index
    %c0_80 = arith.constant 0 : index
    %132 = vector.load %arg16[%c0_79, %c0_80] : memref<1x96xf32, #tpu.memory_space<vmem>>, vector<1x96xf32>
    %133 = arith.mulf %122, %131 : vector<1x96xf32>
    %134 = arith.subf %132, %133 : vector<1x96xf32>
    %135 = vector.broadcast %131 : vector<1x96xf32> to vector<56x96xf32>
    %136 = arith.mulf %109, %135 : vector<56x96xf32>
    %137 = vector.broadcast %134 : vector<1x96xf32> to vector<56x96xf32>
    %138 = arith.addf %136, %137 : vector<56x96xf32>
    %cst_81 = arith.constant 0.000000e+00 : f32
    %139 = vector.broadcast %cst_81 : f32 to vector<56x96xf32>
    %140 = arith.mulf %139, %139 : vector<56x96xf32>
    %141 = arith.addf %140, %138 : vector<56x96xf32>
    %cst_82 = arith.constant -2.000000e+00 : f32
    %cst_83 = arith.constant 2.000000e+00 : f32
    %142 = vector.broadcast %cst_82 : f32 to vector<56x96xf32>
    %143 = arith.maximumf %142, %141 : vector<56x96xf32>
    %144 = vector.broadcast %cst_83 : f32 to vector<56x96xf32>
    %145 = arith.minimumf %144, %143 : vector<56x96xf32>
    %146 = arith.mulf %145, %145 : vector<56x96xf32>
    %147 = arith.addf %146, %138 : vector<56x96xf32>
    %cst_84 = arith.constant -2.000000e+00 : f32
    %cst_85 = arith.constant 2.000000e+00 : f32
    %148 = vector.broadcast %cst_84 : f32 to vector<56x96xf32>
    %149 = arith.maximumf %148, %147 : vector<56x96xf32>
    %150 = vector.broadcast %cst_85 : f32 to vector<56x96xf32>
    %151 = arith.minimumf %150, %149 : vector<56x96xf32>
    %152 = arith.mulf %151, %151 : vector<56x96xf32>
    %153 = arith.addf %152, %138 : vector<56x96xf32>
    %cst_86 = arith.constant -2.000000e+00 : f32
    %cst_87 = arith.constant 2.000000e+00 : f32
    %154 = vector.broadcast %cst_86 : f32 to vector<56x96xf32>
    %155 = arith.maximumf %154, %153 : vector<56x96xf32>
    %156 = vector.broadcast %cst_87 : f32 to vector<56x96xf32>
    %157 = arith.minimumf %156, %155 : vector<56x96xf32>
    %c0_88 = arith.constant 0 : index
    %c0_89 = arith.constant 0 : index
    %158 = vector.load %arg6[%c0_88, %c0_89] : memref<1x64xf32, #tpu.memory_space<vmem>>, vector<1x64xf32>
    %c0_90 = arith.constant 0 : index
    %c0_91 = arith.constant 0 : index
    %c0_92 = arith.constant 0 : index
    %159 = vector.load %arg5[%c0_90, %c0_91, %c0_92] : memref<5x96x64xbf16, #tpu.memory_space<vmem>>, vector<1x96x64xbf16>
    %160 = vector.shape_cast %159 : vector<1x96x64xbf16> to vector<96x64xbf16>
    %161 = arith.truncf %157 : vector<56x96xf32> to vector<56x96xbf16>
    %cst_93 = arith.constant dense<0.000000e+00> : vector<56x64xf32>
    %162 = tpu.matmul %161, %160, %cst_93 {dimension_numbers = #tpu.dot_dimension_numbers<[1], [0], [0], [1], [0, 0, 1, 1], [], []>} : vector<56x96xbf16>, vector<96x64xbf16>, vector<56x64xf32> -> vector<56x64xf32>
    %163 = vector.broadcast %158 : vector<1x64xf32> to vector<56x64xf32>
    %164 = arith.addf %163, %162 : vector<56x64xf32>
    %c54_i32_94 = arith.constant 54 : i32
    %165 = tpu.dynamic_rotate %157 by %c54_i32_94 dim 0 : vector<56x96xf32>, i32 -> vector<56x96xf32>
    %c1_95 = arith.constant 1 : index
    %c0_96 = arith.constant 0 : index
    %c0_97 = arith.constant 0 : index
    %166 = vector.load %arg5[%c1_95, %c0_96, %c0_97] : memref<5x96x64xbf16, #tpu.memory_space<vmem>>, vector<1x96x64xbf16>
    %167 = vector.shape_cast %166 : vector<1x96x64xbf16> to vector<96x64xbf16>
    %168 = arith.truncf %165 : vector<56x96xf32> to vector<56x96xbf16>
    %cst_98 = arith.constant dense<0.000000e+00> : vector<56x64xf32>
    %169 = tpu.matmul %168, %167, %cst_98 {dimension_numbers = #tpu.dot_dimension_numbers<[1], [0], [0], [1], [0, 0, 1, 1], [], []>} : vector<56x96xbf16>, vector<96x64xbf16>, vector<56x64xf32> -> vector<56x64xf32>
    %170 = arith.addf %164, %169 : vector<56x64xf32>
    %c52_i32_99 = arith.constant 52 : i32
    %171 = tpu.dynamic_rotate %157 by %c52_i32_99 dim 0 : vector<56x96xf32>, i32 -> vector<56x96xf32>
    %c2_100 = arith.constant 2 : index
    %c0_101 = arith.constant 0 : index
    %c0_102 = arith.constant 0 : index
    %172 = vector.load %arg5[%c2_100, %c0_101, %c0_102] : memref<5x96x64xbf16, #tpu.memory_space<vmem>>, vector<1x96x64xbf16>
    %173 = vector.shape_cast %172 : vector<1x96x64xbf16> to vector<96x64xbf16>
    %174 = arith.truncf %171 : vector<56x96xf32> to vector<56x96xbf16>
    %cst_103 = arith.constant dense<0.000000e+00> : vector<56x64xf32>
    %175 = tpu.matmul %174, %173, %cst_103 {dimension_numbers = #tpu.dot_dimension_numbers<[1], [0], [0], [1], [0, 0, 1, 1], [], []>} : vector<56x96xbf16>, vector<96x64xbf16>, vector<56x64xf32> -> vector<56x64xf32>
    %176 = arith.addf %170, %175 : vector<56x64xf32>
    %c50_i32 = arith.constant 50 : i32
    %177 = tpu.dynamic_rotate %157 by %c50_i32 dim 0 : vector<56x96xf32>, i32 -> vector<56x96xf32>
    %c3_104 = arith.constant 3 : index
    %c0_105 = arith.constant 0 : index
    %c0_106 = arith.constant 0 : index
    %178 = vector.load %arg5[%c3_104, %c0_105, %c0_106] : memref<5x96x64xbf16, #tpu.memory_space<vmem>>, vector<1x96x64xbf16>
    %179 = vector.shape_cast %178 : vector<1x96x64xbf16> to vector<96x64xbf16>
    %180 = arith.truncf %177 : vector<56x96xf32> to vector<56x96xbf16>
    %cst_107 = arith.constant dense<0.000000e+00> : vector<56x64xf32>
    %181 = tpu.matmul %180, %179, %cst_107 {dimension_numbers = #tpu.dot_dimension_numbers<[1], [0], [0], [1], [0, 0, 1, 1], [], []>} : vector<56x96xbf16>, vector<96x64xbf16>, vector<56x64xf32> -> vector<56x64xf32>
    %182 = arith.addf %176, %181 : vector<56x64xf32>
    %c48_i32 = arith.constant 48 : i32
    %183 = tpu.dynamic_rotate %157 by %c48_i32 dim 0 : vector<56x96xf32>, i32 -> vector<56x96xf32>
    %c4_108 = arith.constant 4 : index
    %c0_109 = arith.constant 0 : index
    %c0_110 = arith.constant 0 : index
    %184 = vector.load %arg5[%c4_108, %c0_109, %c0_110] : memref<5x96x64xbf16, #tpu.memory_space<vmem>>, vector<1x96x64xbf16>
    %185 = vector.shape_cast %184 : vector<1x96x64xbf16> to vector<96x64xbf16>
    %186 = arith.truncf %183 : vector<56x96xf32> to vector<56x96xbf16>
    %cst_111 = arith.constant dense<0.000000e+00> : vector<56x64xf32>
    %187 = tpu.matmul %186, %185, %cst_111 {dimension_numbers = #tpu.dot_dimension_numbers<[1], [0], [0], [1], [0, 0, 1, 1], [], []>} : vector<56x96xbf16>, vector<96x64xbf16>, vector<56x64xf32> -> vector<56x64xf32>
    %188 = arith.addf %182, %187 : vector<56x64xf32>
    %c54_i32_112 = arith.constant 54 : i32
    %189 = tpu.dynamic_rotate %188 by %c54_i32_112 dim 0 : vector<56x64xf32>, i32 -> vector<56x64xf32>
    %190 = arith.maximumf %188, %189 : vector<56x64xf32>
    %c0_113 = arith.constant 0 : index
    %c0_114 = arith.constant 0 : index
    %191 = vector.load %arg9[%c0_113, %c0_114] : memref<64x32xf32, #tpu.memory_space<vmem>>, vector<64x32xf32>
    %cst_115 = arith.constant dense<0.000000e+00> : vector<56x32xf32>
    %192 = tpu.matmul %190, %191, %cst_115 {dimension_numbers = #tpu.dot_dimension_numbers<[1], [0], [0], [1], [0, 0, 1, 1], [], []>} : vector<56x64xf32>, vector<64x32xf32>, vector<56x32xf32> -> vector<56x32xf32>
    %c0_116 = arith.constant 0 : index
    %c0_117 = arith.constant 0 : index
    %193 = vector.load %arg10[%c0_116, %c0_117] : memref<64x32xf32, #tpu.memory_space<vmem>>, vector<64x32xf32>
    %cst_118 = arith.constant dense<0.000000e+00> : vector<56x32xf32>
    %194 = tpu.matmul %190, %193, %cst_118 {dimension_numbers = #tpu.dot_dimension_numbers<[1], [0], [0], [1], [0, 0, 1, 1], [], []>} : vector<56x64xf32>, vector<64x32xf32>, vector<56x32xf32> -> vector<56x32xf32>
    %195 = arith.maximumf %192, %194 : vector<56x32xf32>
    %196 = vector.broadcast %1 : vector<56x1xf32> to vector<56x32xf32>
    %197 = arith.mulf %195, %196 : vector<56x32xf32>
    %cst_119 = arith.constant dense<0.000000e+00> : vector<32xf32>
    %198 = vector.multi_reduction <add>, %197, %cst_119 [0] : vector<56x32xf32> to vector<32xf32>
    %199 = vector.shape_cast %198 : vector<32xf32> to vector<1x32xf32>
    %c0_120 = arith.constant 0 : index
    %c0_121 = arith.constant 0 : index
    %200 = vector.load %arg12[%c0_120, %c0_121] : memref<32x32xf32, #tpu.memory_space<vmem>>, vector<32x32xf32>
    %cst_122 = arith.constant dense<0.000000e+00> : vector<1x32xf32>
    %201 = tpu.matmul %199, %200, %cst_122 {dimension_numbers = #tpu.dot_dimension_numbers<[1], [0], [0], [1], [0, 0, 1, 1], [], []>} : vector<1x32xf32>, vector<32x32xf32>, vector<1x32xf32> -> vector<1x32xf32>
    %202 = arith.mulf %197, %195 : vector<56x32xf32>
    %cst_123 = arith.constant dense<0.000000e+00> : vector<32xf32>
    %203 = vector.multi_reduction <add>, %202, %cst_123 [0] : vector<56x32xf32> to vector<32xf32>
    %204 = vector.shape_cast %203 : vector<32xf32> to vector<1x32xf32>
    %c0_124 = arith.constant 0 : index
    %c0_125 = arith.constant 0 : index
    %205 = vector.load %arg12[%c0_124, %c0_125] : memref<32x32xf32, #tpu.memory_space<vmem>>, vector<32x32xf32>
    %cst_126 = arith.constant dense<0.000000e+00> : vector<1x32xf32>
    %206 = tpu.matmul %204, %205, %cst_126 {dimension_numbers = #tpu.dot_dimension_numbers<[1], [0], [0], [1], [0, 0, 1, 1], [], []>} : vector<1x32xf32>, vector<32x32xf32>, vector<1x32xf32> -> vector<1x32xf32>
    %cst_127 = arith.constant 3.125000e-02 : f32
    %207 = vector.broadcast %cst_127 : f32 to vector<1x32xf32>
    %208 = arith.mulf %201, %207 : vector<1x32xf32>
    %cst_128 = arith.constant 3.125000e-02 : f32
    %209 = vector.broadcast %cst_128 : f32 to vector<1x32xf32>
    %210 = arith.mulf %206, %209 : vector<1x32xf32>
    %211 = arith.mulf %208, %208 : vector<1x32xf32>
    %212 = arith.subf %210, %211 : vector<1x32xf32>
    %c0_129 = arith.constant 0 : index
    %c0_130 = arith.constant 0 : index
    %213 = vector.load %arg17[%c0_129, %c0_130] : memref<1x32xf32, #tpu.memory_space<vmem>>, vector<1x32xf32>
    %cst_131 = arith.constant 9.99999974E-6 : f32
    %214 = vector.broadcast %cst_131 : f32 to vector<1x32xf32>
    %215 = arith.addf %212, %214 : vector<1x32xf32>
    %216 = math.rsqrt %215 : vector<1x32xf32>
    %217 = arith.mulf %213, %216 : vector<1x32xf32>
    %c0_132 = arith.constant 0 : index
    %c0_133 = arith.constant 0 : index
    %218 = vector.load %arg18[%c0_132, %c0_133] : memref<1x32xf32, #tpu.memory_space<vmem>>, vector<1x32xf32>
    %219 = arith.mulf %208, %217 : vector<1x32xf32>
    %220 = arith.subf %218, %219 : vector<1x32xf32>
    %221 = vector.broadcast %217 : vector<1x32xf32> to vector<56x32xf32>
    %222 = arith.mulf %195, %221 : vector<56x32xf32>
    %223 = vector.broadcast %220 : vector<1x32xf32> to vector<56x32xf32>
    %224 = arith.addf %222, %223 : vector<56x32xf32>
    %cst_134 = arith.constant 0.000000e+00 : f32
    %225 = vector.broadcast %cst_134 : f32 to vector<56x32xf32>
    %226 = arith.mulf %225, %225 : vector<56x32xf32>
    %227 = arith.addf %226, %224 : vector<56x32xf32>
    %cst_135 = arith.constant -2.000000e+00 : f32
    %cst_136 = arith.constant 2.000000e+00 : f32
    %228 = vector.broadcast %cst_135 : f32 to vector<56x32xf32>
    %229 = arith.maximumf %228, %227 : vector<56x32xf32>
    %230 = vector.broadcast %cst_136 : f32 to vector<56x32xf32>
    %231 = arith.minimumf %230, %229 : vector<56x32xf32>
    %232 = arith.mulf %231, %231 : vector<56x32xf32>
    %233 = arith.addf %232, %224 : vector<56x32xf32>
    %cst_137 = arith.constant -2.000000e+00 : f32
    %cst_138 = arith.constant 2.000000e+00 : f32
    %234 = vector.broadcast %cst_137 : f32 to vector<56x32xf32>
    %235 = arith.maximumf %234, %233 : vector<56x32xf32>
    %236 = vector.broadcast %cst_138 : f32 to vector<56x32xf32>
    %237 = arith.minimumf %236, %235 : vector<56x32xf32>
    %238 = arith.mulf %237, %237 : vector<56x32xf32>
    %239 = arith.addf %238, %224 : vector<56x32xf32>
    %cst_139 = arith.constant -2.000000e+00 : f32
    %cst_140 = arith.constant 2.000000e+00 : f32
    %240 = vector.broadcast %cst_139 : f32 to vector<56x32xf32>
    %241 = arith.maximumf %240, %239 : vector<56x32xf32>
    %242 = vector.broadcast %cst_140 : f32 to vector<56x32xf32>
    %243 = arith.minimumf %242, %241 : vector<56x32xf32>
    %c0_141 = arith.constant 0 : index
    %c0_142 = arith.constant 0 : index
    %c0_143 = arith.constant 0 : index
    %244 = vector.load %arg19[%c0_141, %c0_142, %c0_143] : memref<4x32x20xbf16, #tpu.memory_space<vmem>>, vector<1x32x20xbf16>
    %245 = vector.shape_cast %244 : vector<1x32x20xbf16> to vector<32x20xbf16>
    %246 = arith.truncf %243 : vector<56x32xf32> to vector<56x32xbf16>
    %cst_144 = arith.constant dense<0.000000e+00> : vector<56x20xf32>
    %247 = tpu.matmul %246, %245, %cst_144 {dimension_numbers = #tpu.dot_dimension_numbers<[1], [0], [0], [1], [0, 0, 1, 1], [], []>} : vector<56x32xbf16>, vector<32x20xbf16>, vector<56x20xf32> -> vector<56x20xf32>
    %c52_i32_145 = arith.constant 52 : i32
    %248 = tpu.dynamic_rotate %243 by %c52_i32_145 dim 0 : vector<56x32xf32>, i32 -> vector<56x32xf32>
    %c1_146 = arith.constant 1 : index
    %c0_147 = arith.constant 0 : index
    %c0_148 = arith.constant 0 : index
    %249 = vector.load %arg19[%c1_146, %c0_147, %c0_148] : memref<4x32x20xbf16, #tpu.memory_space<vmem>>, vector<1x32x20xbf16>
    %250 = vector.shape_cast %249 : vector<1x32x20xbf16> to vector<32x20xbf16>
    %251 = arith.truncf %248 : vector<56x32xf32> to vector<56x32xbf16>
    %cst_149 = arith.constant dense<0.000000e+00> : vector<56x20xf32>
    %252 = tpu.matmul %251, %250, %cst_149 {dimension_numbers = #tpu.dot_dimension_numbers<[1], [0], [0], [1], [0, 0, 1, 1], [], []>} : vector<56x32xbf16>, vector<32x20xbf16>, vector<56x20xf32> -> vector<56x20xf32>
    %253 = arith.addf %247, %252 : vector<56x20xf32>
    %c48_i32_150 = arith.constant 48 : i32
    %254 = tpu.dynamic_rotate %243 by %c48_i32_150 dim 0 : vector<56x32xf32>, i32 -> vector<56x32xf32>
    %c2_151 = arith.constant 2 : index
    %c0_152 = arith.constant 0 : index
    %c0_153 = arith.constant 0 : index
    %255 = vector.load %arg19[%c2_151, %c0_152, %c0_153] : memref<4x32x20xbf16, #tpu.memory_space<vmem>>, vector<1x32x20xbf16>
    %256 = vector.shape_cast %255 : vector<1x32x20xbf16> to vector<32x20xbf16>
    %257 = arith.truncf %254 : vector<56x32xf32> to vector<56x32xbf16>
    %cst_154 = arith.constant dense<0.000000e+00> : vector<56x20xf32>
    %258 = tpu.matmul %257, %256, %cst_154 {dimension_numbers = #tpu.dot_dimension_numbers<[1], [0], [0], [1], [0, 0, 1, 1], [], []>} : vector<56x32xbf16>, vector<32x20xbf16>, vector<56x20xf32> -> vector<56x20xf32>
    %259 = arith.addf %253, %258 : vector<56x20xf32>
    %c44_i32 = arith.constant 44 : i32
    %260 = tpu.dynamic_rotate %243 by %c44_i32 dim 0 : vector<56x32xf32>, i32 -> vector<56x32xf32>
    %c3_155 = arith.constant 3 : index
    %c0_156 = arith.constant 0 : index
    %c0_157 = arith.constant 0 : index
    %261 = vector.load %arg19[%c3_155, %c0_156, %c0_157] : memref<4x32x20xbf16, #tpu.memory_space<vmem>>, vector<1x32x20xbf16>
    %262 = vector.shape_cast %261 : vector<1x32x20xbf16> to vector<32x20xbf16>
    %263 = arith.truncf %260 : vector<56x32xf32> to vector<56x32xbf16>
    %cst_158 = arith.constant dense<0.000000e+00> : vector<56x20xf32>
    %264 = tpu.matmul %263, %262, %cst_158 {dimension_numbers = #tpu.dot_dimension_numbers<[1], [0], [0], [1], [0, 0, 1, 1], [], []>} : vector<56x32xbf16>, vector<32x20xbf16>, vector<56x20xf32> -> vector<56x20xf32>
    %265 = arith.addf %259, %264 : vector<56x20xf32>
    %c0_159 = arith.constant 0 : index
    %c0_160 = arith.constant 0 : index
    %266 = vector.load %arg25[%c0_159, %c0_160] : memref<2x56xf32, #tpu.memory_space<vmem>>, vector<2x56xf32>
    %cst_161 = arith.constant dense<0.000000e+00> : vector<2x20xf32>
    %267 = tpu.matmul %266, %265, %cst_161 {dimension_numbers = #tpu.dot_dimension_numbers<[1], [0], [0], [1], [0, 0, 1, 1], [], []>} : vector<2x56xf32>, vector<56x20xf32>, vector<2x20xf32> -> vector<2x20xf32>
    %c0_162 = arith.constant 0 : index
    %c0_163 = arith.constant 0 : index
    %268 = vector.load %arg20[%c0_162, %c0_163] : memref<1x20xf32, #tpu.memory_space<vmem>>, vector<1x20xf32>
    %269 = vector.broadcast %268 : vector<1x20xf32> to vector<2x20xf32>
    %270 = arith.addf %267, %269 : vector<2x20xf32>
    %cst_164 = arith.constant 0.000000e+00 : f32
    %271 = vector.broadcast %cst_164 : f32 to vector<2x20xf32>
    %272 = arith.mulf %271, %271 : vector<2x20xf32>
    %273 = arith.addf %272, %270 : vector<2x20xf32>
    %cst_165 = arith.constant -2.000000e+00 : f32
    %cst_166 = arith.constant 2.000000e+00 : f32
    %274 = vector.broadcast %cst_165 : f32 to vector<2x20xf32>
    %275 = arith.maximumf %274, %273 : vector<2x20xf32>
    %276 = vector.broadcast %cst_166 : f32 to vector<2x20xf32>
    %277 = arith.minimumf %276, %275 : vector<2x20xf32>
    %278 = arith.mulf %277, %277 : vector<2x20xf32>
    %279 = arith.addf %278, %270 : vector<2x20xf32>
    %cst_167 = arith.constant -2.000000e+00 : f32
    %cst_168 = arith.constant 2.000000e+00 : f32
    %280 = vector.broadcast %cst_167 : f32 to vector<2x20xf32>
    %281 = arith.maximumf %280, %279 : vector<2x20xf32>
    %282 = vector.broadcast %cst_168 : f32 to vector<2x20xf32>
    %283 = arith.minimumf %282, %281 : vector<2x20xf32>
    %284 = arith.mulf %283, %283 : vector<2x20xf32>
    %285 = arith.addf %284, %270 : vector<2x20xf32>
    %cst_169 = arith.constant -2.000000e+00 : f32
    %cst_170 = arith.constant 2.000000e+00 : f32
    %286 = vector.broadcast %cst_169 : f32 to vector<2x20xf32>
    %287 = arith.maximumf %286, %285 : vector<2x20xf32>
    %288 = vector.broadcast %cst_170 : f32 to vector<2x20xf32>
    %289 = arith.minimumf %288, %287 : vector<2x20xf32>
    %c0_171 = arith.constant 0 : index
    %c0_172 = arith.constant 0 : index
    %290 = vector.load %arg21[%c0_171, %c0_172] : memref<20x10xbf16, #tpu.memory_space<vmem>>, vector<20x10xbf16>
    %291 = arith.truncf %289 : vector<2x20xf32> to vector<2x20xbf16>
    %cst_173 = arith.constant dense<0.000000e+00> : vector<2x10xf32>
    %292 = tpu.matmul %291, %290, %cst_173 {dimension_numbers = #tpu.dot_dimension_numbers<[1], [0], [0], [1], [0, 0, 1, 1], [], []>} : vector<2x20xbf16>, vector<20x10xbf16>, vector<2x10xf32> -> vector<2x10xf32>
    %c0_174 = arith.constant 0 : index
    %c0_175 = arith.constant 0 : index
    %293 = vector.load %arg22[%c0_174, %c0_175] : memref<1x10xf32, #tpu.memory_space<vmem>>, vector<1x10xf32>
    %294 = vector.broadcast %293 : vector<1x10xf32> to vector<2x10xf32>
    %295 = arith.addf %292, %294 : vector<2x10xf32>
    %c0_176 = arith.constant 0 : index
    %c0_177 = arith.constant 0 : index
    %296 = vector.load %arg26[%c0_176, %c0_177] : memref<2x10xf32, #tpu.memory_space<vmem>>, vector<2x10xf32>
    tpu.vector_store %arg26[%c0_176, %c0_177], %295 {strides = array<i32>} : memref<2x10xf32, #tpu.memory_space<vmem>>, vector<2x10xf32>,
    return
  }
}

</mosaic_0001>

<llo_original>
// kernel: neural_model_forward.1
$region0: #{neural_model_forward.1}
  #allocation0 [shape = 'u32[]', space=smem, size = 0x4, offset = 0x4, fixed_abs, tag = 'smem constant byte address 0x4 - core index']
  #allocation1 [shape = 'u32[144,128]{1,0:T(1,128)}', space=vmem, size = 0x12000, scoped, tag = 'internal scratch']
  %s0 = inlined_call_operand.hbm [shape: f32[56,28], index: 0, kind: input, shape index: {}]
  %s1 = inlined_call_operand.vmem [shape: bf16[5,28,192], index: 1, kind: input, shape index: {}]
  %s2 = inlined_call_operand.hbm [shape: f32[1,192], index: 2, kind: input, shape index: {}]
  %s3 = inlined_call_operand.hbm [shape: bf16[3,96,96], index: 3, kind: input, shape index: {}]
  %s4 = inlined_call_operand.vmem [shape: f32[1,96], index: 4, kind: input, shape index: {}]
  %s5 = inlined_call_operand.vmem [shape: bf16[5,96,64], index: 5, kind: input, shape index: {}]
  %s6 = inlined_call_operand.hbm [shape: f32[1,64], index: 6, kind: input, shape index: {}]
  %s7 = inlined_call_operand.vmem [shape: f32[192,96], index: 7, kind: input, shape index: {}]
  %s8 = inlined_call_operand.vmem [shape: f32[192,96], index: 8, kind: input, shape index: {}]
  %s9 = inlined_call_operand.vmem [shape: f32[64,32], index: 9, kind: input, shape index: {}]
  %s10 = inlined_call_operand.vmem [shape: f32[64,32], index: 10, kind: input, shape index: {}]
  %s11 = inlined_call_operand.hbm [shape: f32[96,96], index: 11, kind: input, shape index: {}]
  %s12 = inlined_call_operand.hbm [shape: f32[32,32], index: 12, kind: input, shape index: {}]
  %s13 = inlined_call_operand.hbm [shape: f32[1,96], index: 13, kind: input, shape index: {}]
  %s14 = inlined_call_operand.hbm [shape: f32[1,96], index: 14, kind: input, shape index: {}]
  %s15 = inlined_call_operand.hbm [shape: f32[1,96], index: 15, kind: input, shape index: {}]
  %s16 = inlined_call_operand.hbm [shape: f32[1,96], index: 16, kind: input, shape index: {}]
  %s17 = inlined_call_operand.hbm [shape: f32[1,32], index: 17, kind: input, shape index: {}]
  %s18 = inlined_call_operand.hbm [shape: f32[1,32], index: 18, kind: input, shape index: {}]
  %s19 = inlined_call_operand.vmem [shape: bf16[4,32,20], index: 19, kind: input, shape index: {}]
  %s20 = inlined_call_operand.hbm [shape: f32[1,20], index: 20, kind: input, shape index: {}]
  %s21 = inlined_call_operand.vmem [shape: bf16[20,10], index: 21, kind: input, shape index: {}]
  %s22 = inlined_call_operand.hbm [shape: f32[1,10], index: 22, kind: input, shape index: {}]
  %s23 = inlined_call_operand.hbm [shape: f32[56,1], index: 23, kind: input, shape index: {}]
  %s24 = inlined_call_operand.vmem [shape: f32[56,1], index: 24, kind: input, shape index: {}]
  %s25 = inlined_call_operand.hbm [shape: f32[2,56], index: 25, kind: input, shape index: {}]
  %s26 = inlined_call_operand.hbm [shape: f32[2,10], index: 26, kind: output, shape index: {}]
  %s27 = sld [smem:[#allocation0]]
  $region178: #{neural_model_forward.1} parent=0
    _
  %s29 = ssub.s32 1, %s27
  %s30 = scalar_select 0, %s29, %s27
  $region1: #{neural_model_forward.1} parent=0
    #allocation2 [shape = 'u8[28672]{0}', space=vmem, size = 0x7000, scoped, tag = 'input window, operand 0, single buffered']
    #allocation3 [shape = 's32[1]{0}', space=sflag, size = 0x4, scoped, tag = 'scoped memory for neural_model_forward.1']
    #allocation4 [shape = 's32[1]{0}', space=sflag, size = 0x4, scoped, tag = 'scoped memory for neural_model_forward.1']
    #allocation5 [shape = 'u8[1024]{0}', space=vmem, size = 0x400, scoped, tag = 'input window, operand 2, single buffered']
    #allocation6 [shape = 's32[1]{0}', space=sflag, size = 0x4, scoped, tag = 'scoped memory for neural_model_forward.1']
    #allocation7 [shape = 'u8[73728]{0}', space=vmem, size = 0x12000, scoped, tag = 'input window, operand 3, single buffered']
    #allocation8 [shape = 'u8[512]{0}', space=vmem, size = 0x400, scoped, tag = 'input window, operand 6, single buffered']
    #allocation9 [shape = 's32[1]{0}', space=sflag, size = 0x4, scoped, tag = 'scoped memory for neural_model_forward.1']
    #allocation10 [shape = 'u8[49152]{0}', space=vmem, size = 0xc000, scoped, tag = 'input window, operand 11, single buffered']
    #allocation11 [shape = 'u8[16384]{0}', space=vmem, size = 0x4000, scoped, tag = 'input window, operand 12, single buffered']
    #allocation12 [shape = 's32[1]{0}', space=sflag, size = 0x4, scoped, tag = 'scoped memory for neural_model_forward.1']
    #allocation13 [shape = 'u8[512]{0}', space=vmem, size = 0x400, scoped, tag = 'input window, operand 13, single buffered']
    #allocation14 [shape = 'u8[512]{0}', space=vmem, size = 0x400, scoped, tag = 'input window, operand 14, single buffered']
    #allocation15 [shape = 's32[1]{0}', space=sflag, size = 0x4, scoped, tag = 'scoped memory for neural_model_forward.1']
    #allocation16 [shape = 'u8[512]{0}', space=vmem, size = 0x400, scoped, tag = 'input window, operand 15, single buffered']
    #allocation17 [shape = 'u8[512]{0}', space=vmem, size = 0x400, scoped, tag = 'input window, operand 16, single buffered']
    #allocation18 [shape = 's32[1]{0}', space=sflag, size = 0x4, scoped, tag = 'scoped memory for neural_model_forward.1']
    #allocation19 [shape = 'u8[512]{0}', space=vmem, size = 0x400, scoped, tag = 'input window, operand 17, single buffered']
    #allocation20 [shape = 'u8[512]{0}', space=vmem, size = 0x400, scoped, tag = 'input window, operand 18, single buffered']
    #allocation21 [shape = 's32[1]{0}', space=sflag, size = 0x4, scoped, tag = 'scoped memory for neural_model_forward.1']
    #allocation22 [shape = 'u8[512]{0}', space=vmem, size = 0x400, scoped, tag = 'input window, operand 20, single buffered']
    #allocation23 [shape = 'u8[512]{0}', space=vmem, size = 0x400, scoped, tag = 'input window, operand 22, single buffered']
    #allocation24 [shape = 's32[1]{0}', space=sflag, size = 0x4, scoped, tag = 'scoped memory for neural_model_forward.1']
    #allocation25 [shape = 'u8[28672]{0}', space=vmem, size = 0x7000, scoped, tag = 'input window, operand 23, single buffered']
    #allocation26 [shape = 'u8[1024]{0}', space=vmem, size = 0x400, scoped, tag = 'input window, operand 25, single buffered']
    #allocation27 [shape = 's32[1]{0}', space=sflag, size = 0x4, scoped, tag = 'scoped memory for neural_model_forward.1']
    #allocation28 [shape = 'u8[1024]{0}', space=vmem, size = 0x400, scoped, tag = 'output window, operand 0, single buffered']
    %31 = vsyncpa [#allocation3], 0
    %32 = vsyncpa [#allocation6], 0
    %33 = vsyncpa [#allocation9], 0
    %34 = vsyncpa [#allocation12], 0
    %35 = vsyncpa [#allocation15], 0
    %36 = vsyncpa [#allocation18], 0
    %37 = vsyncpa [#allocation21], 0
    %38 = vsyncpa [#allocation24], 0
    %39 = vsyncpa [#allocation27], 0
    %40 = vsyncpa [#allocation4], 0
    // Predicated region
    $region2: #{neural_model_forward.1} parent=1 // pred_check
      _
    $region3: #{neural_model_forward.1} parent=1 // pred_check_branch
      %42 = sbr.rel (0) target = $region5
    $region4: #{neural_model_forward.1} parent=1 // pred_region
      %s44 = ssub.s32 896, 896
      %45 = vsyncadd [#allocation3], %s44
      %s46 = sshll.u32 [#allocation2], 4
      %s47 = int_to_ptr.vmem [resolvable:$true] %s46
      %52 = dma.hbm_to_vmem [thread:$0]  %s0, 896, %s47, [#allocation3], 128, 128, 8
    $region5: #{neural_model_forward.1} parent=1 // pred_fallthru
      _
    // Predicated region
    $region6: #{neural_model_forward.1} parent=1 // pred_check
      _
    $region7: #{neural_model_forward.1} parent=1 // pred_check_branch
      %54 = sbr.rel (0) target = $region9
    $region8: #{neural_model_forward.1} parent=1 // pred_region
      _
    $region9: #{neural_model_forward.1} parent=1 // pred_fallthru
      _
    // Predicated region
    $region10: #{neural_model_forward.1} parent=1 // pred_check
      _
    $region11: #{neural_model_forward.1} parent=1 // pred_check_branch
      %56 = sbr.rel (0) target = $region13
    $region12: #{neural_model_forward.1} parent=1 // pred_region
      %s58 = ssub.s32 32, 32
      %59 = vsyncadd [#allocation6], %s58
      %s61 = sshll.u32 [#allocation5], 4
      %s62 = int_to_ptr.vmem [resolvable:$true] %s61
      %64 = dma.hbm_to_vmem [thread:$0]  %s2, 32, %s62, [#allocation6]
    $region13: #{neural_model_forward.1} parent=1 // pred_fallthru
      _
    // Predicated region
    $region14: #{neural_model_forward.1} parent=1 // pred_check
      _
    $region15: #{neural_model_forward.1} parent=1 // pred_check_branch
      %66 = sbr.rel (0) target = $region17
    $region16: #{neural_model_forward.1} parent=1 // pred_region
      %s68 = ssub.s32 2304, 2304
      %69 = vsyncadd [#allocation6], %s68
      %s70 = sshll.u32 [#allocation7], 4
      %s71 = int_to_ptr.vmem [resolvable:$true] %s70
      %76 = dma.hbm_to_vmem [thread:$0]  %s3, 2304, %s71, [#allocation6], 64, 64, 4
    $region17: #{neural_model_forward.1} parent=1 // pred_fallthru
      _
    // Predicated region
    $region18: #{neural_model_forward.1} parent=1 // pred_check
      _
    $region19: #{neural_model_forward.1} parent=1 // pred_check_branch
      %78 = sbr.rel (0) target = $region21
    $region20: #{neural_model_forward.1} parent=1 // pred_region
      _
    $region21: #{neural_model_forward.1} parent=1 // pred_fallthru
      _
    // Predicated region
    $region22: #{neural_model_forward.1} parent=1 // pred_check
      _
    $region23: #{neural_model_forward.1} parent=1 // pred_check_branch
      %80 = sbr.rel (0) target = $region25
    $region24: #{neural_model_forward.1} parent=1 // pred_region
      _
    $region25: #{neural_model_forward.1} parent=1 // pred_fallthru
      _
    // Predicated region
    $region26: #{neural_model_forward.1} parent=1 // pred_check
      _
    $region27: #{neural_model_forward.1} parent=1 // pred_check_branch
      %82 = sbr.rel (0) target = $region29
    $region28: #{neural_model_forward.1} parent=1 // pred_region
      %s84 = ssub.s32 16, 16
      %85 = vsyncadd [#allocation9], %s84
      %s87 = sshll.u32 [#allocation8], 4
      %s88 = int_to_ptr.vmem [resolvable:$true] %s87
      %90 = dma.hbm_to_vmem [thread:$0]  %s6, 16, %s88, [#allocation9]
    $region29: #{neural_model_forward.1} parent=1 // pred_fallthru
      _
    // Predicated region
    $region30: #{neural_model_forward.1} parent=1 // pred_check
      _
    $region31: #{neural_model_forward.1} parent=1 // pred_check_branch
      %92 = sbr.rel (0) target = $region33
    $region32: #{neural_model_forward.1} parent=1 // pred_region
      _
    $region33: #{neural_model_forward.1} parent=1 // pred_fallthru
      _
    // Predicated region
    $region34: #{neural_model_forward.1} parent=1 // pred_check
      _
    $region35: #{neural_model_forward.1} parent=1 // pred_check_branch
      %94 = sbr.rel (0) target = $region37
    $region36: #{neural_model_forward.1} parent=1 // pred_region
      _
    $region37: #{neural_model_forward.1} parent=1 // pred_fallthru
      _
    // Predicated region
    $region38: #{neural_model_forward.1} parent=1 // pred_check
      _
    $region39: #{neural_model_forward.1} parent=1 // pred_check_branch
      %96 = sbr.rel (0) target = $region41
    $region40: #{neural_model_forward.1} parent=1 // pred_region
      _
    $region41: #{neural_model_forward.1} parent=1 // pred_fallthru
      _
    // Predicated region
    $region42: #{neural_model_forward.1} parent=1 // pred_check
      _
    $region43: #{neural_model_forward.1} parent=1 // pred_check_branch
      %98 = sbr.rel (0) target = $region45
    $region44: #{neural_model_forward.1} parent=1 // pred_region
      _
    $region45: #{neural_model_forward.1} parent=1 // pred_fallthru
      _
    // Predicated region
    $region46: #{neural_model_forward.1} parent=1 // pred_check
      _
    $region47: #{neural_model_forward.1} parent=1 // pred_check_branch
      %100 = sbr.rel (0) target = $region49
    $region48: #{neural_model_forward.1} parent=1 // pred_region
      %s102 = ssub.s32 1536, 1536
      %103 = vsyncadd [#allocation9], %s102
      %s104 = sshll.u32 [#allocation10], 4
      %s105 = int_to_ptr.vmem [resolvable:$true] %s104
      %110 = dma.hbm_to_vmem [thread:$0]  %s11, 1536, %s105, [#allocation9], 128, 128, 8
    $region49: #{neural_model_forward.1} parent=1 // pred_fallthru
      _
    // Predicated region
    $region50: #{neural_model_forward.1} parent=1 // pred_check
      _
    $region51: #{neural_model_forward.1} parent=1 // pred_check_branch
      %112 = sbr.rel (0) target = $region53
    $region52: #{neural_model_forward.1} parent=1 // pred_region
      %s114 = ssub.s32 512, 512
      %115 = vsyncadd [#allocation12], %s114
      %s116 = sshll.u32 [#allocation11], 4
      %s117 = int_to_ptr.vmem [resolvable:$true] %s116
      %122 = dma.hbm_to_vmem [thread:$0]  %s12, 512, %s117, [#allocation12], 128, 128, 8
    $region53: #{neural_model_forward.1} parent=1 // pred_fallthru
      _
    // Predicated region
    $region54: #{neural_model_forward.1} parent=1 // pred_check
      _
    $region55: #{neural_model_forward.1} parent=1 // pred_check_branch
      %124 = sbr.rel (0) target = $region57
    $region56: #{neural_model_forward.1} parent=1 // pred_region
      %s126 = ssub.s32 16, 16
      %127 = vsyncadd [#allocation12], %s126
      %s129 = sshll.u32 [#allocation13], 4
      %s130 = int_to_ptr.vmem [resolvable:$true] %s129
      %132 = dma.hbm_to_vmem [thread:$0]  %s13, 16, %s130, [#allocation12]
    $region57: #{neural_model_forward.1} parent=1 // pred_fallthru
      _
    // Predicated region
    $region58: #{neural_model_forward.1} parent=1 // pred_check
      _
    $region59: #{neural_model_forward.1} parent=1 // pred_check_branch
      %134 = sbr.rel (0) target = $region61
    $region60: #{neural_model_forward.1} parent=1 // pred_region
      %s136 = ssub.s32 16, 16
      %137 = vsyncadd [#allocation15], %s136
      %s139 = sshll.u32 [#allocation14], 4
      %s140 = int_to_ptr.vmem [resolvable:$true] %s139
      %142 = dma.hbm_to_vmem [thread:$0]  %s14, 16, %s140, [#allocation15]
    $region61: #{neural_model_forward.1} parent=1 // pred_fallthru
      _
    // Predicated region
    $region62: #{neural_model_forward.1} parent=1 // pred_check
      _
    $region63: #{neural_model_forward.1} parent=1 // pred_check_branch
      %144 = sbr.rel (0) target = $region65
    $region64: #{neural_model_forward.1} parent=1 // pred_region
      %s146 = ssub.s32 16, 16
      %147 = vsyncadd [#allocation15], %s146
      %s149 = sshll.u32 [#allocation16], 4
      %s150 = int_to_ptr.vmem [resolvable:$true] %s149
      %152 = dma.hbm_to_vmem [thread:$0]  %s15, 16, %s150, [#allocation15]
    $region65: #{neural_model_forward.1} parent=1 // pred_fallthru
      _
    // Predicated region
    $region66: #{neural_model_forward.1} parent=1 // pred_check
      _
    $region67: #{neural_model_forward.1} parent=1 // pred_check_branch
      %154 = sbr.rel (0) target = $region69
    $region68: #{neural_model_forward.1} parent=1 // pred_region
      %s156 = ssub.s32 16, 16
      %157 = vsyncadd [#allocation18], %s156
      %s159 = sshll.u32 [#allocation17], 4
      %s160 = int_to_ptr.vmem [resolvable:$true] %s159
      %162 = dma.hbm_to_vmem [thread:$0]  %s16, 16, %s160, [#allocation18]
    $region69: #{neural_model_forward.1} parent=1 // pred_fallthru
      _
    // Predicated region
    $region70: #{neural_model_forward.1} parent=1 // pred_check
      _
    $region71: #{neural_model_forward.1} parent=1 // pred_check_branch
      %164 = sbr.rel (0) target = $region73
    $region72: #{neural_model_forward.1} parent=1 // pred_region
      %s166 = ssub.s32 16, 16
      %167 = vsyncadd [#allocation18], %s166
      %s169 = sshll.u32 [#allocation19], 4
      %s170 = int_to_ptr.vmem [resolvable:$true] %s169
      %172 = dma.hbm_to_vmem [thread:$0]  %s17, 16, %s170, [#allocation18]
    $region73: #{neural_model_forward.1} parent=1 // pred_fallthru
      _
    // Predicated region
    $region74: #{neural_model_forward.1} parent=1 // pred_check
      _
    $region75: #{neural_model_forward.1} parent=1 // pred_check_branch
      %174 = sbr.rel (0) target = $region77
    $region76: #{neural_model_forward.1} parent=1 // pred_region
      %s176 = ssub.s32 16, 16
      %177 = vsyncadd [#allocation21], %s176
      %s179 = sshll.u32 [#allocation20], 4
      %s180 = int_to_ptr.vmem [resolvable:$true] %s179
      %182 = dma.hbm_to_vmem [thread:$0]  %s18, 16, %s180, [#allocation21]
    $region77: #{neural_model_forward.1} parent=1 // pred_fallthru
      _
    // Predicated region
    $region78: #{neural_model_forward.1} parent=1 // pred_check
      _
    $region79: #{neural_model_forward.1} parent=1 // pred_check_branch
      %184 = sbr.rel (0) target = $region81
    $region80: #{neural_model_forward.1} parent=1 // pred_region
      _
    $region81: #{neural_model_forward.1} parent=1 // pred_fallthru
      _
    // Predicated region
    $region82: #{neural_model_forward.1} parent=1 // pred_check
      _
    $region83: #{neural_model_forward.1} parent=1 // pred_check_branch
      %186 = sbr.rel (0) target = $region85
    $region84: #{neural_model_forward.1} parent=1 // pred_region
      %s188 = ssub.s32 16, 16
      %189 = vsyncadd [#allocation21], %s188
      %s191 = sshll.u32 [#allocation22], 4
      %s192 = int_to_ptr.vmem [resolvable:$true] %s191
      %194 = dma.hbm_to_vmem [thread:$0]  %s20, 16, %s192, [#allocation21]
    $region85: #{neural_model_forward.1} parent=1 // pred_fallthru
      _
    // Predicated region
    $region86: #{neural_model_forward.1} parent=1 // pred_check
      _
    $region87: #{neural_model_forward.1} parent=1 // pred_check_branch
      %196 = sbr.rel (0) target = $region89
    $region88: #{neural_model_forward.1} parent=1 // pred_region
      _
    $region89: #{neural_model_forward.1} parent=1 // pred_fallthru
      _
    // Predicated region
    $region90: #{neural_model_forward.1} parent=1 // pred_check
      _
    $region91: #{neural_model_forward.1} parent=1 // pred_check_branch
      %198 = sbr.rel (0) target = $region93
    $region92: #{neural_model_forward.1} parent=1 // pred_region
      %s200 = ssub.s32 16, 16
      %201 = vsyncadd [#allocation24], %s200
      %s203 = sshll.u32 [#allocation23], 4
      %s204 = int_to_ptr.vmem [resolvable:$true] %s203
      %206 = dma.hbm_to_vmem [thread:$0]  %s22, 16, %s204, [#allocation24]
    $region93: #{neural_model_forward.1} parent=1 // pred_fallthru
      _
    // Predicated region
    $region94: #{neural_model_forward.1} parent=1 // pred_check
      _
    $region95: #{neural_model_forward.1} parent=1 // pred_check_branch
      %208 = sbr.rel (0) target = $region97
    $region96: #{neural_model_forward.1} parent=1 // pred_region
      %s210 = ssub.s32 896, 896
      %211 = vsyncadd [#allocation24], %s210
      %s212 = sshll.u32 [#allocation25], 4
      %s213 = int_to_ptr.vmem [resolvable:$true] %s212
      %218 = dma.hbm_to_vmem [thread:$0]  %s23, 896, %s213, [#allocation24], 128, 128, 8
    $region97: #{neural_model_forward.1} parent=1 // pred_fallthru
      _
    // Predicated region
    $region98: #{neural_model_forward.1} parent=1 // pred_check
      _
    $region99: #{neural_model_forward.1} parent=1 // pred_check_branch
      %220 = sbr.rel (0) target = $region101
    $region100: #{neural_model_forward.1} parent=1 // pred_region
      _
    $region101: #{neural_model_forward.1} parent=1 // pred_fallthru
      _
    // Predicated region
    $region102: #{neural_model_forward.1} parent=1 // pred_check
      _
    $region103: #{neural_model_forward.1} parent=1 // pred_check_branch
      %222 = sbr.rel (0) target = $region105
    $region104: #{neural_model_forward.1} parent=1 // pred_region
      %s224 = ssub.s32 32, 32
      %225 = vsyncadd [#allocation27], %s224
      %s227 = sshll.u32 [#allocation26], 4
      %s228 = int_to_ptr.vmem [resolvable:$true] %s227
      %230 = dma.hbm_to_vmem [thread:$0]  %s25, 32, %s228, [#allocation27]
    $region105: #{neural_model_forward.1} parent=1 // pred_fallthru
      _
    // Predicated region
    $region106: #{neural_model_forward.1} parent=1 // pred_check
      _
    $region107: #{neural_model_forward.1} parent=1 // pred_check_branch
      %232 = sbr.rel (0) target = $region109
    $region108: #{neural_model_forward.1} parent=1 // pred_region
      %233 = dma.done [#allocation3], 896
    $region109: #{neural_model_forward.1} parent=1 // pred_fallthru
      _
    // Predicated region
    $region110: #{neural_model_forward.1} parent=1 // pred_check
      _
    $region111: #{neural_model_forward.1} parent=1 // pred_check_branch
      %235 = sbr.rel (0) target = $region113
    $region112: #{neural_model_forward.1} parent=1 // pred_region
      %236 = dma.done [#allocation6], 32
    $region113: #{neural_model_forward.1} parent=1 // pred_fallthru
      _
    // Predicated region
    $region114: #{neural_model_forward.1} parent=1 // pred_check
      _
    $region115: #{neural_model_forward.1} parent=1 // pred_check_branch
      %238 = sbr.rel (0) target = $region117
    $region116: #{neural_model_forward.1} parent=1 // pred_region
      %239 = dma.done [#allocation6], 2304
    $region117: #{neural_model_forward.1} parent=1 // pred_fallthru
      _
    // Predicated region
    $region118: #{neural_model_forward.1} parent=1 // pred_check
      _
    $region119: #{neural_model_forward.1} parent=1 // pred_check_branch
      %241 = sbr.rel (0) target = $region121
    $region120: #{neural_model_forward.1} parent=1 // pred_region
      %242 = dma.done [#allocation9], 16
    $region121: #{neural_model_forward.1} parent=1 // pred_fallthru
      _
    // Predicated region
    $region122: #{neural_model_forward.1} parent=1 // pred_check
      _
    $region123: #{neural_model_forward.1} parent=1 // pred_check_branch
      %244 = sbr.rel (0) target = $region125
    $region124: #{neural_model_forward.1} parent=1 // pred_region
      %245 = dma.done [#allocation9], 1536
    $region125: #{neural_model_forward.1} parent=1 // pred_fallthru
      _
    // Predicated region
    $region126: #{neural_model_forward.1} parent=1 // pred_check
      _
    $region127: #{neural_model_forward.1} parent=1 // pred_check_branch
      %247 = sbr.rel (0) target = $region129
    $region128: #{neural_model_forward.1} parent=1 // pred_region
      %248 = dma.done [#allocation12], 512
    $region129: #{neural_model_forward.1} parent=1 // pred_fallthru
      _
    // Predicated region
    $region130: #{neural_model_forward.1} parent=1 // pred_check
      _
    $region131: #{neural_model_forward.1} parent=1 // pred_check_branch
      %250 = sbr.rel (0) target = $region133
    $region132: #{neural_model_forward.1} parent=1 // pred_region
      %251 = dma.done [#allocation12], 16
    $region133: #{neural_model_forward.1} parent=1 // pred_fallthru
      _
    // Predicated region
    $region134: #{neural_model_forward.1} parent=1 // pred_check
      _
    $region135: #{neural_model_forward.1} parent=1 // pred_check_branch
      %253 = sbr.rel (0) target = $region137
    $region136: #{neural_model_forward.1} parent=1 // pred_region
      %254 = dma.done [#allocation15], 16
    $region137: #{neural_model_forward.1} parent=1 // pred_fallthru
      _
    // Predicated region
    $region138: #{neural_model_forward.1} parent=1 // pred_check
      _
    $region139: #{neural_model_forward.1} parent=1 // pred_check_branch
      %256 = sbr.rel (0) target = $region141
    $region140: #{neural_model_forward.1} parent=1 // pred_region
      %257 = dma.done [#allocation15], 16
    $region141: #{neural_model_forward.1} parent=1 // pred_fallthru
      _
    // Predicated region
    $region142: #{neural_model_forward.1} parent=1 // pred_check
      _
    $region143: #{neural_model_forward.1} parent=1 // pred_check_branch
      %259 = sbr.rel (0) target = $region145
    $region144: #{neural_model_forward.1} parent=1 // pred_region
      %260 = dma.done [#allocation18], 16
    $region145: #{neural_model_forward.1} parent=1 // pred_fallthru
      _
    // Predicated region
    $region146: #{neural_model_forward.1} parent=1 // pred_check
      _
    $region147: #{neural_model_forward.1} parent=1 // pred_check_branch
      %262 = sbr.rel (0) target = $region149
    $region148: #{neural_model_forward.1} parent=1 // pred_region
      %263 = dma.done [#allocation18], 16
    $region149: #{neural_model_forward.1} parent=1 // pred_fallthru
      _
    // Predicated region
    $region150: #{neural_model_forward.1} parent=1 // pred_check
      _
    $region151: #{neural_model_forward.1} parent=1 // pred_check_branch
      %265 = sbr.rel (0) target = $region153
    $region152: #{neural_model_forward.1} parent=1 // pred_region
      %266 = dma.done [#allocation21], 16
    $region153: #{neural_model_forward.1} parent=1 // pred_fallthru
      _
    // Predicated region
    $region154: #{neural_model_forward.1} parent=1 // pred_check
      _
    $region155: #{neural_model_forward.1} parent=1 // pred_check_branch
      %268 = sbr.rel (0) target = $region157
    $region156: #{neural_model_forward.1} parent=1 // pred_region
      %269 = dma.done [#allocation21], 16
    $region157: #{neural_model_forward.1} parent=1 // pred_fallthru
      _
    // Predicated region
    $region158: #{neural_model_forward.1} parent=1 // pred_check
      _
    $region159: #{neural_model_forward.1} parent=1 // pred_check_branch
      %271 = sbr.rel (0) target = $region161
    $region160: #{neural_model_forward.1} parent=1 // pred_region
      %272 = dma.done [#allocation24], 16
    $region161: #{neural_model_forward.1} parent=1 // pred_fallthru
      _
    // Predicated region
    $region162: #{neural_model_forward.1} parent=1 // pred_check
      _
    $region163: #{neural_model_forward.1} parent=1 // pred_check_branch
      %274 = sbr.rel (0) target = $region165
    $region164: #{neural_model_forward.1} parent=1 // pred_region
      %275 = dma.done [#allocation24], 896
    $region165: #{neural_model_forward.1} parent=1 // pred_fallthru
      _
    // Predicated region
    $region166: #{neural_model_forward.1} parent=1 // pred_check
      _
    $region167: #{neural_model_forward.1} parent=1 // pred_check_branch
      %277 = sbr.rel (0) target = $region169
    $region168: #{neural_model_forward.1} parent=1 // pred_region
      %278 = dma.done [#allocation27], 32
    $region169: #{neural_model_forward.1} parent=1 // pred_fallthru
      _
    %v280 = vld [vmem:[#allocation25] sm:$0xff]
    %v281 = vld [vmem:[#allocation25 + $0x8] sm:$0xff]
    %v282 = vld [vmem:[#allocation25 + $0x10] sm:$0xff]
    %v283 = vld [vmem:[#allocation25 + $0x18] sm:$0xff]
    %v284 = vld [vmem:[#allocation25 + $0x20] sm:$0xff]
    %v285 = vld [vmem:[#allocation25 + $0x28] sm:$0xff]
    %v286 = vld [vmem:[#allocation25 + $0x30] sm:$0xff]
    %v287 = vld [vmem:[%s24] sm:$0xff]
    %v288 = vld [vmem:[%s24 + $0x8] sm:$0xff]
    %v289 = vld [vmem:[%s24 + $0x10] sm:$0xff]
    %v290 = vld [vmem:[%s24 + $0x18] sm:$0xff]
    %v291 = vld [vmem:[%s24 + $0x20] sm:$0xff]
    %v292 = vld [vmem:[%s24 + $0x28] sm:$0xff]
    %v293 = vld [vmem:[%s24 + $0x30] sm:$0xff]
    %v294 = vld [vmem:[#allocation2] sm:$0xff]
    %v295 = vld [vmem:[#allocation2 + $0x8] sm:$0xff]
    %v296 = vld [vmem:[#allocation2 + $0x10] sm:$0xff]
    %v297 = vld [vmem:[#allocation2 + $0x18] sm:$0xff]
    %v298 = vld [vmem:[#allocation2 + $0x20] sm:$0xff]
    %v299 = vld [vmem:[#allocation2 + $0x28] sm:$0xff]
    %v300 = vld [vmem:[#allocation2 + $0x30] sm:$0xff]
    %v301 = vld [vmem:[#allocation5] sm:$0x3]
    %v302 = vld [vmem:[%s1] sm:$0xff]
    %v303 = vld [vmem:[%s1 + $0x8] sm:$0xff]
    %v304 = vld [vmem:[%s1 + $0x10] sm:$0xff]
    %v305 = vld [vmem:[%s1 + $0x18] sm:$0x33]
    %v306 = vpack.c.bf16 %v295, %v294
    %v307 = vpack.c.bf16 %v297, %v296
    %v308 = vpack.c.bf16 %v299, %v298
    %v309 = vpack.c.bf16 %v300, %v300
    %v314 = vunpack.c.l.b16 %v302
    %v315 = vunpack.c.h.b16 %v302
    %v316 = vunpack.c.l.b16 %v303
    %v317 = vunpack.c.h.b16 %v303
    %v318 = vunpack.c.l.b16 %v304
    %v319 = vunpack.c.h.b16 %v304
    %v320 = vunpack.c.l.b16 %v305
    %v321 = vunpack.c.h.b16 %v305
    %v322 = vpack.c.b16 %v316, %v314
    %v323 = vpack.c.b16 %v317, %v315
    %v324 = vpack.c.b16 %v320, %v318
    %v325 = vpack.c.b16 %v321, %v319
    %vm328 = vcmask 228352
    %v330 = vsel %vm328, %v306, 0
    %v333 = vsel %vm328, %v307, 0
    %v336 = vsel %vm328, %v308, 0
    %v339 = vsel %vm328, %v309, 0
    %vm341 = vcmask 1045504
    %v343 = vsel %vm341, %v324, 0
    %v346 = vsel %vm341, %v325, 0
    %348 = vmatprep.subr.bf16.mxu0 0
    %349 = vmatpush1.bf16.msra.mxu0 0
    %350 = vmatprep.subr.bf16.mxu0 0
    %351 = vmatpush1.bf16.msra.mxu0 0
    %352 = vmatprep.subr.bf16.mxu0 0
    %353 = vmatpush1.bf16.msra.mxu0 0
    %354 = vmatprep.subr.bf16.mxu0 0
    %355 = vmatpush1.bf16.msra.mxu0 0
    %356 = vmatprep.subr.bf16.mxu0 0
    %357 = vmatpush1.bf16.msra.mxu0 0
    %358 = vmatprep.subr.bf16.mxu0 0
    %359 = vmatpush1.bf16.msra.mxu0 0
    %360 = vmatprep.subr.bf16.mxu0 %v346
    %361 = vmatpush1.bf16.msra.mxu0 %v343
    %362 = vmatprep.subr.bf16.mxu0 %v323
    %363 = vmatpush1.bf16.msra.mxu0 %v322
    %364 = vmatprep.subr.bf16.mxu0 0
    %365 = vmatpush2.bf16.msra.mxu0 0
    %366 = vmatprep.subr.bf16.mxu0 0
    %367 = vmatpush2.bf16.msra.mxu0 0
    %368 = vmatprep.subr.bf16.mxu0 0
    %369 = vmatpush2.bf16.msra.mxu0 0
    %370 = vmatprep.subr.bf16.mxu0 0
    %371 = vmatpush2.bf16.msra.mxu0 0
    %372 = vmatprep.subr.bf16.mxu0 0
    %373 = vmatpush2.bf16.msra.mxu0 0
    %374 = vmatprep.subr.bf16.mxu0 0
    %375 = vmatpush2.bf16.msra.mxu0 0
    %376 = vmatprep.subr.bf16.mxu0 0
    %377 = vmatpush2.bf16.msra.mxu0 0
    %378 = vmatprep.subr.bf16.mxu0 0
    %379 = vmatpush2.bf16.msra.mxu0 0
    %380 = vmatprep.mubr.bf16.mxu0 0
    %381 = vmatmul.mubr.bf16.gmra.mxu0 %v330
    %v382 = vpop.f32.mrf.mxu0
    %v383 = vadd.f32 0.0, %v382
    %v384 = vpop.f32.mrf.mxu0
    %v385 = vadd.f32 0.0, %v384
    %v386 = vpop.f32.mrf.mxu0
    %v387 = vadd.f32 0.0, %v386
    %v388 = vpop.f32.mrf.mxu0
    %v389 = vadd.f32 0.0, %v388
    %390 = vmatprep.mubr.bf16.mxu0 0
    %391 = vmatmul.mubr.bf16.gmra.mxu0 %v333
    %v392 = vpop.f32.mrf.mxu0
    %v393 = vadd.f32 0.0, %v392
    %v394 = vpop.f32.mrf.mxu0
    %v395 = vadd.f32 0.0, %v394
    %v396 = vpop.f32.mrf.mxu0
    %v397 = vadd.f32 0.0, %v396
    %v398 = vpop.f32.mrf.mxu0
    %v399 = vadd.f32 0.0, %v398
    %400 = vmatprep.mubr.bf16.mxu0 0
    %401 = vmatmul.mubr.bf16.gmra.mxu0 %v336
    %v402 = vpop.f32.mrf.mxu0
    %v403 = vadd.f32 0.0, %v402
    %v404 = vpop.f32.mrf.mxu0
    %v405 = vadd.f32 0.0, %v404
    %v406 = vpop.f32.mrf.mxu0
    %v407 = vadd.f32 0.0, %v406
    %v408 = vpop.f32.mrf.mxu0
    %v409 = vadd.f32 0.0, %v408
    %410 = vmatprep.mubr.bf16.mxu0 0
    %411 = vmatmul.mubr.bf16.gmra.mxu0 %v339
    %v412 = vpop.f32.mrf.mxu0
    %v413 = vadd.f32 0.0, %v412
    %v414 = vpop.f32.mrf.mxu0
    %v415 = vadd.f32 0.0, %v414
    %v416 = vpop.f32.mrf.mxu0
    %v417 = vpop.f32.mrf.mxu0
    %418 = vdwg.mxu0
    %v420 = vlaneseq
    %v421 = vshrl.u32 %v420, 7
    %v422 = vsub.s32 0, %v421
    %v423 = vrot.slane %v301, %v422
    %v424 = vlaneseq
    %v425 = vshrl.u32 %v424, 7
    %v426 = vsub.s32 1, %v425
    %v427 = vrot.slane %v301, %v426
    %v430 = vadd.f32 %v423, %v383
    %v431 = vadd.f32 %v427, %v385
    %v432 = vadd.f32 %v423, %v387
    %v433 = vadd.f32 %v427, %v389
    %v434 = vadd.f32 %v423, %v393
    %v435 = vadd.f32 %v427, %v395
    %v436 = vadd.f32 %v423, %v397
    %v437 = vadd.f32 %v427, %v399
    %v438 = vadd.f32 %v423, %v403
    %v439 = vadd.f32 %v427, %v405
    %v440 = vadd.f32 %v423, %v407
    %v441 = vadd.f32 %v427, %v409
    %v442 = vadd.f32 %v423, %v413
    %v443 = vadd.f32 %v427, %v415
    %v444 = vrot.slane %v294, 1
    %v445 = vrot.slane %v295, 1
    %v446 = vrot.slane %v296, 1
    %v447 = vrot.slane %v297, 1
    %v448 = vrot.slane %v298, 1
    %v449 = vrot.slane %v299, 1
    %v450 = vrot.slane %v300, 1
    %v451 = vlaneseq
    %v452 = vshrl.u32 %v451, 7
    %vm453 = vcmp.lt.s32.totalorder %v452, 7
    %v454 = vsel %vm453, %v449, %v450
    %v455 = vsel %vm453, %v448, %v449
    %v456 = vsel %vm453, %v447, %v448
    %v457 = vsel %vm453, %v446, %v447
    %v458 = vsel %vm453, %v445, %v446
    %v459 = vsel %vm453, %v444, %v445
    %v460 = vsel %vm453, %v450, %v444
    %s461 = scalar_lea.vmem %s1, 32
    %v462 = vld [vmem:[%s461] sm:$0xff]
    %v463 = vld [vmem:[%s461 + $0x8] sm:$0xff]
    %v464 = vld [vmem:[%s461 + $0x10] sm:$0xff]
    %v465 = vld [vmem:[%s461 + $0x18] sm:$0x33]
    %v466 = vpack.c.bf16 %v458, %v459
    %v467 = vpack.c.bf16 %v456, %v457
    %v468 = vpack.c.bf16 %v454, %v455
    %v469 = vpack.c.bf16 %v460, %v460
    %v474 = vunpack.c.l.b16 %v462
    %v475 = vunpack.c.h.b16 %v462
    %v476 = vunpack.c.l.b16 %v463
    %v477 = vunpack.c.h.b16 %v463
    %v478 = vunpack.c.l.b16 %v464
    %v479 = vunpack.c.h.b16 %v464
    %v480 = vunpack.c.l.b16 %v465
    %v481 = vunpack.c.h.b16 %v465
    %v482 = vpack.c.b16 %v476, %v474
    %v483 = vpack.c.b16 %v477, %v475
    %v484 = vpack.c.b16 %v480, %v478
    %v485 = vpack.c.b16 %v481, %v479
    %v489 = vsel %vm328, %v466, 0
    %v492 = vsel %vm328, %v467, 0
    %v495 = vsel %vm328, %v468, 0
    %v498 = vsel %vm328, %v469, 0
    %v501 = vsel %vm341, %v484, 0
    %v504 = vsel %vm341, %v485, 0
    %506 = vmatprep.subr.bf16.mxu0 0
    %507 = vmatpush1.bf16.msra.mxu0 0
    %508 = vmatprep.subr.bf16.mxu0 0
    %509 = vmatpush1.bf16.msra.mxu0 0
    %510 = vmatprep.subr.bf16.mxu0 0
    %511 = vmatpush1.bf16.msra.mxu0 0
    %512 = vmatprep.subr.bf16.mxu0 0
    %513 = vmatpush1.bf16.msra.mxu0 0
    %514 = vmatprep.subr.bf16.mxu0 0
    %515 = vmatpush1.bf16.msra.mxu0 0
    %516 = vmatprep.subr.bf16.mxu0 0
    %517 = vmatpush1.bf16.msra.mxu0 0
    %518 = vmatprep.subr.bf16.mxu0 %v504
    %519 = vmatpush1.bf16.msra.mxu0 %v501
    %520 = vmatprep.subr.bf16.mxu0 %v483
    %521 = vmatpush1.bf16.msra.mxu0 %v482
    %522 = vmatprep.subr.bf16.mxu0 0
    %523 = vmatpush2.bf16.msra.mxu0 0
    %524 = vmatprep.subr.bf16.mxu0 0
    %525 = vmatpush2.bf16.msra.mxu0 0
    %526 = vmatprep.subr.bf16.mxu0 0
    %527 = vmatpush2.bf16.msra.mxu0 0
    %528 = vmatprep.subr.bf16.mxu0 0
    %529 = vmatpush2.bf16.msra.mxu0 0
    %530 = vmatprep.subr.bf16.mxu0 0
    %531 = vmatpush2.bf16.msra.mxu0 0
    %532 = vmatprep.subr.bf16.mxu0 0
    %533 = vmatpush2.bf16.msra.mxu0 0
    %534 = vmatprep.subr.bf16.mxu0 0
    %535 = vmatpush2.bf16.msra.mxu0 0
    %536 = vmatprep.subr.bf16.mxu0 0
    %537 = vmatpush2.bf16.msra.mxu0 0
    %538 = vmatprep.mubr.bf16.mxu0 0
    %539 = vmatmul.mubr.bf16.gmra.mxu0 %v489
    %v540 = vpop.f32.mrf.mxu0
    %v541 = vadd.f32 0.0, %v540
    %v542 = vpop.f32.mrf.mxu0
    %v543 = vadd.f32 0.0, %v542
    %v544 = vpop.f32.mrf.mxu0
    %v545 = vadd.f32 0.0, %v544
    %v546 = vpop.f32.mrf.mxu0
    %v547 = vadd.f32 0.0, %v546
    %548 = vmatprep.mubr.bf16.mxu0 0
    %549 = vmatmul.mubr.bf16.gmra.mxu0 %v492
    %v550 = vpop.f32.mrf.mxu0
    %v551 = vadd.f32 0.0, %v550
    %v552 = vpop.f32.mrf.mxu0
    %v553 = vadd.f32 0.0, %v552
    %v554 = vpop.f32.mrf.mxu0
    %v555 = vadd.f32 0.0, %v554
    %v556 = vpop.f32.mrf.mxu0
    %v557 = vadd.f32 0.0, %v556
    %558 = vmatprep.mubr.bf16.mxu0 0
    %559 = vmatmul.mubr.bf16.gmra.mxu0 %v495
    %v560 = vpop.f32.mrf.mxu0
    %v561 = vadd.f32 0.0, %v560
    %v562 = vpop.f32.mrf.mxu0
    %v563 = vadd.f32 0.0, %v562
    %v564 = vpop.f32.mrf.mxu0
    %v565 = vadd.f32 0.0, %v564
    %v566 = vpop.f32.mrf.mxu0
    %v567 = vadd.f32 0.0, %v566
    %568 = vmatprep.mubr.bf16.mxu0 0
    %569 = vmatmul.mubr.bf16.gmra.mxu0 %v498
    %v570 = vpop.f32.mrf.mxu0
    %v571 = vadd.f32 0.0, %v570
    %v572 = vpop.f32.mrf.mxu0
    %v573 = vadd.f32 0.0, %v572
    %v574 = vpop.f32.mrf.mxu0
    %v575 = vpop.f32.mrf.mxu0
    %576 = vdwg.mxu0
    %v577 = vadd.f32 %v430, %v541
    %v578 = vadd.f32 %v431, %v543
    %v579 = vadd.f32 %v432, %v545
    %v580 = vadd.f32 %v433, %v547
    %v581 = vadd.f32 %v434, %v551
    %v582 = vadd.f32 %v435, %v553
    %v583 = vadd.f32 %v436, %v555
    %v584 = vadd.f32 %v437, %v557
    %v585 = vadd.f32 %v438, %v561
    %v586 = vadd.f32 %v439, %v563
    %v587 = vadd.f32 %v440, %v565
    %v588 = vadd.f32 %v441, %v567
    %v589 = vadd.f32 %v442, %v571
    %v590 = vadd.f32 %v443, %v573
    %v591 = vrot.slane %v294, 2
    %v592 = vrot.slane %v295, 2
    %v593 = vrot.slane %v296, 2
    %v594 = vrot.slane %v297, 2
    %v595 = vrot.slane %v298, 2
    %v596 = vrot.slane %v299, 2
    %v597 = vrot.slane %v300, 2
    %vm598 = vcmp.lt.s32.totalorder %v452, 6
    %v599 = vsel %vm598, %v596, %v597
    %v600 = vsel %vm598, %v595, %v596
    %v601 = vsel %vm598, %v594, %v595
    %v602 = vsel %vm598, %v593, %v594
    %v603 = vsel %vm598, %v592, %v593
    %v604 = vsel %vm598, %v591, %v592
    %v605 = vsel %vm598, %v597, %v591
    %s606 = scalar_lea.vmem %s1, 64
    %v607 = vld [vmem:[%s606] sm:$0xff]
    %v608 = vld [vmem:[%s606 + $0x8] sm:$0xff]
    %v609 = vld [vmem:[%s606 + $0x10] sm:$0xff]
    %v610 = vld [vmem:[%s606 + $0x18] sm:$0x33]
    %v611 = vpack.c.bf16 %v603, %v604
    %v612 = vpack.c.bf16 %v601, %v602
    %v613 = vpack.c.bf16 %v599, %v600
    %v614 = vpack.c.bf16 %v605, %v605
    %v619 = vunpack.c.l.b16 %v607
    %v620 = vunpack.c.h.b16 %v607
    %v621 = vunpack.c.l.b16 %v608
    %v622 = vunpack.c.h.b16 %v608
    %v623 = vunpack.c.l.b16 %v609
    %v624 = vunpack.c.h.b16 %v609
    %v625 = vunpack.c.l.b16 %v610
    %v626 = vunpack.c.h.b16 %v610
    %v627 = vpack.c.b16 %v621, %v619
    %v628 = vpack.c.b16 %v622, %v620
    %v629 = vpack.c.b16 %v625, %v623
    %v630 = vpack.c.b16 %v626, %v624
    %v634 = vsel %vm328, %v611, 0
    %v637 = vsel %vm328, %v612, 0
    %v640 = vsel %vm328, %v613, 0
    %v643 = vsel %vm328, %v614, 0
    %v646 = vsel %vm341, %v629, 0
    %v649 = vsel %vm341, %v630, 0
    %651 = vmatprep.subr.bf16.mxu0 0
    %652 = vmatpush1.bf16.msra.mxu0 0
    %653 = vmatprep.subr.bf16.mxu0 0
    %654 = vmatpush1.bf16.msra.mxu0 0
    %655 = vmatprep.subr.bf16.mxu0 0
    %656 = vmatpush1.bf16.msra.mxu0 0
    %657 = vmatprep.subr.bf16.mxu0 0
    %658 = vmatpush1.bf16.msra.mxu0 0
    %659 = vmatprep.subr.bf16.mxu0 0
    %660 = vmatpush1.bf16.msra.mxu0 0
    %661 = vmatprep.subr.bf16.mxu0 0
    %662 = vmatpush1.bf16.msra.mxu0 0
    %663 = vmatprep.subr.bf16.mxu0 %v649
    %664 = vmatpush1.bf16.msra.mxu0 %v646
    %665 = vmatprep.subr.bf16.mxu0 %v628
    %666 = vmatpush1.bf16.msra.mxu0 %v627
    %667 = vmatprep.subr.bf16.mxu0 0
    %668 = vmatpush2.bf16.msra.mxu0 0
    %669 = vmatprep.subr.bf16.mxu0 0
    %670 = vmatpush2.bf16.msra.mxu0 0
    %671 = vmatprep.subr.bf16.mxu0 0
    %672 = vmatpush2.bf16.msra.mxu0 0
    %673 = vmatprep.subr.bf16.mxu0 0
    %674 = vmatpush2.bf16.msra.mxu0 0
    %675 = vmatprep.subr.bf16.mxu0 0
    %676 = vmatpush2.bf16.msra.mxu0 0
    %677 = vmatprep.subr.bf16.mxu0 0
    %678 = vmatpush2.bf16.msra.mxu0 0
    %679 = vmatprep.subr.bf16.mxu0 0
    %680 = vmatpush2.bf16.msra.mxu0 0
    %681 = vmatprep.subr.bf16.mxu0 0
    %682 = vmatpush2.bf16.msra.mxu0 0
    %683 = vmatprep.mubr.bf16.mxu0 0
    %684 = vmatmul.mubr.bf16.gmra.mxu0 %v634
    %v685 = vpop.f32.mrf.mxu0
    %v686 = vadd.f32 0.0, %v685
    %v687 = vpop.f32.mrf.mxu0
    %v688 = vadd.f32 0.0, %v687
    %v689 = vpop.f32.mrf.mxu0
    %v690 = vadd.f32 0.0, %v689
    %v691 = vpop.f32.mrf.mxu0
    %v692 = vadd.f32 0.0, %v691
    %693 = vmatprep.mubr.bf16.mxu0 0
    %694 = vmatmul.mubr.bf16.gmra.mxu0 %v637
    %v695 = vpop.f32.mrf.mxu0
    %v696 = vadd.f32 0.0, %v695
    %v697 = vpop.f32.mrf.mxu0
    %v698 = vadd.f32 0.0, %v697
    %v699 = vpop.f32.mrf.mxu0
    %v700 = vadd.f32 0.0, %v699
    %v701 = vpop.f32.mrf.mxu0
    %v702 = vadd.f32 0.0, %v701
    %703 = vmatprep.mubr.bf16.mxu0 0
    %704 = vmatmul.mubr.bf16.gmra.mxu0 %v640
    %v705 = vpop.f32.mrf.mxu0
    %v706 = vadd.f32 0.0, %v705
    %v707 = vpop.f32.mrf.mxu0
    %v708 = vadd.f32 0.0, %v707
    %v709 = vpop.f32.mrf.mxu0
    %v710 = vadd.f32 0.0, %v709
    %v711 = vpop.f32.mrf.mxu0
    %v712 = vadd.f32 0.0, %v711
    %713 = vmatprep.mubr.bf16.mxu0 0
    %714 = vmatmul.mubr.bf16.gmra.mxu0 %v643
    %v715 = vpop.f32.mrf.mxu0
    %v716 = vadd.f32 0.0, %v715
    %v717 = vpop.f32.mrf.mxu0
    %v718 = vadd.f32 0.0, %v717
    %v719 = vpop.f32.mrf.mxu0
    %v720 = vpop.f32.mrf.mxu0
    %721 = vdwg.mxu0
    %v722 = vadd.f32 %v577, %v686
    %v723 = vadd.f32 %v578, %v688
    %v724 = vadd.f32 %v579, %v690
    %v725 = vadd.f32 %v580, %v692
    %v726 = vadd.f32 %v581, %v696
    %v727 = vadd.f32 %v582, %v698
    %v728 = vadd.f32 %v583, %v700
    %v729 = vadd.f32 %v584, %v702
    %v730 = vadd.f32 %v585, %v706
    %v731 = vadd.f32 %v586, %v708
    %v732 = vadd.f32 %v587, %v710
    %v733 = vadd.f32 %v588, %v712
    %v734 = vadd.f32 %v589, %v716
    %v735 = vadd.f32 %v590, %v718
    %v736 = vrot.slane %v294, 3
    %v737 = vrot.slane %v295, 3
    %v738 = vrot.slane %v296, 3
    %v739 = vrot.slane %v297, 3
    %v740 = vrot.slane %v298, 3
    %v741 = vrot.slane %v299, 3
    %v742 = vrot.slane %v300, 3
    %vm743 = vcmp.lt.s32.totalorder %v452, 5
    %v744 = vsel %vm743, %v741, %v742
    %v745 = vsel %vm743, %v740, %v741
    %v746 = vsel %vm743, %v739, %v740
    %v747 = vsel %vm743, %v738, %v739
    %v748 = vsel %vm743, %v737, %v738
    %v749 = vsel %vm743, %v736, %v737
    %v750 = vsel %vm743, %v742, %v736
    %s751 = scalar_lea.vmem %s1, 96
    %v752 = vld [vmem:[%s751] sm:$0xff]
    %v753 = vld [vmem:[%s751 + $0x8] sm:$0xff]
    %v754 = vld [vmem:[%s751 + $0x10] sm:$0xff]
    %v755 = vld [vmem:[%s751 + $0x18] sm:$0x33]
    %v756 = vpack.c.bf16 %v748, %v749
    %v757 = vpack.c.bf16 %v746, %v747
    %v758 = vpack.c.bf16 %v744, %v745
    %v759 = vpack.c.bf16 %v750, %v750
    %v764 = vunpack.c.l.b16 %v752
    %v765 = vunpack.c.h.b16 %v752
    %v766 = vunpack.c.l.b16 %v753
    %v767 = vunpack.c.h.b16 %v753
    %v768 = vunpack.c.l.b16 %v754
    %v769 = vunpack.c.h.b16 %v754
    %v770 = vunpack.c.l.b16 %v755
    %v771 = vunpack.c.h.b16 %v755
    %v772 = vpack.c.b16 %v766, %v764
    %v773 = vpack.c.b16 %v767, %v765
    %v774 = vpack.c.b16 %v770, %v768
    %v775 = vpack.c.b16 %v771, %v769
    %v779 = vsel %vm328, %v756, 0
    %v782 = vsel %vm328, %v757, 0
    %v785 = vsel %vm328, %v758, 0
    %v788 = vsel %vm328, %v759, 0
    %v791 = vsel %vm341, %v774, 0
    %v794 = vsel %vm341, %v775, 0
    %796 = vmatprep.subr.bf16.mxu0 0
    %797 = vmatpush1.bf16.msra.mxu0 0
    %798 = vmatprep.subr.bf16.mxu0 0
    %799 = vmatpush1.bf16.msra.mxu0 0
    %800 = vmatprep.subr.bf16.mxu0 0
    %801 = vmatpush1.bf16.msra.mxu0 0
    %802 = vmatprep.subr.bf16.mxu0 0
    %803 = vmatpush1.bf16.msra.mxu0 0
    %804 = vmatprep.subr.bf16.mxu0 0
    %805 = vmatpush1.bf16.msra.mxu0 0
    %806 = vmatprep.subr.bf16.mxu0 0
    %807 = vmatpush1.bf16.msra.mxu0 0
    %808 = vmatprep.subr.bf16.mxu0 %v794
    %809 = vmatpush1.bf16.msra.mxu0 %v791
    %810 = vmatprep.subr.bf16.mxu0 %v773
    %811 = vmatpush1.bf16.msra.mxu0 %v772
    %812 = vmatprep.subr.bf16.mxu0 0
    %813 = vmatpush2.bf16.msra.mxu0 0
    %814 = vmatprep.subr.bf16.mxu0 0
    %815 = vmatpush2.bf16.msra.mxu0 0
    %816 = vmatprep.subr.bf16.mxu0 0
    %817 = vmatpush2.bf16.msra.mxu0 0
    %818 = vmatprep.subr.bf16.mxu0 0
    %819 = vmatpush2.bf16.msra.mxu0 0
    %820 = vmatprep.subr.bf16.mxu0 0
    %821 = vmatpush2.bf16.msra.mxu0 0
    %822 = vmatprep.subr.bf16.mxu0 0
    %823 = vmatpush2.bf16.msra.mxu0 0
    %824 = vmatprep.subr.bf16.mxu0 0
    %825 = vmatpush2.bf16.msra.mxu0 0
    %826 = vmatprep.subr.bf16.mxu0 0
    %827 = vmatpush2.bf16.msra.mxu0 0
    %828 = vmatprep.mubr.bf16.mxu0 0
    %829 = vmatmul.mubr.bf16.gmra.mxu0 %v779
    %v830 = vpop.f32.mrf.mxu0
    %v831 = vadd.f32 0.0, %v830
    %v832 = vpop.f32.mrf.mxu0
    %v833 = vadd.f32 0.0, %v832
    %v834 = vpop.f32.mrf.mxu0
    %v835 = vadd.f32 0.0, %v834
    %v836 = vpop.f32.mrf.mxu0
    %v837 = vadd.f32 0.0, %v836
    %838 = vmatprep.mubr.bf16.mxu0 0
    %839 = vmatmul.mubr.bf16.gmra.mxu0 %v782
    %v840 = vpop.f32.mrf.mxu0
    %v841 = vadd.f32 0.0, %v840
    %v842 = vpop.f32.mrf.mxu0
    %v843 = vadd.f32 0.0, %v842
    %v844 = vpop.f32.mrf.mxu0
    %v845 = vadd.f32 0.0, %v844
    %v846 = vpop.f32.mrf.mxu0
    %v847 = vadd.f32 0.0, %v846
    %848 = vmatprep.mubr.bf16.mxu0 0
    %849 = vmatmul.mubr.bf16.gmra.mxu0 %v785
    %v850 = vpop.f32.mrf.mxu0
    %v851 = vadd.f32 0.0, %v850
    %v852 = vpop.f32.mrf.mxu0
    %v853 = vadd.f32 0.0, %v852
    %v854 = vpop.f32.mrf.mxu0
    %v855 = vadd.f32 0.0, %v854
    %v856 = vpop.f32.mrf.mxu0
    %v857 = vadd.f32 0.0, %v856
    %858 = vmatprep.mubr.bf16.mxu0 0
    %859 = vmatmul.mubr.bf16.gmra.mxu0 %v788
    %v860 = vpop.f32.mrf.mxu0
    %v861 = vadd.f32 0.0, %v860
    %v862 = vpop.f32.mrf.mxu0
    %v863 = vadd.f32 0.0, %v862
    %v864 = vpop.f32.mrf.mxu0
    %v865 = vpop.f32.mrf.mxu0
    %866 = vdwg.mxu0
    %v867 = vadd.f32 %v722, %v831
    %v868 = vadd.f32 %v723, %v833
    %v869 = vadd.f32 %v724, %v835
    %v870 = vadd.f32 %v725, %v837
    %v871 = vadd.f32 %v726, %v841
    %v872 = vadd.f32 %v727, %v843
    %v873 = vadd.f32 %v728, %v845
    %v874 = vadd.f32 %v729, %v847
    %v875 = vadd.f32 %v730, %v851
    %v876 = vadd.f32 %v731, %v853
    %v877 = vadd.f32 %v732, %v855
    %v878 = vadd.f32 %v733, %v857
    %v879 = vadd.f32 %v734, %v861
    %v880 = vadd.f32 %v735, %v863
    %v881 = vrot.slane %v294, 4
    %v882 = vrot.slane %v295, 4
    %v883 = vrot.slane %v296, 4
    %v884 = vrot.slane %v297, 4
    %v885 = vrot.slane %v298, 4
    %v886 = vrot.slane %v299, 4
    %v887 = vrot.slane %v300, 4
    %vm888 = vcmp.lt.s32.totalorder %v452, 4
    %v889 = vsel %vm888, %v886, %v887
    %v890 = vsel %vm888, %v885, %v886
    %v891 = vsel %vm888, %v884, %v885
    %v892 = vsel %vm888, %v883, %v884
    %v893 = vsel %vm888, %v882, %v883
    %v894 = vsel %vm888, %v881, %v882
    %v895 = vsel %vm888, %v887, %v881
    %s896 = scalar_lea.vmem %s1, 128
    %v897 = vld [vmem:[%s896] sm:$0xff]
    %v898 = vld [vmem:[%s896 + $0x8] sm:$0xff]
    %v899 = vld [vmem:[%s896 + $0x10] sm:$0xff]
    %v900 = vld [vmem:[%s896 + $0x18] sm:$0x33]
    %v901 = vpack.c.bf16 %v893, %v894
    %v902 = vpack.c.bf16 %v891, %v892
    %v903 = vpack.c.bf16 %v889, %v890
    %v904 = vpack.c.bf16 %v895, %v895
    %v909 = vunpack.c.l.b16 %v897
    %v910 = vunpack.c.h.b16 %v897
    %v911 = vunpack.c.l.b16 %v898
    %v912 = vunpack.c.h.b16 %v898
    %v913 = vunpack.c.l.b16 %v899
    %v914 = vunpack.c.h.b16 %v899
    %v915 = vunpack.c.l.b16 %v900
    %v916 = vunpack.c.h.b16 %v900
    %v917 = vpack.c.b16 %v911, %v909
    %v918 = vpack.c.b16 %v912, %v910
    %v919 = vpack.c.b16 %v915, %v913
    %v920 = vpack.c.b16 %v916, %v914
    %v924 = vsel %vm328, %v901, 0
    %v927 = vsel %vm328, %v902, 0
    %v930 = vsel %vm328, %v903, 0
    %v933 = vsel %vm328, %v904, 0
    %v936 = vsel %vm341, %v919, 0
    %v939 = vsel %vm341, %v920, 0
    %941 = vmatprep.subr.bf16.mxu0 0
    %942 = vmatpush1.bf16.msra.mxu0 0
    %943 = vmatprep.subr.bf16.mxu0 0
    %944 = vmatpush1.bf16.msra.mxu0 0
    %945 = vmatprep.subr.bf16.mxu0 0
    %946 = vmatpush1.bf16.msra.mxu0 0
    %947 = vmatprep.subr.bf16.mxu0 0
    %948 = vmatpush1.bf16.msra.mxu0 0
    %949 = vmatprep.subr.bf16.mxu0 0
    %950 = vmatpush1.bf16.msra.mxu0 0
    %951 = vmatprep.subr.bf16.mxu0 0
    %952 = vmatpush1.bf16.msra.mxu0 0
    %953 = vmatprep.subr.bf16.mxu0 %v939
    %954 = vmatpush1.bf16.msra.mxu0 %v936
    %955 = vmatprep.subr.bf16.mxu0 %v918
    %956 = vmatpush1.bf16.msra.mxu0 %v917
    %957 = vmatprep.subr.bf16.mxu0 0
    %958 = vmatpush2.bf16.msra.mxu0 0
    %959 = vmatprep.subr.bf16.mxu0 0
    %960 = vmatpush2.bf16.msra.mxu0 0
    %961 = vmatprep.subr.bf16.mxu0 0
    %962 = vmatpush2.bf16.msra.mxu0 0
    %963 = vmatprep.subr.bf16.mxu0 0
    %964 = vmatpush2.bf16.msra.mxu0 0
    %965 = vmatprep.subr.bf16.mxu0 0
    %966 = vmatpush2.bf16.msra.mxu0 0
    %967 = vmatprep.subr.bf16.mxu0 0
    %968 = vmatpush2.bf16.msra.mxu0 0
    %969 = vmatprep.subr.bf16.mxu0 0
    %970 = vmatpush2.bf16.msra.mxu0 0
    %971 = vmatprep.subr.bf16.mxu0 0
    %972 = vmatpush2.bf16.msra.mxu0 0
    %973 = vmatprep.mubr.bf16.mxu0 0
    %974 = vmatmul.mubr.bf16.gmra.mxu0 %v924
    %v975 = vpop.f32.mrf.mxu0
    %v976 = vadd.f32 0.0, %v975
    %v977 = vpop.f32.mrf.mxu0
    %v978 = vadd.f32 0.0, %v977
    %v979 = vpop.f32.mrf.mxu0
    %v980 = vadd.f32 0.0, %v979
    %v981 = vpop.f32.mrf.mxu0
    %v982 = vadd.f32 0.0, %v981
    %983 = vmatprep.mubr.bf16.mxu0 0
    %984 = vmatmul.mubr.bf16.gmra.mxu0 %v927
    %v985 = vpop.f32.mrf.mxu0
    %v986 = vadd.f32 0.0, %v985
    %v987 = vpop.f32.mrf.mxu0
    %v988 = vadd.f32 0.0, %v987
    %v989 = vpop.f32.mrf.mxu0
    %v990 = vadd.f32 0.0, %v989
    %v991 = vpop.f32.mrf.mxu0
    %v992 = vadd.f32 0.0, %v991
    %993 = vmatprep.mubr.bf16.mxu0 0
    %994 = vmatmul.mubr.bf16.gmra.mxu0 %v930
    %v995 = vpop.f32.mrf.mxu0
    %v996 = vadd.f32 0.0, %v995
    %v997 = vpop.f32.mrf.mxu0
    %v998 = vadd.f32 0.0, %v997
    %v999 = vpop.f32.mrf.mxu0
    %v1000 = vadd.f32 0.0, %v999
    %v1001 = vpop.f32.mrf.mxu0
    %v1002 = vadd.f32 0.0, %v1001
    %1003 = vmatprep.mubr.bf16.mxu0 0
    %1004 = vmatmul.mubr.bf16.gmra.mxu0 %v933
    %v1005 = vpop.f32.mrf.mxu0
    %v1006 = vadd.f32 0.0, %v1005
    %v1007 = vpop.f32.mrf.mxu0
    %v1008 = vadd.f32 0.0, %v1007
    %v1009 = vpop.f32.mrf.mxu0
    %v1010 = vpop.f32.mrf.mxu0
    %1011 = vdwg.mxu0
    %v1012 = vadd.f32 %v867, %v976
    %v1013 = vadd.f32 %v868, %v978
    %v1014 = vadd.f32 %v869, %v980
    %v1015 = vadd.f32 %v870, %v982
    %v1016 = vadd.f32 %v871, %v986
    %v1017 = vadd.f32 %v872, %v988
    %v1018 = vadd.f32 %v873, %v990
    %v1019 = vadd.f32 %v874, %v992
    %v1020 = vadd.f32 %v875, %v996
    %v1021 = vadd.f32 %v876, %v998
    %v1022 = vadd.f32 %v877, %v1000
    %v1023 = vadd.f32 %v878, %v1002
    %v1024 = vadd.f32 %v879, %v1006
    %v1025 = vadd.f32 %v880, %v1008
    %v1026 = vrot.slane %v1012, 1
    %v1027 = vrot.slane %v1013, 1
    %v1028 = vrot.slane %v1014, 1
    %v1029 = vrot.slane %v1015, 1
    %v1030 = vrot.slane %v1016, 1
    %v1031 = vrot.slane %v1017, 1
    %v1032 = vrot.slane %v1018, 1
    %v1033 = vrot.slane %v1019, 1
    %v1034 = vrot.slane %v1020, 1
    %v1035 = vrot.slane %v1021, 1
    %v1036 = vrot.slane %v1022, 1
    %v1037 = vrot.slane %v1023, 1
    %v1038 = vrot.slane %v1024, 1
    %v1039 = vrot.slane %v1025, 1
    %v1040 = vsel %vm453, %v1036, %v1038
    %v1041 = vsel %vm453, %v1037, %v1039
    %v1042 = vsel %vm453, %v1034, %v1036
    %v1043 = vsel %vm453, %v1035, %v1037
    %v1044 = vsel %vm453, %v1032, %v1034
    %v1045 = vsel %vm453, %v1033, %v1035
    %v1046 = vsel %vm453, %v1030, %v1032
    %v1047 = vsel %vm453, %v1031, %v1033
    %v1048 = vsel %vm453, %v1028, %v1030
    %v1049 = vsel %vm453, %v1029, %v1031
    %v1050 = vsel %vm453, %v1026, %v1028
    %v1051 = vsel %vm453, %v1027, %v1029
    %v1052 = vsel %vm453, %v1038, %v1026
    %v1053 = vsel %vm453, %v1039, %v1027
    %v1054 = vmax.f32 %v1012, %v1050
    %v1055 = vmax.f32 %v1013, %v1051
    %v1056 = vmax.f32 %v1014, %v1048
    %v1057 = vmax.f32 %v1015, %v1049
    %v1058 = vmax.f32 %v1016, %v1046
    %v1059 = vmax.f32 %v1017, %v1047
    %v1060 = vmax.f32 %v1018, %v1044
    %v1061 = vmax.f32 %v1019, %v1045
    %v1062 = vmax.f32 %v1020, %v1042
    %v1063 = vmax.f32 %v1021, %v1043
    %v1064 = vmax.f32 %v1022, %v1040
    %v1065 = vmax.f32 %v1023, %v1041
    %v1066 = vmax.f32 %v1024, %v1052
    %v1067 = vmax.f32 %v1025, %v1053
    %v1068 = vld [vmem:[%s7] sm:$0xff]
    %v1069 = vld [vmem:[%s7 + $0x8] sm:$0xff]
    %v1070 = vld [vmem:[%s7 + $0x10] sm:$0xff]
    %v1071 = vld [vmem:[%s7 + $0x18] sm:$0xff]
    %v1072 = vld [vmem:[%s7 + $0x20] sm:$0xff]
    %v1073 = vld [vmem:[%s7 + $0x28] sm:$0xff]
    %v1074 = vld [vmem:[%s7 + $0x30] sm:$0xff]
    %v1075 = vld [vmem:[%s7 + $0x38] sm:$0xff]
    %v1076 = vld [vmem:[%s7 + $0x40] sm:$0xff]
    %v1077 = vld [vmem:[%s7 + $0x48] sm:$0xff]
    %v1078 = vld [vmem:[%s7 + $0x50] sm:$0xff]
    %v1079 = vld [vmem:[%s7 + $0x58] sm:$0xff]
    %v1080 = vld [vmem:[%s7 + $0x60] sm:$0xff]
    %v1081 = vld [vmem:[%s7 + $0x68] sm:$0xff]
    %v1082 = vld [vmem:[%s7 + $0x70] sm:$0xff]
    %v1083 = vld [vmem:[%s7 + $0x78] sm:$0xff]
    %v1084 = vld [vmem:[%s7 + $0x80] sm:$0xff]
    %v1085 = vld [vmem:[%s7 + $0x88] sm:$0xff]
    %v1086 = vld [vmem:[%s7 + $0x90] sm:$0xff]
    %v1087 = vld [vmem:[%s7 + $0x98] sm:$0xff]
    %v1088 = vld [vmem:[%s7 + $0xa0] sm:$0xff]
    %v1089 = vld [vmem:[%s7 + $0xa8] sm:$0xff]
    %v1090 = vld [vmem:[%s7 + $0xb0] sm:$0xff]
    %v1091 = vld [vmem:[%s7 + $0xb8] sm:$0xff]
    %vm1092 = vcmask 523264
    %v1094 = vsel %vm1092, %v1055, 0
    %v1097 = vsel %vm1092, %v1057, 0
    %v1100 = vsel %vm1092, %v1059, 0
    %v1103 = vsel %vm1092, %v1061, 0
    %v1106 = vsel %vm1092, %v1063, 0
    %v1109 = vsel %vm1092, %v1065, 0
    %v1112 = vsel %vm1092, %v1067, 0
    %1114 = vmatprep.subr.mxu0 0.0
    %1115 = vmatpush1.msra.mxu0 %v1083
    %1116 = vmatprep.subr.mxu0 0.0
    %1117 = vmatpush1.msra.mxu0 %v1082
    %1118 = vmatprep.subr.mxu0 0.0
    %1119 = vmatpush1.msra.mxu0 %v1081
    %1120 = vmatprep.subr.mxu0 0.0
    %1121 = vmatpush1.msra.mxu0 %v1080
    %1122 = vmatprep.subr.mxu0 0.0
    %1123 = vmatpush1.msra.mxu0 %v1079
    %1124 = vmatprep.subr.mxu0 0.0
    %1125 = vmatpush1.msra.mxu0 %v1078
    %1126 = vmatprep.subr.mxu0 0.0
    %1127 = vmatpush1.msra.mxu0 %v1077
    %1128 = vmatprep.subr.mxu0 0.0
    %1129 = vmatpush1.msra.mxu0 %v1076
    %1130 = vmatprep.subr.mxu0 0.0
    %1131 = vmatpush1.msra.mxu0 %v1075
    %1132 = vmatprep.subr.mxu0 0.0
    %1133 = vmatpush1.msra.mxu0 %v1074
    %1134 = vmatprep.subr.mxu0 0.0
    %1135 = vmatpush1.msra.mxu0 %v1073
    %1136 = vmatprep.subr.mxu0 0.0
    %1137 = vmatpush1.msra.mxu0 %v1072
    %1138 = vmatprep.subr.mxu0 0.0
    %1139 = vmatpush1.msra.mxu0 %v1071
    %1140 = vmatprep.subr.mxu0 0.0
    %1141 = vmatpush1.msra.mxu0 %v1070
    %1142 = vmatprep.subr.mxu0 0.0
    %1143 = vmatpush1.msra.mxu0 %v1069
    %1144 = vmatprep.subr.mxu0 0.0
    %1145 = vmatpush1.msra.mxu0 %v1068
    %1146 = vmatprep.subr.mxu0 0.0
    %1147 = vmatpush2.msra.mxu0 0.0
    %1148 = vmatprep.subr.mxu0 0.0
    %1149 = vmatpush2.msra.mxu0 0.0
    %1150 = vmatprep.subr.mxu0 0.0
    %1151 = vmatpush2.msra.mxu0 0.0
    %1152 = vmatprep.subr.mxu0 0.0
    %1153 = vmatpush2.msra.mxu0 0.0
    %1154 = vmatprep.subr.mxu0 0.0
    %1155 = vmatpush2.msra.mxu0 0.0
    %1156 = vmatprep.subr.mxu0 0.0
    %1157 = vmatpush2.msra.mxu0 0.0
    %1158 = vmatprep.subr.mxu0 0.0
    %1159 = vmatpush2.msra.mxu0 0.0
    %1160 = vmatprep.subr.mxu0 0.0
    %1161 = vmatpush2.msra.mxu0 0.0
    %1162 = vmatprep.subr.mxu0 0.0
    %1163 = vmatpush2.msra.mxu0 %v1091
    %1164 = vmatprep.subr.mxu0 0.0
    %1165 = vmatpush2.msra.mxu0 %v1090
    %1166 = vmatprep.subr.mxu0 0.0
    %1167 = vmatpush2.msra.mxu0 %v1089
    %1168 = vmatprep.subr.mxu0 0.0
    %1169 = vmatpush2.msra.mxu0 %v1088
    %1170 = vmatprep.subr.mxu0 0.0
    %1171 = vmatpush2.msra.mxu0 %v1087
    %1172 = vmatprep.subr.mxu0 0.0
    %1173 = vmatpush2.msra.mxu0 %v1086
    %1174 = vmatprep.subr.mxu0 0.0
    %1175 = vmatpush2.msra.mxu0 %v1085
    %1176 = vmatprep.subr.mxu0 0.0
    %1177 = vmatpush2.msra.mxu0 %v1084
    %1178 = vmatprep.mubr.f32.mxu0 %v1094
    %1179 = vmatmul.mubr.f32.gmra.mxu0 %v1054
    %v1180 = vpop.f32.mrf.mxu0
    %v1181 = vadd.f32 0.0, %v1180
    %v1182 = vpop.f32.mrf.mxu0
    %1183 = vmatprep.mubr.f32.mxu0 %v1097
    %1184 = vmatmul.mubr.f32.gmra.mxu0 %v1056
    %v1185 = vpop.f32.mrf.mxu0
    %v1186 = vadd.f32 0.0, %v1185
    %v1187 = vpop.f32.mrf.mxu0
    %1188 = vmatprep.mubr.f32.mxu0 %v1100
    %1189 = vmatmul.mubr.f32.gmra.mxu0 %v1058
    %v1190 = vpop.f32.mrf.mxu0
    %v1191 = vadd.f32 0.0, %v1190
    %v1192 = vpop.f32.mrf.mxu0
    %1193 = vmatprep.mubr.f32.mxu0 %v1103
    %1194 = vmatmul.mubr.f32.gmra.mxu0 %v1060
    %v1195 = vpop.f32.mrf.mxu0
    %v1196 = vadd.f32 0.0, %v1195
    %v1197 = vpop.f32.mrf.mxu0
    %1198 = vmatprep.mubr.f32.mxu0 %v1106
    %1199 = vmatmul.mubr.f32.gmra.mxu0 %v1062
    %v1200 = vpop.f32.mrf.mxu0
    %v1201 = vadd.f32 0.0, %v1200
    %v1202 = vpop.f32.mrf.mxu0
    %1203 = vmatprep.mubr.f32.mxu0 %v1109
    %1204 = vmatmul.mubr.f32.gmra.mxu0 %v1064
    %v1205 = vpop.f32.mrf.mxu0
    %v1206 = vadd.f32 0.0, %v1205
    %v1207 = vpop.f32.mrf.mxu0
    %1208 = vmatprep.mubr.f32.mxu0 %v1112
    %1209 = vmatmul.mubr.f32.gmra.mxu0 %v1066
    %v1210 = vpop.f32.mrf.mxu0
    %v1211 = vadd.f32 0.0, %v1210
    %v1212 = vpop.f32.mrf.mxu0
    %1213 = vdwg.mxu0
    %v1214 = vld [vmem:[%s8] sm:$0xff]
    %v1215 = vld [vmem:[%s8 + $0x8] sm:$0xff]
    %v1216 = vld [vmem:[%s8 + $0x10] sm:$0xff]
    %v1217 = vld [vmem:[%s8 + $0x18] sm:$0xff]
    %v1218 = vld [vmem:[%s8 + $0x20] sm:$0xff]
    %v1219 = vld [vmem:[%s8 + $0x28] sm:$0xff]
    %v1220 = vld [vmem:[%s8 + $0x30] sm:$0xff]
    %v1221 = vld [vmem:[%s8 + $0x38] sm:$0xff]
    %v1222 = vld [vmem:[%s8 + $0x40] sm:$0xff]
    %v1223 = vld [vmem:[%s8 + $0x48] sm:$0xff]
    %v1224 = vld [vmem:[%s8 + $0x50] sm:$0xff]
    %v1225 = vld [vmem:[%s8 + $0x58] sm:$0xff]
    %v1226 = vld [vmem:[%s8 + $0x60] sm:$0xff]
    %v1227 = vld [vmem:[%s8 + $0x68] sm:$0xff]
    %v1228 = vld [vmem:[%s8 + $0x70] sm:$0xff]
    %v1229 = vld [vmem:[%s8 + $0x78] sm:$0xff]
    %v1230 = vld [vmem:[%s8 + $0x80] sm:$0xff]
    %v1231 = vld [vmem:[%s8 + $0x88] sm:$0xff]
    %v1232 = vld [vmem:[%s8 + $0x90] sm:$0xff]
    %v1233 = vld [vmem:[%s8 + $0x98] sm:$0xff]
    %v1234 = vld [vmem:[%s8 + $0xa0] sm:$0xff]
    %v1235 = vld [vmem:[%s8 + $0xa8] sm:$0xff]
    %v1236 = vld [vmem:[%s8 + $0xb0] sm:$0xff]
    %v1237 = vld [vmem:[%s8 + $0xb8] sm:$0xff]
    %1238 = vmatprep.subr.mxu0 0.0
    %1239 = vmatpush1.msra.mxu0 %v1229
    %1240 = vmatprep.subr.mxu0 0.0
    %1241 = vmatpush1.msra.mxu0 %v1228
    %1242 = vmatprep.subr.mxu0 0.0
    %1243 = vmatpush1.msra.mxu0 %v1227
    %1244 = vmatprep.subr.mxu0 0.0
    %1245 = vmatpush1.msra.mxu0 %v1226
    %1246 = vmatprep.subr.mxu0 0.0
    %1247 = vmatpush1.msra.mxu0 %v1225
    %1248 = vmatprep.subr.mxu0 0.0
    %1249 = vmatpush1.msra.mxu0 %v1224
    %1250 = vmatprep.subr.mxu0 0.0
    %1251 = vmatpush1.msra.mxu0 %v1223
    %1252 = vmatprep.subr.mxu0 0.0
    %1253 = vmatpush1.msra.mxu0 %v1222
    %1254 = vmatprep.subr.mxu0 0.0
    %1255 = vmatpush1.msra.mxu0 %v1221
    %1256 = vmatprep.subr.mxu0 0.0
    %1257 = vmatpush1.msra.mxu0 %v1220
    %1258 = vmatprep.subr.mxu0 0.0
    %1259 = vmatpush1.msra.mxu0 %v1219
    %1260 = vmatprep.subr.mxu0 0.0
    %1261 = vmatpush1.msra.mxu0 %v1218
    %1262 = vmatprep.subr.mxu0 0.0
    %1263 = vmatpush1.msra.mxu0 %v1217
    %1264 = vmatprep.subr.mxu0 0.0
    %1265 = vmatpush1.msra.mxu0 %v1216
    %1266 = vmatprep.subr.mxu0 0.0
    %1267 = vmatpush1.msra.mxu0 %v1215
    %1268 = vmatprep.subr.mxu0 0.0
    %1269 = vmatpush1.msra.mxu0 %v1214
    %1270 = vmatprep.subr.mxu0 0.0
    %1271 = vmatpush2.msra.mxu0 0.0
    %1272 = vmatprep.subr.mxu0 0.0
    %1273 = vmatpush2.msra.mxu0 0.0
    %1274 = vmatprep.subr.mxu0 0.0
    %1275 = vmatpush2.msra.mxu0 0.0
    %1276 = vmatprep.subr.mxu0 0.0
    %1277 = vmatpush2.msra.mxu0 0.0
    %1278 = vmatprep.subr.mxu0 0.0
    %1279 = vmatpush2.msra.mxu0 0.0
    %1280 = vmatprep.subr.mxu0 0.0
    %1281 = vmatpush2.msra.mxu0 0.0
    %1282 = vmatprep.subr.mxu0 0.0
    %1283 = vmatpush2.msra.mxu0 0.0
    %1284 = vmatprep.subr.mxu0 0.0
    %1285 = vmatpush2.msra.mxu0 0.0
    %1286 = vmatprep.subr.mxu0 0.0
    %1287 = vmatpush2.msra.mxu0 %v1237
    %1288 = vmatprep.subr.mxu0 0.0
    %1289 = vmatpush2.msra.mxu0 %v1236
    %1290 = vmatprep.subr.mxu0 0.0
    %1291 = vmatpush2.msra.mxu0 %v1235
    %1292 = vmatprep.subr.mxu0 0.0
    %1293 = vmatpush2.msra.mxu0 %v1234
    %1294 = vmatprep.subr.mxu0 0.0
    %1295 = vmatpush2.msra.mxu0 %v1233
    %1296 = vmatprep.subr.mxu0 0.0
    %1297 = vmatpush2.msra.mxu0 %v1232
    %1298 = vmatprep.subr.mxu0 0.0
    %1299 = vmatpush2.msra.mxu0 %v1231
    %1300 = vmatprep.subr.mxu0 0.0
    %1301 = vmatpush2.msra.mxu0 %v1230
    %1302 = vmatprep.mubr.f32.mxu0 %v1094
    %1303 = vmatmul.mubr.f32.gmra.mxu0 %v1054
    %v1304 = vpop.f32.mrf.mxu0
    %v1305 = vadd.f32 0.0, %v1304
    %v1306 = vpop.f32.mrf.mxu0
    %1307 = vmatprep.mubr.f32.mxu0 %v1097
    %1308 = vmatmul.mubr.f32.gmra.mxu0 %v1056
    %v1309 = vpop.f32.mrf.mxu0
    %v1310 = vadd.f32 0.0, %v1309
    %v1311 = vpop.f32.mrf.mxu0
    %1312 = vmatprep.mubr.f32.mxu0 %v1100
    %1313 = vmatmul.mubr.f32.gmra.mxu0 %v1058
    %v1314 = vpop.f32.mrf.mxu0
    %v1315 = vadd.f32 0.0, %v1314
    %v1316 = vpop.f32.mrf.mxu0
    %1317 = vmatprep.mubr.f32.mxu0 %v1103
    %1318 = vmatmul.mubr.f32.gmra.mxu0 %v1060
    %v1319 = vpop.f32.mrf.mxu0
    %v1320 = vadd.f32 0.0, %v1319
    %v1321 = vpop.f32.mrf.mxu0
    %1322 = vmatprep.mubr.f32.mxu0 %v1106
    %1323 = vmatmul.mubr.f32.gmra.mxu0 %v1062
    %v1324 = vpop.f32.mrf.mxu0
    %v1325 = vadd.f32 0.0, %v1324
    %v1326 = vpop.f32.mrf.mxu0
    %1327 = vmatprep.mubr.f32.mxu0 %v1109
    %1328 = vmatmul.mubr.f32.gmra.mxu0 %v1064
    %v1329 = vpop.f32.mrf.mxu0
    %v1330 = vadd.f32 0.0, %v1329
    %v1331 = vpop.f32.mrf.mxu0
    %1332 = vmatprep.mubr.f32.mxu0 %v1112
    %1333 = vmatmul.mubr.f32.gmra.mxu0 %v1066
    %v1334 = vpop.f32.mrf.mxu0
    %v1335 = vadd.f32 0.0, %v1334
    %v1336 = vpop.f32.mrf.mxu0
    %1337 = vdwg.mxu0
    %v1338 = vmax.f32 %v1181, %v1305
    %v1339 = vmax.f32 %v1186, %v1310
    %v1340 = vmax.f32 %v1191, %v1315
    %v1341 = vmax.f32 %v1196, %v1320
    %v1342 = vmax.f32 %v1201, %v1325
    %v1343 = vmax.f32 %v1206, %v1330
    %v1344 = vmax.f32 %v1211, %v1335
    %1346 = vset.pattern.permute.xlu0 0
    %1347 = vperm.xlu0 %1346, %v280
    %v1348 = vpop.permute.xlu0 %1347
    %1351 = vset.pattern.permute.xlu0 0
    %1352 = vperm.xlu0 %1351, %v281
    %v1353 = vpop.permute.xlu0 %1352
    %1356 = vset.pattern.permute.xlu0 0
    %1357 = vperm.xlu0 %1356, %v282
    %v1358 = vpop.permute.xlu0 %1357
    %1361 = vset.pattern.permute.xlu0 0
    %1362 = vperm.xlu0 %1361, %v283
    %v1363 = vpop.permute.xlu0 %1362
    %1366 = vset.pattern.permute.xlu0 0
    %1367 = vperm.xlu0 %1366, %v284
    %v1368 = vpop.permute.xlu0 %1367
    %1371 = vset.pattern.permute.xlu0 0
    %1372 = vperm.xlu0 %1371, %v285
    %v1373 = vpop.permute.xlu0 %1372
    %1376 = vset.pattern.permute.xlu0 0
    %1377 = vperm.xlu0 %1376, %v286
    %v1378 = vpop.permute.xlu0 %1377
    %v1380 = vmul.f32 %v1338, %v1348
    %v1381 = vmul.f32 %v1339, %v1353
    %v1382 = vmul.f32 %v1340, %v1358
    %v1383 = vmul.f32 %v1341, %v1363
    %v1384 = vmul.f32 %v1342, %v1368
    %v1385 = vmul.f32 %v1343, %v1373
    %v1386 = vmul.f32 %v1344, %v1378
    %vm1387 = vcmask 785408
    %v1388 = vsel %vm1387, %v1380, 0.0
    %v1389 = vsel %vm1387, %v1381, 0.0
    %v1390 = vadd.f32 %v1388, %v1389
    %v1391 = vsel %vm1387, %v1382, 0.0
    %v1392 = vadd.f32 %v1390, %v1391
    %v1393 = vsel %vm1387, %v1383, 0.0
    %v1394 = vadd.f32 %v1392, %v1393
    %v1395 = vsel %vm1387, %v1384, 0.0
    %v1396 = vadd.f32 %v1394, %v1395
    %v1397 = vsel %vm1387, %v1385, 0.0
    %v1398 = vadd.f32 %v1396, %v1397
    %v1399 = vsel %vm1387, %v1386, 0.0
    %v1400 = vadd.f32 %v1398, %v1399
    %v1401 = vrot.slane %v1400, 4
    %v1402 = vadd.f32 %v1400, %v1401
    %v1403 = vrot.slane %v1402, 2
    %v1404 = vadd.f32 %v1402, %v1403
    %v1405 = vrot.slane %v1404, 1
    %v1406 = vadd.f32 %v1404, %v1405
    %v1407 = vld [vmem:[#allocation10] sm:$0xff]
    %v1408 = vld [vmem:[#allocation10 + $0x8] sm:$0xff]
    %v1409 = vld [vmem:[#allocation10 + $0x10] sm:$0xff]
    %v1410 = vld [vmem:[#allocation10 + $0x18] sm:$0xff]
    %v1411 = vld [vmem:[#allocation10 + $0x20] sm:$0xff]
    %v1412 = vld [vmem:[#allocation10 + $0x28] sm:$0xff]
    %v1413 = vld [vmem:[#allocation10 + $0x30] sm:$0xff]
    %v1414 = vld [vmem:[#allocation10 + $0x38] sm:$0xff]
    %v1415 = vld [vmem:[#allocation10 + $0x40] sm:$0xff]
    %v1416 = vld [vmem:[#allocation10 + $0x48] sm:$0xff]
    %v1417 = vld [vmem:[#allocation10 + $0x50] sm:$0xff]
    %v1418 = vld [vmem:[#allocation10 + $0x58] sm:$0xff]
    %v1420 = vsel %vm1387, %v1406, 0
    %1422 = vmatprep.subr.mxu0 0.0
    %1423 = vmatpush1.msra.mxu0 0.0
    %1424 = vmatprep.subr.mxu0 0.0
    %1425 = vmatpush1.msra.mxu0 0.0
    %1426 = vmatprep.subr.mxu0 0.0
    %1427 = vmatpush1.msra.mxu0 0.0
    %1428 = vmatprep.subr.mxu0 0.0
    %1429 = vmatpush1.msra.mxu0 0.0
    %1430 = vmatprep.subr.mxu0 0.0
    %1431 = vmatpush1.msra.mxu0 %v1418
    %1432 = vmatprep.subr.mxu0 0.0
    %1433 = vmatpush1.msra.mxu0 %v1417
    %1434 = vmatprep.subr.mxu0 0.0
    %1435 = vmatpush1.msra.mxu0 %v1416
    %1436 = vmatprep.subr.mxu0 0.0
    %1437 = vmatpush1.msra.mxu0 %v1415
    %1438 = vmatprep.subr.mxu0 0.0
    %1439 = vmatpush1.msra.mxu0 %v1414
    %1440 = vmatprep.subr.mxu0 0.0
    %1441 = vmatpush1.msra.mxu0 %v1413
    %1442 = vmatprep.subr.mxu0 0.0
    %1443 = vmatpush1.msra.mxu0 %v1412
    %1444 = vmatprep.subr.mxu0 0.0
    %1445 = vmatpush1.msra.mxu0 %v1411
    %1446 = vmatprep.subr.mxu0 0.0
    %1447 = vmatpush1.msra.mxu0 %v1410
    %1448 = vmatprep.subr.mxu0 0.0
    %1449 = vmatpush1.msra.mxu0 %v1409
    %1450 = vmatprep.subr.mxu0 0.0
    %1451 = vmatpush1.msra.mxu0 %v1408
    %1452 = vmatprep.subr.mxu0 0.0
    %1453 = vmatpush1.msra.mxu0 %v1407
    %1454 = vmatprep.subr.mxu0 0.0
    %1455 = vmatpush2.msra.mxu0 0.0
    %1456 = vmatprep.subr.mxu0 0.0
    %1457 = vmatpush2.msra.mxu0 0.0
    %1458 = vmatprep.subr.mxu0 0.0
    %1459 = vmatpush2.msra.mxu0 0.0
    %1460 = vmatprep.subr.mxu0 0.0
    %1461 = vmatpush2.msra.mxu0 0.0
    %1462 = vmatprep.subr.mxu0 0.0
    %1463 = vmatpush2.msra.mxu0 0.0
    %1464 = vmatprep.subr.mxu0 0.0
    %1465 = vmatpush2.msra.mxu0 0.0
    %1466 = vmatprep.subr.mxu0 0.0
    %1467 = vmatpush2.msra.mxu0 0.0
    %1468 = vmatprep.subr.mxu0 0.0
    %1469 = vmatpush2.msra.mxu0 0.0
    %1470 = vmatprep.subr.mxu0 0.0
    %1471 = vmatpush2.msra.mxu0 0.0
    %1472 = vmatprep.subr.mxu0 0.0
    %1473 = vmatpush2.msra.mxu0 0.0
    %1474 = vmatprep.subr.mxu0 0.0
    %1475 = vmatpush2.msra.mxu0 0.0
    %1476 = vmatprep.subr.mxu0 0.0
    %1477 = vmatpush2.msra.mxu0 0.0
    %1478 = vmatprep.subr.mxu0 0.0
    %1479 = vmatpush2.msra.mxu0 0.0
    %1480 = vmatprep.subr.mxu0 0.0
    %1481 = vmatpush2.msra.mxu0 0.0
    %1482 = vmatprep.subr.mxu0 0.0
    %1483 = vmatpush2.msra.mxu0 0.0
    %1484 = vmatprep.subr.mxu0 0.0
    %1485 = vmatpush2.msra.mxu0 0.0
    %1486 = vmatprep.mubr.f32.mxu0 0.0
    %1487 = vmatmul.mubr.f32.gmra.mxu0 %v1420
    %v1488 = vpop.f32.mrf.mxu0
    %v1489 = vadd.f32 0.0, %v1488
    %v1490 = vpop.f32.mrf.mxu0
    %1491 = vdwg.mxu0
    %v1492 = vmul.f32 %v1380, %v1338
    %v1493 = vmul.f32 %v1381, %v1339
    %v1494 = vmul.f32 %v1382, %v1340
    %v1495 = vmul.f32 %v1383, %v1341
    %v1496 = vmul.f32 %v1384, %v1342
    %v1497 = vmul.f32 %v1385, %v1343
    %v1498 = vmul.f32 %v1386, %v1344
    %v1499 = vsel %vm1387, %v1492, 0.0
    %v1500 = vsel %vm1387, %v1493, 0.0
    %v1501 = vadd.f32 %v1499, %v1500
    %v1502 = vsel %vm1387, %v1494, 0.0
    %v1503 = vadd.f32 %v1501, %v1502
    %v1504 = vsel %vm1387, %v1495, 0.0
    %v1505 = vadd.f32 %v1503, %v1504
    %v1506 = vsel %vm1387, %v1496, 0.0
    %v1507 = vadd.f32 %v1505, %v1506
    %v1508 = vsel %vm1387, %v1497, 0.0
    %v1509 = vadd.f32 %v1507, %v1508
    %v1510 = vsel %vm1387, %v1498, 0.0
    %v1511 = vadd.f32 %v1509, %v1510
    %v1512 = vrot.slane %v1511, 4
    %v1513 = vadd.f32 %v1511, %v1512
    %v1514 = vrot.slane %v1513, 2
    %v1515 = vadd.f32 %v1513, %v1514
    %v1516 = vrot.slane %v1515, 1
    %v1517 = vadd.f32 %v1515, %v1516
    %v1519 = vsel %vm1387, %v1517, 0
    %1521 = vmatprep.subr.mxu0 0.0
    %1522 = vmatpush1.msra.mxu0 0.0
    %1523 = vmatprep.subr.mxu0 0.0
    %1524 = vmatpush1.msra.mxu0 0.0
    %1525 = vmatprep.subr.mxu0 0.0
    %1526 = vmatpush1.msra.mxu0 0.0
    %1527 = vmatprep.subr.mxu0 0.0
    %1528 = vmatpush1.msra.mxu0 0.0
    %1529 = vmatprep.subr.mxu0 0.0
    %1530 = vmatpush1.msra.mxu0 %v1418
    %1531 = vmatprep.subr.mxu0 0.0
    %1532 = vmatpush1.msra.mxu0 %v1417
    %1533 = vmatprep.subr.mxu0 0.0
    %1534 = vmatpush1.msra.mxu0 %v1416
    %1535 = vmatprep.subr.mxu0 0.0
    %1536 = vmatpush1.msra.mxu0 %v1415
    %1537 = vmatprep.subr.mxu0 0.0
    %1538 = vmatpush1.msra.mxu0 %v1414
    %1539 = vmatprep.subr.mxu0 0.0
    %1540 = vmatpush1.msra.mxu0 %v1413
    %1541 = vmatprep.subr.mxu0 0.0
    %1542 = vmatpush1.msra.mxu0 %v1412
    %1543 = vmatprep.subr.mxu0 0.0
    %1544 = vmatpush1.msra.mxu0 %v1411
    %1545 = vmatprep.subr.mxu0 0.0
    %1546 = vmatpush1.msra.mxu0 %v1410
    %1547 = vmatprep.subr.mxu0 0.0
    %1548 = vmatpush1.msra.mxu0 %v1409
    %1549 = vmatprep.subr.mxu0 0.0
    %1550 = vmatpush1.msra.mxu0 %v1408
    %1551 = vmatprep.subr.mxu0 0.0
    %1552 = vmatpush1.msra.mxu0 %v1407
    %1553 = vmatprep.subr.mxu0 0.0
    %1554 = vmatpush2.msra.mxu0 0.0
    %1555 = vmatprep.subr.mxu0 0.0
    %1556 = vmatpush2.msra.mxu0 0.0
    %1557 = vmatprep.subr.mxu0 0.0
    %1558 = vmatpush2.msra.mxu0 0.0
    %1559 = vmatprep.subr.mxu0 0.0
    %1560 = vmatpush2.msra.mxu0 0.0
    %1561 = vmatprep.subr.mxu0 0.0
    %1562 = vmatpush2.msra.mxu0 0.0
    %1563 = vmatprep.subr.mxu0 0.0
    %1564 = vmatpush2.msra.mxu0 0.0
    %1565 = vmatprep.subr.mxu0 0.0
    %1566 = vmatpush2.msra.mxu0 0.0
    %1567 = vmatprep.subr.mxu0 0.0
    %1568 = vmatpush2.msra.mxu0 0.0
    %1569 = vmatprep.subr.mxu0 0.0
    %1570 = vmatpush2.msra.mxu0 0.0
    %1571 = vmatprep.subr.mxu0 0.0
    %1572 = vmatpush2.msra.mxu0 0.0
    %1573 = vmatprep.subr.mxu0 0.0
    %1574 = vmatpush2.msra.mxu0 0.0
    %1575 = vmatprep.subr.mxu0 0.0
    %1576 = vmatpush2.msra.mxu0 0.0
    %1577 = vmatprep.subr.mxu0 0.0
    %1578 = vmatpush2.msra.mxu0 0.0
    %1579 = vmatprep.subr.mxu0 0.0
    %1580 = vmatpush2.msra.mxu0 0.0
    %1581 = vmatprep.subr.mxu0 0.0
    %1582 = vmatpush2.msra.mxu0 0.0
    %1583 = vmatprep.subr.mxu0 0.0
    %1584 = vmatpush2.msra.mxu0 0.0
    %1585 = vmatprep.mubr.f32.mxu0 0.0
    %1586 = vmatmul.mubr.f32.gmra.mxu0 %v1519
    %v1587 = vpop.f32.mrf.mxu0
    %v1588 = vadd.f32 0.0, %v1587
    %v1589 = vpop.f32.mrf.mxu0
    %1590 = vdwg.mxu0
    %v1591 = vmul.f32 %v1489, 0.0034722222
    %v1592 = vmul.f32 %v1588, 0.0034722222
    %v1593 = vmul.f32 %v1591, %v1591
    %v1594 = vsub.f32 %v1592, %v1593
    %v1595 = vld [vmem:[#allocation13] sm:$0x1]
    %v1596 = vadd.f32 %v1594, 1e-05
    %v1597 = vrsqrt.pop %v1596
    %v1598 = vmul.f32 %v1595, %v1597
    %v1599 = vld [vmem:[#allocation14] sm:$0x1]
    %v1600 = vmul.f32 %v1591, %v1598
    %v1601 = vsub.f32 %v1599, %v1600
    %v1603 = vlaneseq
    %v1604 = vshrl.u32 %v1603, 7
    %v1605 = vsub.s32 0, %v1604
    %v1606 = vrot.slane %v1598, %v1605
    %v1608 = vmul.f32 %v1338, %v1606
    %v1609 = vmul.f32 %v1339, %v1606
    %v1610 = vmul.f32 %v1340, %v1606
    %v1611 = vmul.f32 %v1341, %v1606
    %v1612 = vmul.f32 %v1342, %v1606
    %v1613 = vmul.f32 %v1343, %v1606
    %v1614 = vmul.f32 %v1344, %v1606
    %v1616 = vlaneseq
    %v1617 = vshrl.u32 %v1616, 7
    %v1618 = vsub.s32 0, %v1617
    %v1619 = vrot.slane %v1601, %v1618
    %v1621 = vadd.f32 %v1608, %v1619
    %v1622 = vadd.f32 %v1609, %v1619
    %v1623 = vadd.f32 %v1610, %v1619
    %v1624 = vadd.f32 %v1611, %v1619
    %v1625 = vadd.f32 %v1612, %v1619
    %v1626 = vadd.f32 %v1613, %v1619
    %v1627 = vadd.f32 %v1614, %v1619
    %v1628 = vadd.f32 %v1621, 0.0
    %v1629 = vadd.f32 %v1622, 0.0
    %v1630 = vadd.f32 %v1623, 0.0
    %v1631 = vadd.f32 %v1624, 0.0
    %v1632 = vadd.f32 %v1625, 0.0
    %v1633 = vadd.f32 %v1626, 0.0
    %v1634 = vadd.f32 %v1627, 0.0
    %v1635 = vmax.f32 %v1628, -2.0
    %v1636 = vmax.f32 %v1629, -2.0
    %v1637 = vmax.f32 %v1630, -2.0
    %v1638 = vmax.f32 %v1631, -2.0
    %v1639 = vmax.f32 %v1632, -2.0
    %v1640 = vmax.f32 %v1633, -2.0
    %v1641 = vmax.f32 %v1634, -2.0
    %v1642 = vmin.f32 %v1635, 2.0
    %v1643 = vmin.f32 %v1636, 2.0
    %v1644 = vmin.f32 %v1637, 2.0
    %v1645 = vmin.f32 %v1638, 2.0
    %v1646 = vmin.f32 %v1639, 2.0
    %v1647 = vmin.f32 %v1640, 2.0
    %v1648 = vmin.f32 %v1641, 2.0
    %v1649 = vmul.f32 %v1642, %v1642
    %v1650 = vmul.f32 %v1643, %v1643
    %v1651 = vmul.f32 %v1644, %v1644
    %v1652 = vmul.f32 %v1645, %v1645
    %v1653 = vmul.f32 %v1646, %v1646
    %v1654 = vmul.f32 %v1647, %v1647
    %v1655 = vmul.f32 %v1648, %v1648
    %v1656 = vadd.f32 %v1649, %v1621
    %v1657 = vadd.f32 %v1650, %v1622
    %v1658 = vadd.f32 %v1651, %v1623
    %v1659 = vadd.f32 %v1652, %v1624
    %v1660 = vadd.f32 %v1653, %v1625
    %v1661 = vadd.f32 %v1654, %v1626
    %v1662 = vadd.f32 %v1655, %v1627
    %v1663 = vmax.f32 %v1656, -2.0
    %v1664 = vmax.f32 %v1657, -2.0
    %v1665 = vmax.f32 %v1658, -2.0
    %v1666 = vmax.f32 %v1659, -2.0
    %v1667 = vmax.f32 %v1660, -2.0
    %v1668 = vmax.f32 %v1661, -2.0
    %v1669 = vmax.f32 %v1662, -2.0
    %v1670 = vmin.f32 %v1663, 2.0
    %v1671 = vmin.f32 %v1664, 2.0
    %v1672 = vmin.f32 %v1665, 2.0
    %v1673 = vmin.f32 %v1666, 2.0
    %v1674 = vmin.f32 %v1667, 2.0
    %v1675 = vmin.f32 %v1668, 2.0
    %v1676 = vmin.f32 %v1669, 2.0
    %v1677 = vmul.f32 %v1670, %v1670
    %v1678 = vmul.f32 %v1671, %v1671
    %v1679 = vmul.f32 %v1672, %v1672
    %v1680 = vmul.f32 %v1673, %v1673
    %v1681 = vmul.f32 %v1674, %v1674
    %v1682 = vmul.f32 %v1675, %v1675
    %v1683 = vmul.f32 %v1676, %v1676
    %v1684 = vadd.f32 %v1677, %v1621
    %v1685 = vadd.f32 %v1678, %v1622
    %v1686 = vadd.f32 %v1679, %v1623
    %v1687 = vadd.f32 %v1680, %v1624
    %v1688 = vadd.f32 %v1681, %v1625
    %v1689 = vadd.f32 %v1682, %v1626
    %v1690 = vadd.f32 %v1683, %v1627
    %v1691 = vmax.f32 %v1684, -2.0
    %v1692 = vmax.f32 %v1685, -2.0
    %v1693 = vmax.f32 %v1686, -2.0
    %v1694 = vmax.f32 %v1687, -2.0
    %v1695 = vmax.f32 %v1688, -2.0
    %v1696 = vmax.f32 %v1689, -2.0
    %v1697 = vmax.f32 %v1690, -2.0
    %v1698 = vmin.f32 %v1691, 2.0
    %v1699 = vmin.f32 %v1692, 2.0
    %v1700 = vmin.f32 %v1693, 2.0
    %v1701 = vmin.f32 %v1694, 2.0
    %v1702 = vmin.f32 %v1695, 2.0
    %v1703 = vmin.f32 %v1696, 2.0
    %v1704 = vmin.f32 %v1697, 2.0
    %v1705 = vmul.f32 %v1698, %v1348
    %v1706 = vmul.f32 %v1699, %v1353
    %v1707 = vmul.f32 %v1700, %v1358
    %v1708 = vmul.f32 %v1701, %v1363
    %v1709 = vmul.f32 %v1702, %v1368
    %v1710 = vmul.f32 %v1703, %v1373
    %v1711 = vmul.f32 %v1704, %v1378
    %v1712 = vld [vmem:[%s4] sm:$0x1]
    %v1713 = vrot.slane %v1705, 6
    %v1714 = vrot.slane %v1706, 6
    %v1715 = vrot.slane %v1707, 6
    %v1716 = vrot.slane %v1708, 6
    %v1717 = vrot.slane %v1709, 6
    %v1718 = vrot.slane %v1710, 6
    %v1719 = vrot.slane %v1711, 6
    %vm1720 = vcmp.lt.s32.totalorder %v452, 2
    %v1721 = vsel %vm1720, %v1718, %v1719
    %v1722 = vsel %vm1720, %v1717, %v1718
    %v1723 = vsel %vm1720, %v1716, %v1717
    %v1724 = vsel %vm1720, %v1715, %v1716
    %v1725 = vsel %vm1720, %v1714, %v1715
    %v1726 = vsel %vm1720, %v1713, %v1714
    %v1727 = vsel %vm1720, %v1719, %v1713
    %v1728 = vld [vmem:[#allocation7] sm:$0xf]
    %v1729 = vld [vmem:[#allocation7 + $0x4] sm:$0xf]
    %v1730 = vld [vmem:[#allocation7 + $0x8] sm:$0xf]
    %v1731 = vld [vmem:[#allocation7 + $0xc] sm:$0xf]
    %v1732 = vld [vmem:[#allocation7 + $0x10] sm:$0xf]
    %v1733 = vld [vmem:[#allocation7 + $0x14] sm:$0xf]
    %v1734 = vld [vmem:[#allocation7 + $0x18] sm:$0xf]
    %v1735 = vld [vmem:[#allocation7 + $0x1c] sm:$0xf]
    %v1736 = vld [vmem:[#allocation7 + $0x20] sm:$0xf]
    %v1737 = vld [vmem:[#allocation7 + $0x24] sm:$0xf]
    %v1738 = vld [vmem:[#allocation7 + $0x28] sm:$0xf]
    %v1739 = vld [vmem:[#allocation7 + $0x2c] sm:$0xf]
    %v1740 = vpack.c.bf16 %v1726, %v1727
    %v1741 = vpack.c.bf16 %v1724, %v1725
    %v1742 = vpack.c.bf16 %v1722, %v1723
    %v1743 = vpack.c.bf16 %v1721, %v1721
    %v1756 = vunpack.c.l.b16 %v1728
    %v1757 = vunpack.c.l.b16 %v1729
    %v1758 = vunpack.c.l.b16 %v1730
    %v1759 = vunpack.c.l.b16 %v1731
    %v1760 = vunpack.c.l.b16 %v1732
    %v1761 = vunpack.c.l.b16 %v1733
    %v1762 = vunpack.c.l.b16 %v1734
    %v1763 = vunpack.c.l.b16 %v1735
    %v1764 = vunpack.c.l.b16 %v1736
    %v1765 = vunpack.c.l.b16 %v1737
    %v1766 = vunpack.c.l.b16 %v1738
    %v1767 = vunpack.c.l.b16 %v1739
    %v1768 = vpack.c.b16 %v1757, %v1756
    %v1769 = vpack.c.b16 %v1759, %v1758
    %v1770 = vpack.c.b16 %v1761, %v1760
    %v1771 = vpack.c.b16 %v1763, %v1762
    %v1772 = vpack.c.b16 %v1765, %v1764
    %v1773 = vpack.c.b16 %v1767, %v1766
    %v1781 = vsel %vm1387, %v1740, 0
    %v1784 = vsel %vm1387, %v1741, 0
    %v1787 = vsel %vm1387, %v1742, 0
    %v1790 = vsel %vm1387, %v1743, 0
    %1792 = vmatprep.subr.bf16.mxu0 0
    %1793 = vmatpush1.bf16.msra.mxu0 0
    %1794 = vmatprep.subr.bf16.mxu0 0
    %1795 = vmatpush1.bf16.msra.mxu0 0
    %1796 = vmatprep.subr.bf16.mxu0 0
    %1797 = vmatpush1.bf16.msra.mxu0 %v1773
    %1798 = vmatprep.subr.bf16.mxu0 0
    %1799 = vmatpush1.bf16.msra.mxu0 %v1772
    %1800 = vmatprep.subr.bf16.mxu0 0
    %1801 = vmatpush1.bf16.msra.mxu0 %v1771
    %1802 = vmatprep.subr.bf16.mxu0 0
    %1803 = vmatpush1.bf16.msra.mxu0 %v1770
    %1804 = vmatprep.subr.bf16.mxu0 0
    %1805 = vmatpush1.bf16.msra.mxu0 %v1769
    %1806 = vmatprep.subr.bf16.mxu0 0
    %1807 = vmatpush1.bf16.msra.mxu0 %v1768
    %1808 = vmatprep.subr.bf16.mxu0 0
    %1809 = vmatpush2.bf16.msra.mxu0 0
    %1810 = vmatprep.subr.bf16.mxu0 0
    %1811 = vmatpush2.bf16.msra.mxu0 0
    %1812 = vmatprep.subr.bf16.mxu0 0
    %1813 = vmatpush2.bf16.msra.mxu0 0
    %1814 = vmatprep.subr.bf16.mxu0 0
    %1815 = vmatpush2.bf16.msra.mxu0 0
    %1816 = vmatprep.subr.bf16.mxu0 0
    %1817 = vmatpush2.bf16.msra.mxu0 0
    %1818 = vmatprep.subr.bf16.mxu0 0
    %1819 = vmatpush2.bf16.msra.mxu0 0
    %1820 = vmatprep.subr.bf16.mxu0 0
    %1821 = vmatpush2.bf16.msra.mxu0 0
    %1822 = vmatprep.subr.bf16.mxu0 0
    %1823 = vmatpush2.bf16.msra.mxu0 0
    %1824 = vmatprep.mubr.bf16.mxu0 0
    %1825 = vmatmul.mubr.bf16.gmra.mxu0 %v1781
    %v1826 = vpop.f32.mrf.mxu0
    %v1827 = vadd.f32 0.0, %v1826
    %v1828 = vpop.f32.mrf.mxu0
    %v1829 = vpop.f32.mrf.mxu0
    %v1830 = vadd.f32 0.0, %v1829
    %v1831 = vpop.f32.mrf.mxu0
    %1832 = vmatprep.mubr.bf16.mxu0 0
    %1833 = vmatmul.mubr.bf16.gmra.mxu0 %v1784
    %v1834 = vpop.f32.mrf.mxu0
    %v1835 = vadd.f32 0.0, %v1834
    %v1836 = vpop.f32.mrf.mxu0
    %v1837 = vpop.f32.mrf.mxu0
    %v1838 = vadd.f32 0.0, %v1837
    %v1839 = vpop.f32.mrf.mxu0
    %1840 = vmatprep.mubr.bf16.mxu0 0
    %1841 = vmatmul.mubr.bf16.gmra.mxu0 %v1787
    %v1842 = vpop.f32.mrf.mxu0
    %v1843 = vadd.f32 0.0, %v1842
    %v1844 = vpop.f32.mrf.mxu0
    %v1845 = vpop.f32.mrf.mxu0
    %v1846 = vadd.f32 0.0, %v1845
    %v1847 = vpop.f32.mrf.mxu0
    %1848 = vmatprep.mubr.bf16.mxu0 0
    %1849 = vmatmul.mubr.bf16.gmra.mxu0 %v1790
    %v1850 = vpop.f32.mrf.mxu0
    %v1851 = vadd.f32 0.0, %v1850
    %v1852 = vpop.f32.mrf.mxu0
    %v1853 = vpop.f32.mrf.mxu0
    %v1854 = vpop.f32.mrf.mxu0
    %1855 = vdwg.mxu0
    %v1857 = vlaneseq
    %v1858 = vshrl.u32 %v1857, 7
    %v1859 = vsub.s32 0, %v1858
    %v1860 = vrot.slane %v1712, %v1859
    %v1862 = vadd.f32 %v1860, %v1827
    %v1863 = vadd.f32 %v1860, %v1830
    %v1864 = vadd.f32 %v1860, %v1835
    %v1865 = vadd.f32 %v1860, %v1838
    %v1866 = vadd.f32 %v1860, %v1843
    %v1867 = vadd.f32 %v1860, %v1846
    %v1868 = vadd.f32 %v1860, %v1851
    %s1869 = scalar_lea.vmem [#allocation7], 48
    %v1870 = vld [vmem:[%s1869] sm:$0xf]
    %v1871 = vld [vmem:[%s1869 + $0x4] sm:$0xf]
    %v1872 = vld [vmem:[%s1869 + $0x8] sm:$0xf]
    %v1873 = vld [vmem:[%s1869 + $0xc] sm:$0xf]
    %v1874 = vld [vmem:[%s1869 + $0x10] sm:$0xf]
    %v1875 = vld [vmem:[%s1869 + $0x14] sm:$0xf]
    %v1876 = vld [vmem:[%s1869 + $0x18] sm:$0xf]
    %v1877 = vld [vmem:[%s1869 + $0x1c] sm:$0xf]
    %v1878 = vld [vmem:[%s1869 + $0x20] sm:$0xf]
    %v1879 = vld [vmem:[%s1869 + $0x24] sm:$0xf]
    %v1880 = vld [vmem:[%s1869 + $0x28] sm:$0xf]
    %v1881 = vld [vmem:[%s1869 + $0x2c] sm:$0xf]
    %v1882 = vpack.c.bf16 %v1706, %v1705
    %v1883 = vpack.c.bf16 %v1708, %v1707
    %v1884 = vpack.c.bf16 %v1710, %v1709
    %v1885 = vpack.c.bf16 %v1711, %v1711
    %v1898 = vunpack.c.l.b16 %v1870
    %v1899 = vunpack.c.l.b16 %v1871
    %v1900 = vunpack.c.l.b16 %v1872
    %v1901 = vunpack.c.l.b16 %v1873
    %v1902 = vunpack.c.l.b16 %v1874
    %v1903 = vunpack.c.l.b16 %v1875
    %v1904 = vunpack.c.l.b16 %v1876
    %v1905 = vunpack.c.l.b16 %v1877
    %v1906 = vunpack.c.l.b16 %v1878
    %v1907 = vunpack.c.l.b16 %v1879
    %v1908 = vunpack.c.l.b16 %v1880
    %v1909 = vunpack.c.l.b16 %v1881
    %v1910 = vpack.c.b16 %v1899, %v1898
    %v1911 = vpack.c.b16 %v1901, %v1900
    %v1912 = vpack.c.b16 %v1903, %v1902
    %v1913 = vpack.c.b16 %v1905, %v1904
    %v1914 = vpack.c.b16 %v1907, %v1906
    %v1915 = vpack.c.b16 %v1909, %v1908
    %v1923 = vsel %vm1387, %v1882, 0
    %v1926 = vsel %vm1387, %v1883, 0
    %v1929 = vsel %vm1387, %v1884, 0
    %v1932 = vsel %vm1387, %v1885, 0
    %1934 = vmatprep.subr.bf16.mxu0 0
    %1935 = vmatpush1.bf16.msra.mxu0 0
    %1936 = vmatprep.subr.bf16.mxu0 0
    %1937 = vmatpush1.bf16.msra.mxu0 0
    %1938 = vmatprep.subr.bf16.mxu0 0
    %1939 = vmatpush1.bf16.msra.mxu0 %v1915
    %1940 = vmatprep.subr.bf16.mxu0 0
    %1941 = vmatpush1.bf16.msra.mxu0 %v1914
    %1942 = vmatprep.subr.bf16.mxu0 0
    %1943 = vmatpush1.bf16.msra.mxu0 %v1913
    %1944 = vmatprep.subr.bf16.mxu0 0
    %1945 = vmatpush1.bf16.msra.mxu0 %v1912
    %1946 = vmatprep.subr.bf16.mxu0 0
    %1947 = vmatpush1.bf16.msra.mxu0 %v1911
    %1948 = vmatprep.subr.bf16.mxu0 0
    %1949 = vmatpush1.bf16.msra.mxu0 %v1910
    %1950 = vmatprep.subr.bf16.mxu0 0
    %1951 = vmatpush2.bf16.msra.mxu0 0
    %1952 = vmatprep.subr.bf16.mxu0 0
    %1953 = vmatpush2.bf16.msra.mxu0 0
    %1954 = vmatprep.subr.bf16.mxu0 0
    %1955 = vmatpush2.bf16.msra.mxu0 0
    %1956 = vmatprep.subr.bf16.mxu0 0
    %1957 = vmatpush2.bf16.msra.mxu0 0
    %1958 = vmatprep.subr.bf16.mxu0 0
    %1959 = vmatpush2.bf16.msra.mxu0 0
    %1960 = vmatprep.subr.bf16.mxu0 0
    %1961 = vmatpush2.bf16.msra.mxu0 0
    %1962 = vmatprep.subr.bf16.mxu0 0
    %1963 = vmatpush2.bf16.msra.mxu0 0
    %1964 = vmatprep.subr.bf16.mxu0 0
    %1965 = vmatpush2.bf16.msra.mxu0 0
    %1966 = vmatprep.mubr.bf16.mxu0 0
    %1967 = vmatmul.mubr.bf16.gmra.mxu0 %v1923
    %v1968 = vpop.f32.mrf.mxu0
    %v1969 = vadd.f32 0.0, %v1968
    %v1970 = vpop.f32.mrf.mxu0
    %v1971 = vpop.f32.mrf.mxu0
    %v1972 = vadd.f32 0.0, %v1971
    %v1973 = vpop.f32.mrf.mxu0
    %1974 = vmatprep.mubr.bf16.mxu0 0
    %1975 = vmatmul.mubr.bf16.gmra.mxu0 %v1926
    %v1976 = vpop.f32.mrf.mxu0
    %v1977 = vadd.f32 0.0, %v1976
    %v1978 = vpop.f32.mrf.mxu0
    %v1979 = vpop.f32.mrf.mxu0
    %v1980 = vadd.f32 0.0, %v1979
    %v1981 = vpop.f32.mrf.mxu0
    %1982 = vmatprep.mubr.bf16.mxu0 0
    %1983 = vmatmul.mubr.bf16.gmra.mxu0 %v1929
    %v1984 = vpop.f32.mrf.mxu0
    %v1985 = vadd.f32 0.0, %v1984
    %v1986 = vpop.f32.mrf.mxu0
    %v1987 = vpop.f32.mrf.mxu0
    %v1988 = vadd.f32 0.0, %v1987
    %v1989 = vpop.f32.mrf.mxu0
    %1990 = vmatprep.mubr.bf16.mxu0 0
    %1991 = vmatmul.mubr.bf16.gmra.mxu0 %v1932
    %v1992 = vpop.f32.mrf.mxu0
    %v1993 = vadd.f32 0.0, %v1992
    %v1994 = vpop.f32.mrf.mxu0
    %v1995 = vpop.f32.mrf.mxu0
    %v1996 = vpop.f32.mrf.mxu0
    %1997 = vdwg.mxu0
    %v1998 = vadd.f32 %v1862, %v1969
    %v1999 = vadd.f32 %v1863, %v1972
    %v2000 = vadd.f32 %v1864, %v1977
    %v2001 = vadd.f32 %v1865, %v1980
    %v2002 = vadd.f32 %v1866, %v1985
    %v2003 = vadd.f32 %v1867, %v1988
    %v2004 = vadd.f32 %v1868, %v1993
    %v2005 = vrot.slane %v1705, 2
    %v2006 = vrot.slane %v1706, 2
    %v2007 = vrot.slane %v1707, 2
    %v2008 = vrot.slane %v1708, 2
    %v2009 = vrot.slane %v1709, 2
    %v2010 = vrot.slane %v1710, 2
    %v2011 = vrot.slane %v1711, 2
    %v2012 = vsel %vm598, %v2010, %v2011
    %v2013 = vsel %vm598, %v2009, %v2010
    %v2014 = vsel %vm598, %v2008, %v2009
    %v2015 = vsel %vm598, %v2007, %v2008
    %v2016 = vsel %vm598, %v2006, %v2007
    %v2017 = vsel %vm598, %v2005, %v2006
    %v2018 = vsel %vm598, %v2011, %v2005
    %s2019 = scalar_lea.vmem [#allocation7], 96
    %v2020 = vld [vmem:[%s2019] sm:$0xf]
    %v2021 = vld [vmem:[%s2019 + $0x4] sm:$0xf]
    %v2022 = vld [vmem:[%s2019 + $0x8] sm:$0xf]
    %v2023 = vld [vmem:[%s2019 + $0xc] sm:$0xf]
    %v2024 = vld [vmem:[%s2019 + $0x10] sm:$0xf]
    %v2025 = vld [vmem:[%s2019 + $0x14] sm:$0xf]
    %v2026 = vld [vmem:[%s2019 + $0x18] sm:$0xf]
    %v2027 = vld [vmem:[%s2019 + $0x1c] sm:$0xf]
    %v2028 = vld [vmem:[%s2019 + $0x20] sm:$0xf]
    %v2029 = vld [vmem:[%s2019 + $0x24] sm:$0xf]
    %v2030 = vld [vmem:[%s2019 + $0x28] sm:$0xf]
    %v2031 = vld [vmem:[%s2019 + $0x2c] sm:$0xf]
    %v2032 = vpack.c.bf16 %v2016, %v2017
    %v2033 = vpack.c.bf16 %v2014, %v2015
    %v2034 = vpack.c.bf16 %v2012, %v2013
    %v2035 = vpack.c.bf16 %v2018, %v2018
    %v2048 = vunpack.c.l.b16 %v2020
    %v2049 = vunpack.c.l.b16 %v2021
    %v2050 = vunpack.c.l.b16 %v2022
    %v2051 = vunpack.c.l.b16 %v2023
    %v2052 = vunpack.c.l.b16 %v2024
    %v2053 = vunpack.c.l.b16 %v2025
    %v2054 = vunpack.c.l.b16 %v2026
    %v2055 = vunpack.c.l.b16 %v2027
    %v2056 = vunpack.c.l.b16 %v2028
    %v2057 = vunpack.c.l.b16 %v2029
    %v2058 = vunpack.c.l.b16 %v2030
    %v2059 = vunpack.c.l.b16 %v2031
    %v2060 = vpack.c.b16 %v2049, %v2048
    %v2061 = vpack.c.b16 %v2051, %v2050
    %v2062 = vpack.c.b16 %v2053, %v2052
    %v2063 = vpack.c.b16 %v2055, %v2054
    %v2064 = vpack.c.b16 %v2057, %v2056
    %v2065 = vpack.c.b16 %v2059, %v2058
    %v2073 = vsel %vm1387, %v2032, 0
    %v2076 = vsel %vm1387, %v2033, 0
    %v2079 = vsel %vm1387, %v2034, 0
    %v2082 = vsel %vm1387, %v2035, 0
    %2084 = vmatprep.subr.bf16.mxu0 0
    %2085 = vmatpush1.bf16.msra.mxu0 0
    %2086 = vmatprep.subr.bf16.mxu0 0
    %2087 = vmatpush1.bf16.msra.mxu0 0
    %2088 = vmatprep.subr.bf16.mxu0 0
    %2089 = vmatpush1.bf16.msra.mxu0 %v2065
    %2090 = vmatprep.subr.bf16.mxu0 0
    %2091 = vmatpush1.bf16.msra.mxu0 %v2064
    %2092 = vmatprep.subr.bf16.mxu0 0
    %2093 = vmatpush1.bf16.msra.mxu0 %v2063
    %2094 = vmatprep.subr.bf16.mxu0 0
    %2095 = vmatpush1.bf16.msra.mxu0 %v2062
    %2096 = vmatprep.subr.bf16.mxu0 0
    %2097 = vmatpush1.bf16.msra.mxu0 %v2061
    %2098 = vmatprep.subr.bf16.mxu0 0
    %2099 = vmatpush1.bf16.msra.mxu0 %v2060
    %2100 = vmatprep.subr.bf16.mxu0 0
    %2101 = vmatpush2.bf16.msra.mxu0 0
    %2102 = vmatprep.subr.bf16.mxu0 0
    %2103 = vmatpush2.bf16.msra.mxu0 0
    %2104 = vmatprep.subr.bf16.mxu0 0
    %2105 = vmatpush2.bf16.msra.mxu0 0
    %2106 = vmatprep.subr.bf16.mxu0 0
    %2107 = vmatpush2.bf16.msra.mxu0 0
    %2108 = vmatprep.subr.bf16.mxu0 0
    %2109 = vmatpush2.bf16.msra.mxu0 0
    %2110 = vmatprep.subr.bf16.mxu0 0
    %2111 = vmatpush2.bf16.msra.mxu0 0
    %2112 = vmatprep.subr.bf16.mxu0 0
    %2113 = vmatpush2.bf16.msra.mxu0 0
    %2114 = vmatprep.subr.bf16.mxu0 0
    %2115 = vmatpush2.bf16.msra.mxu0 0
    %2116 = vmatprep.mubr.bf16.mxu0 0
    %2117 = vmatmul.mubr.bf16.gmra.mxu0 %v2073
    %v2118 = vpop.f32.mrf.mxu0
    %v2119 = vadd.f32 0.0, %v2118
    %v2120 = vpop.f32.mrf.mxu0
    %v2121 = vpop.f32.mrf.mxu0
    %v2122 = vadd.f32 0.0, %v2121
    %v2123 = vpop.f32.mrf.mxu0
    %2124 = vmatprep.mubr.bf16.mxu0 0
    %2125 = vmatmul.mubr.bf16.gmra.mxu0 %v2076
    %v2126 = vpop.f32.mrf.mxu0
    %v2127 = vadd.f32 0.0, %v2126
    %v2128 = vpop.f32.mrf.mxu0
    %v2129 = vpop.f32.mrf.mxu0
    %v2130 = vadd.f32 0.0, %v2129
    %v2131 = vpop.f32.mrf.mxu0
    %2132 = vmatprep.mubr.bf16.mxu0 0
    %2133 = vmatmul.mubr.bf16.gmra.mxu0 %v2079
    %v2134 = vpop.f32.mrf.mxu0
    %v2135 = vadd.f32 0.0, %v2134
    %v2136 = vpop.f32.mrf.mxu0
    %v2137 = vpop.f32.mrf.mxu0
    %v2138 = vadd.f32 0.0, %v2137
    %v2139 = vpop.f32.mrf.mxu0
    %2140 = vmatprep.mubr.bf16.mxu0 0
    %2141 = vmatmul.mubr.bf16.gmra.mxu0 %v2082
    %v2142 = vpop.f32.mrf.mxu0
    %v2143 = vadd.f32 0.0, %v2142
    %v2144 = vpop.f32.mrf.mxu0
    %v2145 = vpop.f32.mrf.mxu0
    %v2146 = vpop.f32.mrf.mxu0
    %2147 = vdwg.mxu0
    %v2148 = vadd.f32 %v1998, %v2119
    %v2149 = vadd.f32 %v1999, %v2122
    %v2150 = vadd.f32 %v2000, %v2127
    %v2151 = vadd.f32 %v2001, %v2130
    %v2152 = vadd.f32 %v2002, %v2135
    %v2153 = vadd.f32 %v2003, %v2138
    %v2154 = vadd.f32 %v2004, %v2143
    %v2155 = vmul.f32 %v2148, %v1348
    %v2156 = vmul.f32 %v2149, %v1353
    %v2157 = vmul.f32 %v2150, %v1358
    %v2158 = vmul.f32 %v2151, %v1363
    %v2159 = vmul.f32 %v2152, %v1368
    %v2160 = vmul.f32 %v2153, %v1373
    %v2161 = vmul.f32 %v2154, %v1378
    %v2162 = vsel %vm1387, %v2155, 0.0
    %v2163 = vsel %vm1387, %v2156, 0.0
    %v2164 = vadd.f32 %v2162, %v2163
    %v2165 = vsel %vm1387, %v2157, 0.0
    %v2166 = vadd.f32 %v2164, %v2165
    %v2167 = vsel %vm1387, %v2158, 0.0
    %v2168 = vadd.f32 %v2166, %v2167
    %v2169 = vsel %vm1387, %v2159, 0.0
    %v2170 = vadd.f32 %v2168, %v2169
    %v2171 = vsel %vm1387, %v2160, 0.0
    %v2172 = vadd.f32 %v2170, %v2171
    %v2173 = vsel %vm1387, %v2161, 0.0
    %v2174 = vadd.f32 %v2172, %v2173
    %v2175 = vrot.slane %v2174, 4
    %v2176 = vadd.f32 %v2174, %v2175
    %v2177 = vrot.slane %v2176, 2
    %v2178 = vadd.f32 %v2176, %v2177
    %v2179 = vrot.slane %v2178, 1
    %v2180 = vadd.f32 %v2178, %v2179
    %v2182 = vsel %vm1387, %v2180, 0
    %2184 = vmatprep.subr.mxu0 0.0
    %2185 = vmatpush1.msra.mxu0 0.0
    %2186 = vmatprep.subr.mxu0 0.0
    %2187 = vmatpush1.msra.mxu0 0.0
    %2188 = vmatprep.subr.mxu0 0.0
    %2189 = vmatpush1.msra.mxu0 0.0
    %2190 = vmatprep.subr.mxu0 0.0
    %2191 = vmatpush1.msra.mxu0 0.0
    %2192 = vmatprep.subr.mxu0 0.0
    %2193 = vmatpush1.msra.mxu0 %v1418
    %2194 = vmatprep.subr.mxu0 0.0
    %2195 = vmatpush1.msra.mxu0 %v1417
    %2196 = vmatprep.subr.mxu0 0.0
    %2197 = vmatpush1.msra.mxu0 %v1416
    %2198 = vmatprep.subr.mxu0 0.0
    %2199 = vmatpush1.msra.mxu0 %v1415
    %2200 = vmatprep.subr.mxu0 0.0
    %2201 = vmatpush1.msra.mxu0 %v1414
    %2202 = vmatprep.subr.mxu0 0.0
    %2203 = vmatpush1.msra.mxu0 %v1413
    %2204 = vmatprep.subr.mxu0 0.0
    %2205 = vmatpush1.msra.mxu0 %v1412
    %2206 = vmatprep.subr.mxu0 0.0
    %2207 = vmatpush1.msra.mxu0 %v1411
    %2208 = vmatprep.subr.mxu0 0.0
    %2209 = vmatpush1.msra.mxu0 %v1410
    %2210 = vmatprep.subr.mxu0 0.0
    %2211 = vmatpush1.msra.mxu0 %v1409
    %2212 = vmatprep.subr.mxu0 0.0
    %2213 = vmatpush1.msra.mxu0 %v1408
    %2214 = vmatprep.subr.mxu0 0.0
    %2215 = vmatpush1.msra.mxu0 %v1407
    %2216 = vmatprep.subr.mxu0 0.0
    %2217 = vmatpush2.msra.mxu0 0.0
    %2218 = vmatprep.subr.mxu0 0.0
    %2219 = vmatpush2.msra.mxu0 0.0
    %2220 = vmatprep.subr.mxu0 0.0
    %2221 = vmatpush2.msra.mxu0 0.0
    %2222 = vmatprep.subr.mxu0 0.0
    %2223 = vmatpush2.msra.mxu0 0.0
    %2224 = vmatprep.subr.mxu0 0.0
    %2225 = vmatpush2.msra.mxu0 0.0
    %2226 = vmatprep.subr.mxu0 0.0
    %2227 = vmatpush2.msra.mxu0 0.0
    %2228 = vmatprep.subr.mxu0 0.0
    %2229 = vmatpush2.msra.mxu0 0.0
    %2230 = vmatprep.subr.mxu0 0.0
    %2231 = vmatpush2.msra.mxu0 0.0
    %2232 = vmatprep.subr.mxu0 0.0
    %2233 = vmatpush2.msra.mxu0 0.0
    %2234 = vmatprep.subr.mxu0 0.0
    %2235 = vmatpush2.msra.mxu0 0.0
    %2236 = vmatprep.subr.mxu0 0.0
    %2237 = vmatpush2.msra.mxu0 0.0
    %2238 = vmatprep.subr.mxu0 0.0
    %2239 = vmatpush2.msra.mxu0 0.0
    %2240 = vmatprep.subr.mxu0 0.0
    %2241 = vmatpush2.msra.mxu0 0.0
    %2242 = vmatprep.subr.mxu0 0.0
    %2243 = vmatpush2.msra.mxu0 0.0
    %2244 = vmatprep.subr.mxu0 0.0
    %2245 = vmatpush2.msra.mxu0 0.0
    %2246 = vmatprep.subr.mxu0 0.0
    %2247 = vmatpush2.msra.mxu0 0.0
    %2248 = vmatprep.mubr.f32.mxu0 0.0
    %2249 = vmatmul.mubr.f32.gmra.mxu0 %v2182
    %v2250 = vpop.f32.mrf.mxu0
    %v2251 = vadd.f32 0.0, %v2250
    %v2252 = vpop.f32.mrf.mxu0
    %2253 = vdwg.mxu0
    %v2254 = vmul.f32 %v2155, %v2148
    %v2255 = vmul.f32 %v2156, %v2149
    %v2256 = vmul.f32 %v2157, %v2150
    %v2257 = vmul.f32 %v2158, %v2151
    %v2258 = vmul.f32 %v2159, %v2152
    %v2259 = vmul.f32 %v2160, %v2153
    %v2260 = vmul.f32 %v2161, %v2154
    %v2261 = vsel %vm1387, %v2254, 0.0
    %v2262 = vsel %vm1387, %v2255, 0.0
    %v2263 = vadd.f32 %v2261, %v2262
    %v2264 = vsel %vm1387, %v2256, 0.0
    %v2265 = vadd.f32 %v2263, %v2264
    %v2266 = vsel %vm1387, %v2257, 0.0
    %v2267 = vadd.f32 %v2265, %v2266
    %v2268 = vsel %vm1387, %v2258, 0.0
    %v2269 = vadd.f32 %v2267, %v2268
    %v2270 = vsel %vm1387, %v2259, 0.0
    %v2271 = vadd.f32 %v2269, %v2270
    %v2272 = vsel %vm1387, %v2260, 0.0
    %v2273 = vadd.f32 %v2271, %v2272
    %v2274 = vrot.slane %v2273, 4
    %v2275 = vadd.f32 %v2273, %v2274
    %v2276 = vrot.slane %v2275, 2
    %v2277 = vadd.f32 %v2275, %v2276
    %v2278 = vrot.slane %v2277, 1
    %v2279 = vadd.f32 %v2277, %v2278
    %v2281 = vsel %vm1387, %v2279, 0
    %2283 = vmatprep.subr.mxu0 0.0
    %2284 = vmatpush1.msra.mxu0 0.0
    %2285 = vmatprep.subr.mxu0 0.0
    %2286 = vmatpush1.msra.mxu0 0.0
    %2287 = vmatprep.subr.mxu0 0.0
    %2288 = vmatpush1.msra.mxu0 0.0
    %2289 = vmatprep.subr.mxu0 0.0
    %2290 = vmatpush1.msra.mxu0 0.0
    %2291 = vmatprep.subr.mxu0 0.0
    %2292 = vmatpush1.msra.mxu0 %v1418
    %2293 = vmatprep.subr.mxu0 0.0
    %2294 = vmatpush1.msra.mxu0 %v1417
    %2295 = vmatprep.subr.mxu0 0.0
    %2296 = vmatpush1.msra.mxu0 %v1416
    %2297 = vmatprep.subr.mxu0 0.0
    %2298 = vmatpush1.msra.mxu0 %v1415
    %2299 = vmatprep.subr.mxu0 0.0
    %2300 = vmatpush1.msra.mxu0 %v1414
    %2301 = vmatprep.subr.mxu0 0.0
    %2302 = vmatpush1.msra.mxu0 %v1413
    %2303 = vmatprep.subr.mxu0 0.0
    %2304 = vmatpush1.msra.mxu0 %v1412
    %2305 = vmatprep.subr.mxu0 0.0
    %2306 = vmatpush1.msra.mxu0 %v1411
    %2307 = vmatprep.subr.mxu0 0.0
    %2308 = vmatpush1.msra.mxu0 %v1410
    %2309 = vmatprep.subr.mxu0 0.0
    %2310 = vmatpush1.msra.mxu0 %v1409
    %2311 = vmatprep.subr.mxu0 0.0
    %2312 = vmatpush1.msra.mxu0 %v1408
    %2313 = vmatprep.subr.mxu0 0.0
    %2314 = vmatpush1.msra.mxu0 %v1407
    %2315 = vmatprep.subr.mxu0 0.0
    %2316 = vmatpush2.msra.mxu0 0.0
    %2317 = vmatprep.subr.mxu0 0.0
    %2318 = vmatpush2.msra.mxu0 0.0
    %2319 = vmatprep.subr.mxu0 0.0
    %2320 = vmatpush2.msra.mxu0 0.0
    %2321 = vmatprep.subr.mxu0 0.0
    %2322 = vmatpush2.msra.mxu0 0.0
    %2323 = vmatprep.subr.mxu0 0.0
    %2324 = vmatpush2.msra.mxu0 0.0
    %2325 = vmatprep.subr.mxu0 0.0
    %2326 = vmatpush2.msra.mxu0 0.0
    %2327 = vmatprep.subr.mxu0 0.0
    %2328 = vmatpush2.msra.mxu0 0.0
    %2329 = vmatprep.subr.mxu0 0.0
    %2330 = vmatpush2.msra.mxu0 0.0
    %2331 = vmatprep.subr.mxu0 0.0
    %2332 = vmatpush2.msra.mxu0 0.0
    %2333 = vmatprep.subr.mxu0 0.0
    %2334 = vmatpush2.msra.mxu0 0.0
    %2335 = vmatprep.subr.mxu0 0.0
    %2336 = vmatpush2.msra.mxu0 0.0
    %2337 = vmatprep.subr.mxu0 0.0
    %2338 = vmatpush2.msra.mxu0 0.0
    %2339 = vmatprep.subr.mxu0 0.0
    %2340 = vmatpush2.msra.mxu0 0.0
    %2341 = vmatprep.subr.mxu0 0.0
    %2342 = vmatpush2.msra.mxu0 0.0
    %2343 = vmatprep.subr.mxu0 0.0
    %2344 = vmatpush2.msra.mxu0 0.0
    %2345 = vmatprep.subr.mxu0 0.0
    %2346 = vmatpush2.msra.mxu0 0.0
    %2347 = vmatprep.mubr.f32.mxu0 0.0
    %2348 = vmatmul.mubr.f32.gmra.mxu0 %v2281
    %v2349 = vpop.f32.mrf.mxu0
    %v2350 = vadd.f32 0.0, %v2349
    %v2351 = vpop.f32.mrf.mxu0
    %2352 = vdwg.mxu0
    %v2353 = vmul.f32 %v2251, 0.0034722222
    %v2354 = vmul.f32 %v2350, 0.0034722222
    %v2355 = vmul.f32 %v2353, %v2353
    %v2356 = vsub.f32 %v2354, %v2355
    %v2357 = vld [vmem:[#allocation16] sm:$0x1]
    %v2358 = vadd.f32 %v2356, 1e-05
    %v2359 = vrsqrt.pop %v2358
    %v2360 = vmul.f32 %v2357, %v2359
    %v2361 = vld [vmem:[#allocation17] sm:$0x1]
    %v2362 = vmul.f32 %v2353, %v2360
    %v2363 = vsub.f32 %v2361, %v2362
    %v2365 = vlaneseq
    %v2366 = vshrl.u32 %v2365, 7
    %v2367 = vsub.s32 0, %v2366
    %v2368 = vrot.slane %v2360, %v2367
    %v2370 = vmul.f32 %v2148, %v2368
    %v2371 = vmul.f32 %v2149, %v2368
    %v2372 = vmul.f32 %v2150, %v2368
    %v2373 = vmul.f32 %v2151, %v2368
    %v2374 = vmul.f32 %v2152, %v2368
    %v2375 = vmul.f32 %v2153, %v2368
    %v2376 = vmul.f32 %v2154, %v2368
    %v2378 = vlaneseq
    %v2379 = vshrl.u32 %v2378, 7
    %v2380 = vsub.s32 0, %v2379
    %v2381 = vrot.slane %v2363, %v2380
    %v2383 = vadd.f32 %v2370, %v2381
    %v2384 = vadd.f32 %v2371, %v2381
    %v2385 = vadd.f32 %v2372, %v2381
    %v2386 = vadd.f32 %v2373, %v2381
    %v2387 = vadd.f32 %v2374, %v2381
    %v2388 = vadd.f32 %v2375, %v2381
    %v2389 = vadd.f32 %v2376, %v2381
    %v2390 = vadd.f32 %v2383, 0.0
    %v2391 = vadd.f32 %v2384, 0.0
    %v2392 = vadd.f32 %v2385, 0.0
    %v2393 = vadd.f32 %v2386, 0.0
    %v2394 = vadd.f32 %v2387, 0.0
    %v2395 = vadd.f32 %v2388, 0.0
    %v2396 = vadd.f32 %v2389, 0.0
    %v2397 = vmax.f32 %v2390, -2.0
    %v2398 = vmax.f32 %v2391, -2.0
    %v2399 = vmax.f32 %v2392, -2.0
    %v2400 = vmax.f32 %v2393, -2.0
    %v2401 = vmax.f32 %v2394, -2.0
    %v2402 = vmax.f32 %v2395, -2.0
    %v2403 = vmax.f32 %v2396, -2.0
    %v2404 = vmin.f32 %v2397, 2.0
    %v2405 = vmin.f32 %v2398, 2.0
    %v2406 = vmin.f32 %v2399, 2.0
    %v2407 = vmin.f32 %v2400, 2.0
    %v2408 = vmin.f32 %v2401, 2.0
    %v2409 = vmin.f32 %v2402, 2.0
    %v2410 = vmin.f32 %v2403, 2.0
    %v2411 = vmul.f32 %v2404, %v2404
    %v2412 = vmul.f32 %v2405, %v2405
    %v2413 = vmul.f32 %v2406, %v2406
    %v2414 = vmul.f32 %v2407, %v2407
    %v2415 = vmul.f32 %v2408, %v2408
    %v2416 = vmul.f32 %v2409, %v2409
    %v2417 = vmul.f32 %v2410, %v2410
    %v2418 = vadd.f32 %v2411, %v2383
    %v2419 = vadd.f32 %v2412, %v2384
    %v2420 = vadd.f32 %v2413, %v2385
    %v2421 = vadd.f32 %v2414, %v2386
    %v2422 = vadd.f32 %v2415, %v2387
    %v2423 = vadd.f32 %v2416, %v2388
    %v2424 = vadd.f32 %v2417, %v2389
    %v2425 = vmax.f32 %v2418, -2.0
    %v2426 = vmax.f32 %v2419, -2.0
    %v2427 = vmax.f32 %v2420, -2.0
    %v2428 = vmax.f32 %v2421, -2.0
    %v2429 = vmax.f32 %v2422, -2.0
    %v2430 = vmax.f32 %v2423, -2.0
    %v2431 = vmax.f32 %v2424, -2.0
    %v2432 = vmin.f32 %v2425, 2.0
    %v2433 = vmin.f32 %v2426, 2.0
    %v2434 = vmin.f32 %v2427, 2.0
    %v2435 = vmin.f32 %v2428, 2.0
    %v2436 = vmin.f32 %v2429, 2.0
    %v2437 = vmin.f32 %v2430, 2.0
    %v2438 = vmin.f32 %v2431, 2.0
    %v2439 = vmul.f32 %v2432, %v2432
    %v2440 = vmul.f32 %v2433, %v2433
    %v2441 = vmul.f32 %v2434, %v2434
    %v2442 = vmul.f32 %v2435, %v2435
    %v2443 = vmul.f32 %v2436, %v2436
    %v2444 = vmul.f32 %v2437, %v2437
    %v2445 = vmul.f32 %v2438, %v2438
    %v2446 = vadd.f32 %v2439, %v2383
    %v2447 = vadd.f32 %v2440, %v2384
    %v2448 = vadd.f32 %v2441, %v2385
    %v2449 = vadd.f32 %v2442, %v2386
    %v2450 = vadd.f32 %v2443, %v2387
    %v2451 = vadd.f32 %v2444, %v2388
    %v2452 = vadd.f32 %v2445, %v2389
    %v2453 = vmax.f32 %v2446, -2.0
    %v2454 = vmax.f32 %v2447, -2.0
    %v2455 = vmax.f32 %v2448, -2.0
    %v2456 = vmax.f32 %v2449, -2.0
    %v2457 = vmax.f32 %v2450, -2.0
    %v2458 = vmax.f32 %v2451, -2.0
    %v2459 = vmax.f32 %v2452, -2.0
    %v2460 = vmin.f32 %v2453, 2.0
    %v2461 = vmin.f32 %v2454, 2.0
    %v2462 = vmin.f32 %v2455, 2.0
    %v2463 = vmin.f32 %v2456, 2.0
    %v2464 = vmin.f32 %v2457, 2.0
    %v2465 = vmin.f32 %v2458, 2.0
    %v2466 = vmin.f32 %v2459, 2.0
    %v2467 = vld [vmem:[#allocation8] sm:$0x1]
    %v2468 = vld [vmem:[%s5] sm:$0xf]
    %v2469 = vld [vmem:[%s5 + $0x4] sm:$0xf]
    %v2470 = vld [vmem:[%s5 + $0x8] sm:$0xf]
    %v2471 = vld [vmem:[%s5 + $0xc] sm:$0xf]
    %v2472 = vld [vmem:[%s5 + $0x10] sm:$0xf]
    %v2473 = vld [vmem:[%s5 + $0x14] sm:$0xf]
    %v2474 = vld [vmem:[%s5 + $0x18] sm:$0xf]
    %v2475 = vld [vmem:[%s5 + $0x1c] sm:$0xf]
    %v2476 = vld [vmem:[%s5 + $0x20] sm:$0xf]
    %v2477 = vld [vmem:[%s5 + $0x24] sm:$0xf]
    %v2478 = vld [vmem:[%s5 + $0x28] sm:$0xf]
    %v2479 = vld [vmem:[%s5 + $0x2c] sm:$0xf]
    %v2480 = vpack.c.bf16 %v2461, %v2460
    %v2481 = vpack.c.bf16 %v2463, %v2462
    %v2482 = vpack.c.bf16 %v2465, %v2464
    %v2483 = vpack.c.bf16 %v2466, %v2466
    %v2496 = vunpack.c.l.b16 %v2468
    %v2497 = vunpack.c.l.b16 %v2469
    %v2498 = vunpack.c.l.b16 %v2470
    %v2499 = vunpack.c.l.b16 %v2471
    %v2500 = vunpack.c.l.b16 %v2472
    %v2501 = vunpack.c.l.b16 %v2473
    %v2502 = vunpack.c.l.b16 %v2474
    %v2503 = vunpack.c.l.b16 %v2475
    %v2504 = vunpack.c.l.b16 %v2476
    %v2505 = vunpack.c.l.b16 %v2477
    %v2506 = vunpack.c.l.b16 %v2478
    %v2507 = vunpack.c.l.b16 %v2479
    %v2508 = vpack.c.b16 %v2497, %v2496
    %v2509 = vpack.c.b16 %v2499, %v2498
    %v2510 = vpack.c.b16 %v2501, %v2500
    %v2511 = vpack.c.b16 %v2503, %v2502
    %v2512 = vpack.c.b16 %v2505, %v2504
    %v2513 = vpack.c.b16 %v2507, %v2506
    %v2521 = vsel %vm1387, %v2480, 0
    %v2524 = vsel %vm1387, %v2481, 0
    %v2527 = vsel %vm1387, %v2482, 0
    %v2530 = vsel %vm1387, %v2483, 0
    %2532 = vmatprep.subr.bf16.mxu0 0
    %2533 = vmatpush1.bf16.msra.mxu0 0
    %2534 = vmatprep.subr.bf16.mxu0 0
    %2535 = vmatpush1.bf16.msra.mxu0 0
    %2536 = vmatprep.subr.bf16.mxu0 0
    %2537 = vmatpush1.bf16.msra.mxu0 %v2513
    %2538 = vmatprep.subr.bf16.mxu0 0
    %2539 = vmatpush1.bf16.msra.mxu0 %v2512
    %2540 = vmatprep.subr.bf16.mxu0 0
    %2541 = vmatpush1.bf16.msra.mxu0 %v2511
    %2542 = vmatprep.subr.bf16.mxu0 0
    %2543 = vmatpush1.bf16.msra.mxu0 %v2510
    %2544 = vmatprep.subr.bf16.mxu0 0
    %2545 = vmatpush1.bf16.msra.mxu0 %v2509
    %2546 = vmatprep.subr.bf16.mxu0 0
    %2547 = vmatpush1.bf16.msra.mxu0 %v2508
    %2548 = vmatprep.subr.bf16.mxu0 0
    %2549 = vmatpush2.bf16.msra.mxu0 0
    %2550 = vmatprep.subr.bf16.mxu0 0
    %2551 = vmatpush2.bf16.msra.mxu0 0
    %2552 = vmatprep.subr.bf16.mxu0 0
    %2553 = vmatpush2.bf16.msra.mxu0 0
    %2554 = vmatprep.subr.bf16.mxu0 0
    %2555 = vmatpush2.bf16.msra.mxu0 0
    %2556 = vmatprep.subr.bf16.mxu0 0
    %2557 = vmatpush2.bf16.msra.mxu0 0
    %2558 = vmatprep.subr.bf16.mxu0 0
    %2559 = vmatpush2.bf16.msra.mxu0 0
    %2560 = vmatprep.subr.bf16.mxu0 0
    %2561 = vmatpush2.bf16.msra.mxu0 0
    %2562 = vmatprep.subr.bf16.mxu0 0
    %2563 = vmatpush2.bf16.msra.mxu0 0
    %2564 = vmatprep.mubr.bf16.mxu0 0
    %2565 = vmatmul.mubr.bf16.gmra.mxu0 %v2521
    %v2566 = vpop.f32.mrf.mxu0
    %v2567 = vadd.f32 0.0, %v2566
    %v2568 = vpop.f32.mrf.mxu0
    %v2569 = vpop.f32.mrf.mxu0
    %v2570 = vadd.f32 0.0, %v2569
    %v2571 = vpop.f32.mrf.mxu0
    %2572 = vmatprep.mubr.bf16.mxu0 0
    %2573 = vmatmul.mubr.bf16.gmra.mxu0 %v2524
    %v2574 = vpop.f32.mrf.mxu0
    %v2575 = vadd.f32 0.0, %v2574
    %v2576 = vpop.f32.mrf.mxu0
    %v2577 = vpop.f32.mrf.mxu0
    %v2578 = vadd.f32 0.0, %v2577
    %v2579 = vpop.f32.mrf.mxu0
    %2580 = vmatprep.mubr.bf16.mxu0 0
    %2581 = vmatmul.mubr.bf16.gmra.mxu0 %v2527
    %v2582 = vpop.f32.mrf.mxu0
    %v2583 = vadd.f32 0.0, %v2582
    %v2584 = vpop.f32.mrf.mxu0
    %v2585 = vpop.f32.mrf.mxu0
    %v2586 = vadd.f32 0.0, %v2585
    %v2587 = vpop.f32.mrf.mxu0
    %2588 = vmatprep.mubr.bf16.mxu0 0
    %2589 = vmatmul.mubr.bf16.gmra.mxu0 %v2530
    %v2590 = vpop.f32.mrf.mxu0
    %v2591 = vadd.f32 0.0, %v2590
    %v2592 = vpop.f32.mrf.mxu0
    %v2593 = vpop.f32.mrf.mxu0
    %v2594 = vpop.f32.mrf.mxu0
    %2595 = vdwg.mxu0
    %v2597 = vlaneseq
    %v2598 = vshrl.u32 %v2597, 7
    %v2599 = vsub.s32 0, %v2598
    %v2600 = vrot.slane %v2467, %v2599
    %v2602 = vadd.f32 %v2600, %v2567
    %v2603 = vadd.f32 %v2600, %v2570
    %v2604 = vadd.f32 %v2600, %v2575
    %v2605 = vadd.f32 %v2600, %v2578
    %v2606 = vadd.f32 %v2600, %v2583
    %v2607 = vadd.f32 %v2600, %v2586
    %v2608 = vadd.f32 %v2600, %v2591
    %v2609 = vrot.slane %v2460, 2
    %v2610 = vrot.slane %v2461, 2
    %v2611 = vrot.slane %v2462, 2
    %v2612 = vrot.slane %v2463, 2
    %v2613 = vrot.slane %v2464, 2
    %v2614 = vrot.slane %v2465, 2
    %v2615 = vrot.slane %v2466, 2
    %v2616 = vsel %vm598, %v2614, %v2615
    %v2617 = vsel %vm598, %v2613, %v2614
    %v2618 = vsel %vm598, %v2612, %v2613
    %v2619 = vsel %vm598, %v2611, %v2612
    %v2620 = vsel %vm598, %v2610, %v2611
    %v2621 = vsel %vm598, %v2609, %v2610
    %v2622 = vsel %vm598, %v2615, %v2609
    %s2623 = scalar_lea.vmem %s5, 48
    %v2624 = vld [vmem:[%s2623] sm:$0xf]
    %v2625 = vld [vmem:[%s2623 + $0x4] sm:$0xf]
    %v2626 = vld [vmem:[%s2623 + $0x8] sm:$0xf]
    %v2627 = vld [vmem:[%s2623 + $0xc] sm:$0xf]
    %v2628 = vld [vmem:[%s2623 + $0x10] sm:$0xf]
    %v2629 = vld [vmem:[%s2623 + $0x14] sm:$0xf]
    %v2630 = vld [vmem:[%s2623 + $0x18] sm:$0xf]
    %v2631 = vld [vmem:[%s2623 + $0x1c] sm:$0xf]
    %v2632 = vld [vmem:[%s2623 + $0x20] sm:$0xf]
    %v2633 = vld [vmem:[%s2623 + $0x24] sm:$0xf]
    %v2634 = vld [vmem:[%s2623 + $0x28] sm:$0xf]
    %v2635 = vld [vmem:[%s2623 + $0x2c] sm:$0xf]
    %v2636 = vpack.c.bf16 %v2620, %v2621
    %v2637 = vpack.c.bf16 %v2618, %v2619
    %v2638 = vpack.c.bf16 %v2616, %v2617
    %v2639 = vpack.c.bf16 %v2622, %v2622
    %v2652 = vunpack.c.l.b16 %v2624
    %v2653 = vunpack.c.l.b16 %v2625
    %v2654 = vunpack.c.l.b16 %v2626
    %v2655 = vunpack.c.l.b16 %v2627
    %v2656 = vunpack.c.l.b16 %v2628
    %v2657 = vunpack.c.l.b16 %v2629
    %v2658 = vunpack.c.l.b16 %v2630
    %v2659 = vunpack.c.l.b16 %v2631
    %v2660 = vunpack.c.l.b16 %v2632
    %v2661 = vunpack.c.l.b16 %v2633
    %v2662 = vunpack.c.l.b16 %v2634
    %v2663 = vunpack.c.l.b16 %v2635
    %v2664 = vpack.c.b16 %v2653, %v2652
    %v2665 = vpack.c.b16 %v2655, %v2654
    %v2666 = vpack.c.b16 %v2657, %v2656
    %v2667 = vpack.c.b16 %v2659, %v2658
    %v2668 = vpack.c.b16 %v2661, %v2660
    %v2669 = vpack.c.b16 %v2663, %v2662
    %v2677 = vsel %vm1387, %v2636, 0
    %v2680 = vsel %vm1387, %v2637, 0
    %v2683 = vsel %vm1387, %v2638, 0
    %v2686 = vsel %vm1387, %v2639, 0
    %2688 = vmatprep.subr.bf16.mxu0 0
    %2689 = vmatpush1.bf16.msra.mxu0 0
    %2690 = vmatprep.subr.bf16.mxu0 0
    %2691 = vmatpush1.bf16.msra.mxu0 0
    %2692 = vmatprep.subr.bf16.mxu0 0
    %2693 = vmatpush1.bf16.msra.mxu0 %v2669
    %2694 = vmatprep.subr.bf16.mxu0 0
    %2695 = vmatpush1.bf16.msra.mxu0 %v2668
    %2696 = vmatprep.subr.bf16.mxu0 0
    %2697 = vmatpush1.bf16.msra.mxu0 %v2667
    %2698 = vmatprep.subr.bf16.mxu0 0
    %2699 = vmatpush1.bf16.msra.mxu0 %v2666
    %2700 = vmatprep.subr.bf16.mxu0 0
    %2701 = vmatpush1.bf16.msra.mxu0 %v2665
    %2702 = vmatprep.subr.bf16.mxu0 0
    %2703 = vmatpush1.bf16.msra.mxu0 %v2664
    %2704 = vmatprep.subr.bf16.mxu0 0
    %2705 = vmatpush2.bf16.msra.mxu0 0
    %2706 = vmatprep.subr.bf16.mxu0 0
    %2707 = vmatpush2.bf16.msra.mxu0 0
    %2708 = vmatprep.subr.bf16.mxu0 0
    %2709 = vmatpush2.bf16.msra.mxu0 0
    %2710 = vmatprep.subr.bf16.mxu0 0
    %2711 = vmatpush2.bf16.msra.mxu0 0
    %2712 = vmatprep.subr.bf16.mxu0 0
    %2713 = vmatpush2.bf16.msra.mxu0 0
    %2714 = vmatprep.subr.bf16.mxu0 0
    %2715 = vmatpush2.bf16.msra.mxu0 0
    %2716 = vmatprep.subr.bf16.mxu0 0
    %2717 = vmatpush2.bf16.msra.mxu0 0
    %2718 = vmatprep.subr.bf16.mxu0 0
    %2719 = vmatpush2.bf16.msra.mxu0 0
    %2720 = vmatprep.mubr.bf16.mxu0 0
    %2721 = vmatmul.mubr.bf16.gmra.mxu0 %v2677
    %v2722 = vpop.f32.mrf.mxu0
    %v2723 = vadd.f32 0.0, %v2722
    %v2724 = vpop.f32.mrf.mxu0
    %v2725 = vpop.f32.mrf.mxu0
    %v2726 = vadd.f32 0.0, %v2725
    %v2727 = vpop.f32.mrf.mxu0
    %2728 = vmatprep.mubr.bf16.mxu0 0
    %2729 = vmatmul.mubr.bf16.gmra.mxu0 %v2680
    %v2730 = vpop.f32.mrf.mxu0
    %v2731 = vadd.f32 0.0, %v2730
    %v2732 = vpop.f32.mrf.mxu0
    %v2733 = vpop.f32.mrf.mxu0
    %v2734 = vadd.f32 0.0, %v2733
    %v2735 = vpop.f32.mrf.mxu0
    %2736 = vmatprep.mubr.bf16.mxu0 0
    %2737 = vmatmul.mubr.bf16.gmra.mxu0 %v2683
    %v2738 = vpop.f32.mrf.mxu0
    %v2739 = vadd.f32 0.0, %v2738
    %v2740 = vpop.f32.mrf.mxu0
    %v2741 = vpop.f32.mrf.mxu0
    %v2742 = vadd.f32 0.0, %v2741
    %v2743 = vpop.f32.mrf.mxu0
    %2744 = vmatprep.mubr.bf16.mxu0 0
    %2745 = vmatmul.mubr.bf16.gmra.mxu0 %v2686
    %v2746 = vpop.f32.mrf.mxu0
    %v2747 = vadd.f32 0.0, %v2746
    %v2748 = vpop.f32.mrf.mxu0
    %v2749 = vpop.f32.mrf.mxu0
    %v2750 = vpop.f32.mrf.mxu0
    %2751 = vdwg.mxu0
    %v2752 = vadd.f32 %v2602, %v2723
    %v2753 = vadd.f32 %v2603, %v2726
    %v2754 = vadd.f32 %v2604, %v2731
    %v2755 = vadd.f32 %v2605, %v2734
    %v2756 = vadd.f32 %v2606, %v2739
    %v2757 = vadd.f32 %v2607, %v2742
    %v2758 = vadd.f32 %v2608, %v2747
    %v2759 = vrot.slane %v2460, 4
    %v2760 = vrot.slane %v2461, 4
    %v2761 = vrot.slane %v2462, 4
    %v2762 = vrot.slane %v2463, 4
    %v2763 = vrot.slane %v2464, 4
    %v2764 = vrot.slane %v2465, 4
    %v2765 = vrot.slane %v2466, 4
    %v2766 = vsel %vm888, %v2764, %v2765
    %v2767 = vsel %vm888, %v2763, %v2764
    %v2768 = vsel %vm888, %v2762, %v2763
    %v2769 = vsel %vm888, %v2761, %v2762
    %v2770 = vsel %vm888, %v2760, %v2761
    %v2771 = vsel %vm888, %v2759, %v2760
    %v2772 = vsel %vm888, %v2765, %v2759
    %s2773 = scalar_lea.vmem %s5, 96
    %v2774 = vld [vmem:[%s2773] sm:$0xf]
    %v2775 = vld [vmem:[%s2773 + $0x4] sm:$0xf]
    %v2776 = vld [vmem:[%s2773 + $0x8] sm:$0xf]
    %v2777 = vld [vmem:[%s2773 + $0xc] sm:$0xf]
    %v2778 = vld [vmem:[%s2773 + $0x10] sm:$0xf]
    %v2779 = vld [vmem:[%s2773 + $0x14] sm:$0xf]
    %v2780 = vld [vmem:[%s2773 + $0x18] sm:$0xf]
    %v2781 = vld [vmem:[%s2773 + $0x1c] sm:$0xf]
    %v2782 = vld [vmem:[%s2773 + $0x20] sm:$0xf]
    %v2783 = vld [vmem:[%s2773 + $0x24] sm:$0xf]
    %v2784 = vld [vmem:[%s2773 + $0x28] sm:$0xf]
    %v2785 = vld [vmem:[%s2773 + $0x2c] sm:$0xf]
    %v2786 = vpack.c.bf16 %v2770, %v2771
    %v2787 = vpack.c.bf16 %v2768, %v2769
    %v2788 = vpack.c.bf16 %v2766, %v2767
    %v2789 = vpack.c.bf16 %v2772, %v2772
    %v2802 = vunpack.c.l.b16 %v2774
    %v2803 = vunpack.c.l.b16 %v2775
    %v2804 = vunpack.c.l.b16 %v2776
    %v2805 = vunpack.c.l.b16 %v2777
    %v2806 = vunpack.c.l.b16 %v2778
    %v2807 = vunpack.c.l.b16 %v2779
    %v2808 = vunpack.c.l.b16 %v2780
    %v2809 = vunpack.c.l.b16 %v2781
    %v2810 = vunpack.c.l.b16 %v2782
    %v2811 = vunpack.c.l.b16 %v2783
    %v2812 = vunpack.c.l.b16 %v2784
    %v2813 = vunpack.c.l.b16 %v2785
    %v2814 = vpack.c.b16 %v2803, %v2802
    %v2815 = vpack.c.b16 %v2805, %v2804
    %v2816 = vpack.c.b16 %v2807, %v2806
    %v2817 = vpack.c.b16 %v2809, %v2808
    %v2818 = vpack.c.b16 %v2811, %v2810
    %v2819 = vpack.c.b16 %v2813, %v2812
    %v2827 = vsel %vm1387, %v2786, 0
    %v2830 = vsel %vm1387, %v2787, 0
    %v2833 = vsel %vm1387, %v2788, 0
    %v2836 = vsel %vm1387, %v2789, 0
    %2838 = vmatprep.subr.bf16.mxu0 0
    %2839 = vmatpush1.bf16.msra.mxu0 0
    %2840 = vmatprep.subr.bf16.mxu0 0
    %2841 = vmatpush1.bf16.msra.mxu0 0
    %2842 = vmatprep.subr.bf16.mxu0 0
    %2843 = vmatpush1.bf16.msra.mxu0 %v2819
    %2844 = vmatprep.subr.bf16.mxu0 0
    %2845 = vmatpush1.bf16.msra.mxu0 %v2818
    %2846 = vmatprep.subr.bf16.mxu0 0
    %2847 = vmatpush1.bf16.msra.mxu0 %v2817
    %2848 = vmatprep.subr.bf16.mxu0 0
    %2849 = vmatpush1.bf16.msra.mxu0 %v2816
    %2850 = vmatprep.subr.bf16.mxu0 0
    %2851 = vmatpush1.bf16.msra.mxu0 %v2815
    %2852 = vmatprep.subr.bf16.mxu0 0
    %2853 = vmatpush1.bf16.msra.mxu0 %v2814
    %2854 = vmatprep.subr.bf16.mxu0 0
    %2855 = vmatpush2.bf16.msra.mxu0 0
    %2856 = vmatprep.subr.bf16.mxu0 0
    %2857 = vmatpush2.bf16.msra.mxu0 0
    %2858 = vmatprep.subr.bf16.mxu0 0
    %2859 = vmatpush2.bf16.msra.mxu0 0
    %2860 = vmatprep.subr.bf16.mxu0 0
    %2861 = vmatpush2.bf16.msra.mxu0 0
    %2862 = vmatprep.subr.bf16.mxu0 0
    %2863 = vmatpush2.bf16.msra.mxu0 0
    %2864 = vmatprep.subr.bf16.mxu0 0
    %2865 = vmatpush2.bf16.msra.mxu0 0
    %2866 = vmatprep.subr.bf16.mxu0 0
    %2867 = vmatpush2.bf16.msra.mxu0 0
    %2868 = vmatprep.subr.bf16.mxu0 0
    %2869 = vmatpush2.bf16.msra.mxu0 0
    %2870 = vmatprep.mubr.bf16.mxu0 0
    %2871 = vmatmul.mubr.bf16.gmra.mxu0 %v2827
    %v2872 = vpop.f32.mrf.mxu0
    %v2873 = vadd.f32 0.0, %v2872
    %v2874 = vpop.f32.mrf.mxu0
    %v2875 = vpop.f32.mrf.mxu0
    %v2876 = vadd.f32 0.0, %v2875
    %v2877 = vpop.f32.mrf.mxu0
    %2878 = vmatprep.mubr.bf16.mxu0 0
    %2879 = vmatmul.mubr.bf16.gmra.mxu0 %v2830
    %v2880 = vpop.f32.mrf.mxu0
    %v2881 = vadd.f32 0.0, %v2880
    %v2882 = vpop.f32.mrf.mxu0
    %v2883 = vpop.f32.mrf.mxu0
    %v2884 = vadd.f32 0.0, %v2883
    %v2885 = vpop.f32.mrf.mxu0
    %2886 = vmatprep.mubr.bf16.mxu0 0
    %2887 = vmatmul.mubr.bf16.gmra.mxu0 %v2833
    %v2888 = vpop.f32.mrf.mxu0
    %v2889 = vadd.f32 0.0, %v2888
    %v2890 = vpop.f32.mrf.mxu0
    %v2891 = vpop.f32.mrf.mxu0
    %v2892 = vadd.f32 0.0, %v2891
    %v2893 = vpop.f32.mrf.mxu0
    %2894 = vmatprep.mubr.bf16.mxu0 0
    %2895 = vmatmul.mubr.bf16.gmra.mxu0 %v2836
    %v2896 = vpop.f32.mrf.mxu0
    %v2897 = vadd.f32 0.0, %v2896
    %v2898 = vpop.f32.mrf.mxu0
    %v2899 = vpop.f32.mrf.mxu0
    %v2900 = vpop.f32.mrf.mxu0
    %2901 = vdwg.mxu0
    %v2902 = vadd.f32 %v2752, %v2873
    %v2903 = vadd.f32 %v2753, %v2876
    %v2904 = vadd.f32 %v2754, %v2881
    %v2905 = vadd.f32 %v2755, %v2884
    %v2906 = vadd.f32 %v2756, %v2889
    %v2907 = vadd.f32 %v2757, %v2892
    %v2908 = vadd.f32 %v2758, %v2897
    %v2909 = vrot.slane %v2460, 6
    %v2910 = vrot.slane %v2461, 6
    %v2911 = vrot.slane %v2462, 6
    %v2912 = vrot.slane %v2463, 6
    %v2913 = vrot.slane %v2464, 6
    %v2914 = vrot.slane %v2465, 6
    %v2915 = vrot.slane %v2466, 6
    %v2916 = vsel %vm1720, %v2914, %v2915
    %v2917 = vsel %vm1720, %v2913, %v2914
    %v2918 = vsel %vm1720, %v2912, %v2913
    %v2919 = vsel %vm1720, %v2911, %v2912
    %v2920 = vsel %vm1720, %v2910, %v2911
    %v2921 = vsel %vm1720, %v2909, %v2910
    %v2922 = vsel %vm1720, %v2915, %v2909
    %s2923 = scalar_lea.vmem %s5, 144
    %v2924 = vld [vmem:[%s2923] sm:$0xf]
    %v2925 = vld [vmem:[%s2923 + $0x4] sm:$0xf]
    %v2926 = vld [vmem:[%s2923 + $0x8] sm:$0xf]
    %v2927 = vld [vmem:[%s2923 + $0xc] sm:$0xf]
    %v2928 = vld [vmem:[%s2923 + $0x10] sm:$0xf]
    %v2929 = vld [vmem:[%s2923 + $0x14] sm:$0xf]
    %v2930 = vld [vmem:[%s2923 + $0x18] sm:$0xf]
    %v2931 = vld [vmem:[%s2923 + $0x1c] sm:$0xf]
    %v2932 = vld [vmem:[%s2923 + $0x20] sm:$0xf]
    %v2933 = vld [vmem:[%s2923 + $0x24] sm:$0xf]
    %v2934 = vld [vmem:[%s2923 + $0x28] sm:$0xf]
    %v2935 = vld [vmem:[%s2923 + $0x2c] sm:$0xf]
    %v2936 = vpack.c.bf16 %v2920, %v2921
    %v2937 = vpack.c.bf16 %v2918, %v2919
    %v2938 = vpack.c.bf16 %v2916, %v2917
    %v2939 = vpack.c.bf16 %v2922, %v2922
    %v2952 = vunpack.c.l.b16 %v2924
    %v2953 = vunpack.c.l.b16 %v2925
    %v2954 = vunpack.c.l.b16 %v2926
    %v2955 = vunpack.c.l.b16 %v2927
    %v2956 = vunpack.c.l.b16 %v2928
    %v2957 = vunpack.c.l.b16 %v2929
    %v2958 = vunpack.c.l.b16 %v2930
    %v2959 = vunpack.c.l.b16 %v2931
    %v2960 = vunpack.c.l.b16 %v2932
    %v2961 = vunpack.c.l.b16 %v2933
    %v2962 = vunpack.c.l.b16 %v2934
    %v2963 = vunpack.c.l.b16 %v2935
    %v2964 = vpack.c.b16 %v2953, %v2952
    %v2965 = vpack.c.b16 %v2955, %v2954
    %v2966 = vpack.c.b16 %v2957, %v2956
    %v2967 = vpack.c.b16 %v2959, %v2958
    %v2968 = vpack.c.b16 %v2961, %v2960
    %v2969 = vpack.c.b16 %v2963, %v2962
    %v2977 = vsel %vm1387, %v2936, 0
    %v2980 = vsel %vm1387, %v2937, 0
    %v2983 = vsel %vm1387, %v2938, 0
    %v2986 = vsel %vm1387, %v2939, 0
    %2988 = vmatprep.subr.bf16.mxu0 0
    %2989 = vmatpush1.bf16.msra.mxu0 0
    %2990 = vmatprep.subr.bf16.mxu0 0
    %2991 = vmatpush1.bf16.msra.mxu0 0
    %2992 = vmatprep.subr.bf16.mxu0 0
    %2993 = vmatpush1.bf16.msra.mxu0 %v2969
    %2994 = vmatprep.subr.bf16.mxu0 0
    %2995 = vmatpush1.bf16.msra.mxu0 %v2968
    %2996 = vmatprep.subr.bf16.mxu0 0
    %2997 = vmatpush1.bf16.msra.mxu0 %v2967
    %2998 = vmatprep.subr.bf16.mxu0 0
    %2999 = vmatpush1.bf16.msra.mxu0 %v2966
    %3000 = vmatprep.subr.bf16.mxu0 0
    %3001 = vmatpush1.bf16.msra.mxu0 %v2965
    %3002 = vmatprep.subr.bf16.mxu0 0
    %3003 = vmatpush1.bf16.msra.mxu0 %v2964
    %3004 = vmatprep.subr.bf16.mxu0 0
    %3005 = vmatpush2.bf16.msra.mxu0 0
    %3006 = vmatprep.subr.bf16.mxu0 0
    %3007 = vmatpush2.bf16.msra.mxu0 0
    %3008 = vmatprep.subr.bf16.mxu0 0
    %3009 = vmatpush2.bf16.msra.mxu0 0
    %3010 = vmatprep.subr.bf16.mxu0 0
    %3011 = vmatpush2.bf16.msra.mxu0 0
    %3012 = vmatprep.subr.bf16.mxu0 0
    %3013 = vmatpush2.bf16.msra.mxu0 0
    %3014 = vmatprep.subr.bf16.mxu0 0
    %3015 = vmatpush2.bf16.msra.mxu0 0
    %3016 = vmatprep.subr.bf16.mxu0 0
    %3017 = vmatpush2.bf16.msra.mxu0 0
    %3018 = vmatprep.subr.bf16.mxu0 0
    %3019 = vmatpush2.bf16.msra.mxu0 0
    %3020 = vmatprep.mubr.bf16.mxu0 0
    %3021 = vmatmul.mubr.bf16.gmra.mxu0 %v2977
    %v3022 = vpop.f32.mrf.mxu0
    %v3023 = vadd.f32 0.0, %v3022
    %v3024 = vpop.f32.mrf.mxu0
    %v3025 = vpop.f32.mrf.mxu0
    %v3026 = vadd.f32 0.0, %v3025
    %v3027 = vpop.f32.mrf.mxu0
    %3028 = vmatprep.mubr.bf16.mxu0 0
    %3029 = vmatmul.mubr.bf16.gmra.mxu0 %v2980
    %v3030 = vpop.f32.mrf.mxu0
    %v3031 = vadd.f32 0.0, %v3030
    %v3032 = vpop.f32.mrf.mxu0
    %v3033 = vpop.f32.mrf.mxu0
    %v3034 = vadd.f32 0.0, %v3033
    %v3035 = vpop.f32.mrf.mxu0
    %3036 = vmatprep.mubr.bf16.mxu0 0
    %3037 = vmatmul.mubr.bf16.gmra.mxu0 %v2983
    %v3038 = vpop.f32.mrf.mxu0
    %v3039 = vadd.f32 0.0, %v3038
    %v3040 = vpop.f32.mrf.mxu0
    %v3041 = vpop.f32.mrf.mxu0
    %v3042 = vadd.f32 0.0, %v3041
    %v3043 = vpop.f32.mrf.mxu0
    %3044 = vmatprep.mubr.bf16.mxu0 0
    %3045 = vmatmul.mubr.bf16.gmra.mxu0 %v2986
    %v3046 = vpop.f32.mrf.mxu0
    %v3047 = vadd.f32 0.0, %v3046
    %v3048 = vpop.f32.mrf.mxu0
    %v3049 = vpop.f32.mrf.mxu0
    %v3050 = vpop.f32.mrf.mxu0
    %3051 = vdwg.mxu0
    %v3052 = vadd.f32 %v2902, %v3023
    %v3053 = vadd.f32 %v2903, %v3026
    %v3054 = vadd.f32 %v2904, %v3031
    %v3055 = vadd.f32 %v2905, %v3034
    %v3056 = vadd.f32 %v2906, %v3039
    %v3057 = vadd.f32 %v2907, %v3042
    %v3058 = vadd.f32 %v2908, %v3047
    %s3059 = scalar_lea.vmem %s5, 192
    %v3060 = vld [vmem:[%s3059] sm:$0xf]
    %v3061 = vld [vmem:[%s3059 + $0x4] sm:$0xf]
    %v3062 = vld [vmem:[%s3059 + $0x8] sm:$0xf]
    %v3063 = vld [vmem:[%s3059 + $0xc] sm:$0xf]
    %v3064 = vld [vmem:[%s3059 + $0x10] sm:$0xf]
    %v3065 = vld [vmem:[%s3059 + $0x14] sm:$0xf]
    %v3066 = vld [vmem:[%s3059 + $0x18] sm:$0xf]
    %v3067 = vld [vmem:[%s3059 + $0x1c] sm:$0xf]
    %v3068 = vld [vmem:[%s3059 + $0x20] sm:$0xf]
    %v3069 = vld [vmem:[%s3059 + $0x24] sm:$0xf]
    %v3070 = vld [vmem:[%s3059 + $0x28] sm:$0xf]
    %v3071 = vld [vmem:[%s3059 + $0x2c] sm:$0xf]
    %v3072 = vpack.c.bf16 %v2462, %v2461
    %v3073 = vpack.c.bf16 %v2464, %v2463
    %v3074 = vpack.c.bf16 %v2466, %v2465
    %v3075 = vpack.c.bf16 %v2460, %v2460
    %v3088 = vunpack.c.l.b16 %v3060
    %v3089 = vunpack.c.l.b16 %v3061
    %v3090 = vunpack.c.l.b16 %v3062
    %v3091 = vunpack.c.l.b16 %v3063
    %v3092 = vunpack.c.l.b16 %v3064
    %v3093 = vunpack.c.l.b16 %v3065
    %v3094 = vunpack.c.l.b16 %v3066
    %v3095 = vunpack.c.l.b16 %v3067
    %v3096 = vunpack.c.l.b16 %v3068
    %v3097 = vunpack.c.l.b16 %v3069
    %v3098 = vunpack.c.l.b16 %v3070
    %v3099 = vunpack.c.l.b16 %v3071
    %v3100 = vpack.c.b16 %v3089, %v3088
    %v3101 = vpack.c.b16 %v3091, %v3090
    %v3102 = vpack.c.b16 %v3093, %v3092
    %v3103 = vpack.c.b16 %v3095, %v3094
    %v3104 = vpack.c.b16 %v3097, %v3096
    %v3105 = vpack.c.b16 %v3099, %v3098
    %v3113 = vsel %vm1387, %v3072, 0
    %v3116 = vsel %vm1387, %v3073, 0
    %v3119 = vsel %vm1387, %v3074, 0
    %v3122 = vsel %vm1387, %v3075, 0
    %3124 = vmatprep.subr.bf16.mxu0 0
    %3125 = vmatpush1.bf16.msra.mxu0 0
    %3126 = vmatprep.subr.bf16.mxu0 0
    %3127 = vmatpush1.bf16.msra.mxu0 0
    %3128 = vmatprep.subr.bf16.mxu0 0
    %3129 = vmatpush1.bf16.msra.mxu0 %v3105
    %3130 = vmatprep.subr.bf16.mxu0 0
    %3131 = vmatpush1.bf16.msra.mxu0 %v3104
    %3132 = vmatprep.subr.bf16.mxu0 0
    %3133 = vmatpush1.bf16.msra.mxu0 %v3103
    %3134 = vmatprep.subr.bf16.mxu0 0
    %3135 = vmatpush1.bf16.msra.mxu0 %v3102
    %3136 = vmatprep.subr.bf16.mxu0 0
    %3137 = vmatpush1.bf16.msra.mxu0 %v3101
    %3138 = vmatprep.subr.bf16.mxu0 0
    %3139 = vmatpush1.bf16.msra.mxu0 %v3100
    %3140 = vmatprep.subr.bf16.mxu0 0
    %3141 = vmatpush2.bf16.msra.mxu0 0
    %3142 = vmatprep.subr.bf16.mxu0 0
    %3143 = vmatpush2.bf16.msra.mxu0 0
    %3144 = vmatprep.subr.bf16.mxu0 0
    %3145 = vmatpush2.bf16.msra.mxu0 0
    %3146 = vmatprep.subr.bf16.mxu0 0
    %3147 = vmatpush2.bf16.msra.mxu0 0
    %3148 = vmatprep.subr.bf16.mxu0 0
    %3149 = vmatpush2.bf16.msra.mxu0 0
    %3150 = vmatprep.subr.bf16.mxu0 0
    %3151 = vmatpush2.bf16.msra.mxu0 0
    %3152 = vmatprep.subr.bf16.mxu0 0
    %3153 = vmatpush2.bf16.msra.mxu0 0
    %3154 = vmatprep.subr.bf16.mxu0 0
    %3155 = vmatpush2.bf16.msra.mxu0 0
    %3156 = vmatprep.mubr.bf16.mxu0 0
    %3157 = vmatmul.mubr.bf16.gmra.mxu0 %v3113
    %v3158 = vpop.f32.mrf.mxu0
    %v3159 = vadd.f32 0.0, %v3158
    %v3160 = vpop.f32.mrf.mxu0
    %v3161 = vpop.f32.mrf.mxu0
    %v3162 = vadd.f32 0.0, %v3161
    %v3163 = vpop.f32.mrf.mxu0
    %3164 = vmatprep.mubr.bf16.mxu0 0
    %3165 = vmatmul.mubr.bf16.gmra.mxu0 %v3116
    %v3166 = vpop.f32.mrf.mxu0
    %v3167 = vadd.f32 0.0, %v3166
    %v3168 = vpop.f32.mrf.mxu0
    %v3169 = vpop.f32.mrf.mxu0
    %v3170 = vadd.f32 0.0, %v3169
    %v3171 = vpop.f32.mrf.mxu0
    %3172 = vmatprep.mubr.bf16.mxu0 0
    %3173 = vmatmul.mubr.bf16.gmra.mxu0 %v3119
    %v3174 = vpop.f32.mrf.mxu0
    %v3175 = vadd.f32 0.0, %v3174
    %v3176 = vpop.f32.mrf.mxu0
    %v3177 = vpop.f32.mrf.mxu0
    %v3178 = vadd.f32 0.0, %v3177
    %v3179 = vpop.f32.mrf.mxu0
    %3180 = vmatprep.mubr.bf16.mxu0 0
    %3181 = vmatmul.mubr.bf16.gmra.mxu0 %v3122
    %v3182 = vpop.f32.mrf.mxu0
    %v3183 = vadd.f32 0.0, %v3182
    %v3184 = vpop.f32.mrf.mxu0
    %v3185 = vpop.f32.mrf.mxu0
    %v3186 = vpop.f32.mrf.mxu0
    %3187 = vdwg.mxu0
    %v3188 = vadd.f32 %v3052, %v3159
    %v3189 = vadd.f32 %v3053, %v3162
    %v3190 = vadd.f32 %v3054, %v3167
    %v3191 = vadd.f32 %v3055, %v3170
    %v3192 = vadd.f32 %v3056, %v3175
    %v3193 = vadd.f32 %v3057, %v3178
    %v3194 = vadd.f32 %v3058, %v3183
    %v3195 = vrot.slane %v3188, 2
    %v3196 = vrot.slane %v3189, 2
    %v3197 = vrot.slane %v3190, 2
    %v3198 = vrot.slane %v3191, 2
    %v3199 = vrot.slane %v3192, 2
    %v3200 = vrot.slane %v3193, 2
    %v3201 = vrot.slane %v3194, 2
    %v3202 = vsel %vm598, %v3200, %v3201
    %v3203 = vsel %vm598, %v3199, %v3200
    %v3204 = vsel %vm598, %v3198, %v3199
    %v3205 = vsel %vm598, %v3197, %v3198
    %v3206 = vsel %vm598, %v3196, %v3197
    %v3207 = vsel %vm598, %v3195, %v3196
    %v3208 = vsel %vm598, %v3201, %v3195
    %v3209 = vmax.f32 %v3188, %v3207
    %v3210 = vmax.f32 %v3189, %v3206
    %v3211 = vmax.f32 %v3190, %v3205
    %v3212 = vmax.f32 %v3191, %v3204
    %v3213 = vmax.f32 %v3192, %v3203
    %v3214 = vmax.f32 %v3193, %v3202
    %v3215 = vmax.f32 %v3194, %v3208
    %v3216 = vld [vmem:[%s9] sm:$0xff]
    %v3217 = vld [vmem:[%s9 + $0x8] sm:$0xff]
    %v3218 = vld [vmem:[%s9 + $0x10] sm:$0xff]
    %v3219 = vld [vmem:[%s9 + $0x18] sm:$0xff]
    %v3220 = vld [vmem:[%s9 + $0x20] sm:$0xff]
    %v3221 = vld [vmem:[%s9 + $0x28] sm:$0xff]
    %v3222 = vld [vmem:[%s9 + $0x30] sm:$0xff]
    %v3223 = vld [vmem:[%s9 + $0x38] sm:$0xff]
    %v3225 = vsel %vm1092, %v3209, 0
    %v3228 = vsel %vm1092, %v3210, 0
    %v3231 = vsel %vm1092, %v3211, 0
    %v3234 = vsel %vm1092, %v3212, 0
    %v3237 = vsel %vm1092, %v3213, 0
    %v3240 = vsel %vm1092, %v3214, 0
    %v3243 = vsel %vm1092, %v3215, 0
    %3245 = vmatprep.subr.mxu0 0.0
    %3246 = vmatpush1.msra.mxu0 0.0
    %3247 = vmatprep.subr.mxu0 0.0
    %3248 = vmatpush1.msra.mxu0 0.0
    %3249 = vmatprep.subr.mxu0 0.0
    %3250 = vmatpush1.msra.mxu0 0.0
    %3251 = vmatprep.subr.mxu0 0.0
    %3252 = vmatpush1.msra.mxu0 0.0
    %3253 = vmatprep.subr.mxu0 0.0
    %3254 = vmatpush1.msra.mxu0 0.0
    %3255 = vmatprep.subr.mxu0 0.0
    %3256 = vmatpush1.msra.mxu0 0.0
    %3257 = vmatprep.subr.mxu0 0.0
    %3258 = vmatpush1.msra.mxu0 0.0
    %3259 = vmatprep.subr.mxu0 0.0
    %3260 = vmatpush1.msra.mxu0 0.0
    %3261 = vmatprep.subr.mxu0 0.0
    %3262 = vmatpush1.msra.mxu0 %v3223
    %3263 = vmatprep.subr.mxu0 0.0
    %3264 = vmatpush1.msra.mxu0 %v3222
    %3265 = vmatprep.subr.mxu0 0.0
    %3266 = vmatpush1.msra.mxu0 %v3221
    %3267 = vmatprep.subr.mxu0 0.0
    %3268 = vmatpush1.msra.mxu0 %v3220
    %3269 = vmatprep.subr.mxu0 0.0
    %3270 = vmatpush1.msra.mxu0 %v3219
    %3271 = vmatprep.subr.mxu0 0.0
    %3272 = vmatpush1.msra.mxu0 %v3218
    %3273 = vmatprep.subr.mxu0 0.0
    %3274 = vmatpush1.msra.mxu0 %v3217
    %3275 = vmatprep.subr.mxu0 0.0
    %3276 = vmatpush1.msra.mxu0 %v3216
    %3277 = vmatprep.subr.mxu0 0.0
    %3278 = vmatpush2.msra.mxu0 0.0
    %3279 = vmatprep.subr.mxu0 0.0
    %3280 = vmatpush2.msra.mxu0 0.0
    %3281 = vmatprep.subr.mxu0 0.0
    %3282 = vmatpush2.msra.mxu0 0.0
    %3283 = vmatprep.subr.mxu0 0.0
    %3284 = vmatpush2.msra.mxu0 0.0
    %3285 = vmatprep.subr.mxu0 0.0
    %3286 = vmatpush2.msra.mxu0 0.0
    %3287 = vmatprep.subr.mxu0 0.0
    %3288 = vmatpush2.msra.mxu0 0.0
    %3289 = vmatprep.subr.mxu0 0.0
    %3290 = vmatpush2.msra.mxu0 0.0
    %3291 = vmatprep.subr.mxu0 0.0
    %3292 = vmatpush2.msra.mxu0 0.0
    %3293 = vmatprep.subr.mxu0 0.0
    %3294 = vmatpush2.msra.mxu0 0.0
    %3295 = vmatprep.subr.mxu0 0.0
    %3296 = vmatpush2.msra.mxu0 0.0
    %3297 = vmatprep.subr.mxu0 0.0
    %3298 = vmatpush2.msra.mxu0 0.0
    %3299 = vmatprep.subr.mxu0 0.0
    %3300 = vmatpush2.msra.mxu0 0.0
    %3301 = vmatprep.subr.mxu0 0.0
    %3302 = vmatpush2.msra.mxu0 0.0
    %3303 = vmatprep.subr.mxu0 0.0
    %3304 = vmatpush2.msra.mxu0 0.0
    %3305 = vmatprep.subr.mxu0 0.0
    %3306 = vmatpush2.msra.mxu0 0.0
    %3307 = vmatprep.subr.mxu0 0.0
    %3308 = vmatpush2.msra.mxu0 0.0
    %3309 = vmatprep.mubr.f32.mxu0 0.0
    %3310 = vmatmul.mubr.f32.gmra.mxu0 %v3225
    %v3311 = vpop.f32.mrf.mxu0
    %v3312 = vadd.f32 0.0, %v3311
    %v3313 = vpop.f32.mrf.mxu0
    %3314 = vmatprep.mubr.f32.mxu0 0.0
    %3315 = vmatmul.mubr.f32.gmra.mxu0 %v3228
    %v3316 = vpop.f32.mrf.mxu0
    %v3317 = vadd.f32 0.0, %v3316
    %v3318 = vpop.f32.mrf.mxu0
    %3319 = vmatprep.mubr.f32.mxu0 0.0
    %3320 = vmatmul.mubr.f32.gmra.mxu0 %v3231
    %v3321 = vpop.f32.mrf.mxu0
    %v3322 = vadd.f32 0.0, %v3321
    %v3323 = vpop.f32.mrf.mxu0
    %3324 = vmatprep.mubr.f32.mxu0 0.0
    %3325 = vmatmul.mubr.f32.gmra.mxu0 %v3234
    %v3326 = vpop.f32.mrf.mxu0
    %v3327 = vadd.f32 0.0, %v3326
    %v3328 = vpop.f32.mrf.mxu0
    %3329 = vmatprep.mubr.f32.mxu0 0.0
    %3330 = vmatmul.mubr.f32.gmra.mxu0 %v3237
    %v3331 = vpop.f32.mrf.mxu0
    %v3332 = vadd.f32 0.0, %v3331
    %v3333 = vpop.f32.mrf.mxu0
    %3334 = vmatprep.mubr.f32.mxu0 0.0
    %3335 = vmatmul.mubr.f32.gmra.mxu0 %v3240
    %v3336 = vpop.f32.mrf.mxu0
    %v3337 = vadd.f32 0.0, %v3336
    %v3338 = vpop.f32.mrf.mxu0
    %3339 = vmatprep.mubr.f32.mxu0 0.0
    %3340 = vmatmul.mubr.f32.gmra.mxu0 %v3243
    %v3341 = vpop.f32.mrf.mxu0
    %v3342 = vadd.f32 0.0, %v3341
    %v3343 = vpop.f32.mrf.mxu0
    %3344 = vdwg.mxu0
    %v3345 = vld [vmem:[%s10] sm:$0xff]
    %v3346 = vld [vmem:[%s10 + $0x8] sm:$0xff]
    %v3347 = vld [vmem:[%s10 + $0x10] sm:$0xff]
    %v3348 = vld [vmem:[%s10 + $0x18] sm:$0xff]
    %v3349 = vld [vmem:[%s10 + $0x20] sm:$0xff]
    %v3350 = vld [vmem:[%s10 + $0x28] sm:$0xff]
    %v3351 = vld [vmem:[%s10 + $0x30] sm:$0xff]
    %v3352 = vld [vmem:[%s10 + $0x38] sm:$0xff]
    %3353 = vmatprep.subr.mxu0 0.0
    %3354 = vmatpush1.msra.mxu0 0.0
    %3355 = vmatprep.subr.mxu0 0.0
    %3356 = vmatpush1.msra.mxu0 0.0
    %3357 = vmatprep.subr.mxu0 0.0
    %3358 = vmatpush1.msra.mxu0 0.0
    %3359 = vmatprep.subr.mxu0 0.0
    %3360 = vmatpush1.msra.mxu0 0.0
    %3361 = vmatprep.subr.mxu0 0.0
    %3362 = vmatpush1.msra.mxu0 0.0
    %3363 = vmatprep.subr.mxu0 0.0
    %3364 = vmatpush1.msra.mxu0 0.0
    %3365 = vmatprep.subr.mxu0 0.0
    %3366 = vmatpush1.msra.mxu0 0.0
    %3367 = vmatprep.subr.mxu0 0.0
    %3368 = vmatpush1.msra.mxu0 0.0
    %3369 = vmatprep.subr.mxu0 0.0
    %3370 = vmatpush1.msra.mxu0 %v3352
    %3371 = vmatprep.subr.mxu0 0.0
    %3372 = vmatpush1.msra.mxu0 %v3351
    %3373 = vmatprep.subr.mxu0 0.0
    %3374 = vmatpush1.msra.mxu0 %v3350
    %3375 = vmatprep.subr.mxu0 0.0
    %3376 = vmatpush1.msra.mxu0 %v3349
    %3377 = vmatprep.subr.mxu0 0.0
    %3378 = vmatpush1.msra.mxu0 %v3348
    %3379 = vmatprep.subr.mxu0 0.0
    %3380 = vmatpush1.msra.mxu0 %v3347
    %3381 = vmatprep.subr.mxu0 0.0
    %3382 = vmatpush1.msra.mxu0 %v3346
    %3383 = vmatprep.subr.mxu0 0.0
    %3384 = vmatpush1.msra.mxu0 %v3345
    %3385 = vmatprep.subr.mxu0 0.0
    %3386 = vmatpush2.msra.mxu0 0.0
    %3387 = vmatprep.subr.mxu0 0.0
    %3388 = vmatpush2.msra.mxu0 0.0
    %3389 = vmatprep.subr.mxu0 0.0
    %3390 = vmatpush2.msra.mxu0 0.0
    %3391 = vmatprep.subr.mxu0 0.0
    %3392 = vmatpush2.msra.mxu0 0.0
    %3393 = vmatprep.subr.mxu0 0.0
    %3394 = vmatpush2.msra.mxu0 0.0
    %3395 = vmatprep.subr.mxu0 0.0
    %3396 = vmatpush2.msra.mxu0 0.0
    %3397 = vmatprep.subr.mxu0 0.0
    %3398 = vmatpush2.msra.mxu0 0.0
    %3399 = vmatprep.subr.mxu0 0.0
    %3400 = vmatpush2.msra.mxu0 0.0
    %3401 = vmatprep.subr.mxu0 0.0
    %3402 = vmatpush2.msra.mxu0 0.0
    %3403 = vmatprep.subr.mxu0 0.0
    %3404 = vmatpush2.msra.mxu0 0.0
    %3405 = vmatprep.subr.mxu0 0.0
    %3406 = vmatpush2.msra.mxu0 0.0
    %3407 = vmatprep.subr.mxu0 0.0
    %3408 = vmatpush2.msra.mxu0 0.0
    %3409 = vmatprep.subr.mxu0 0.0
    %3410 = vmatpush2.msra.mxu0 0.0
    %3411 = vmatprep.subr.mxu0 0.0
    %3412 = vmatpush2.msra.mxu0 0.0
    %3413 = vmatprep.subr.mxu0 0.0
    %3414 = vmatpush2.msra.mxu0 0.0
    %3415 = vmatprep.subr.mxu0 0.0
    %3416 = vmatpush2.msra.mxu0 0.0
    %3417 = vmatprep.mubr.f32.mxu0 0.0
    %3418 = vmatmul.mubr.f32.gmra.mxu0 %v3225
    %v3419 = vpop.f32.mrf.mxu0
    %v3420 = vadd.f32 0.0, %v3419
    %v3421 = vpop.f32.mrf.mxu0
    %3422 = vmatprep.mubr.f32.mxu0 0.0
    %3423 = vmatmul.mubr.f32.gmra.mxu0 %v3228
    %v3424 = vpop.f32.mrf.mxu0
    %v3425 = vadd.f32 0.0, %v3424
    %v3426 = vpop.f32.mrf.mxu0
    %3427 = vmatprep.mubr.f32.mxu0 0.0
    %3428 = vmatmul.mubr.f32.gmra.mxu0 %v3231
    %v3429 = vpop.f32.mrf.mxu0
    %v3430 = vadd.f32 0.0, %v3429
    %v3431 = vpop.f32.mrf.mxu0
    %3432 = vmatprep.mubr.f32.mxu0 0.0
    %3433 = vmatmul.mubr.f32.gmra.mxu0 %v3234
    %v3434 = vpop.f32.mrf.mxu0
    %v3435 = vadd.f32 0.0, %v3434
    %v3436 = vpop.f32.mrf.mxu0
    %3437 = vmatprep.mubr.f32.mxu0 0.0
    %3438 = vmatmul.mubr.f32.gmra.mxu0 %v3237
    %v3439 = vpop.f32.mrf.mxu0
    %v3440 = vadd.f32 0.0, %v3439
    %v3441 = vpop.f32.mrf.mxu0
    %3442 = vmatprep.mubr.f32.mxu0 0.0
    %3443 = vmatmul.mubr.f32.gmra.mxu0 %v3240
    %v3444 = vpop.f32.mrf.mxu0
    %v3445 = vadd.f32 0.0, %v3444
    %v3446 = vpop.f32.mrf.mxu0
    %3447 = vmatprep.mubr.f32.mxu0 0.0
    %3448 = vmatmul.mubr.f32.gmra.mxu0 %v3243
    %v3449 = vpop.f32.mrf.mxu0
    %v3450 = vadd.f32 0.0, %v3449
    %v3451 = vpop.f32.mrf.mxu0
    %3452 = vdwg.mxu0
    %v3453 = vmax.f32 %v3312, %v3420
    %v3454 = vmax.f32 %v3317, %v3425
    %v3455 = vmax.f32 %v3322, %v3430
    %v3456 = vmax.f32 %v3327, %v3435
    %v3457 = vmax.f32 %v3332, %v3440
    %v3458 = vmax.f32 %v3337, %v3445
    %v3459 = vmax.f32 %v3342, %v3450
    %3461 = vset.pattern.permute.xlu0 0
    %3462 = vperm.xlu0 %3461, %v287
    %v3463 = vpop.permute.xlu0 %3462
    %3466 = vset.pattern.permute.xlu0 0
    %3467 = vperm.xlu0 %3466, %v288
    %v3468 = vpop.permute.xlu0 %3467
    %3471 = vset.pattern.permute.xlu0 0
    %3472 = vperm.xlu0 %3471, %v289
    %v3473 = vpop.permute.xlu0 %3472
    %3476 = vset.pattern.permute.xlu0 0
    %3477 = vperm.xlu0 %3476, %v290
    %v3478 = vpop.permute.xlu0 %3477
    %3481 = vset.pattern.permute.xlu0 0
    %3482 = vperm.xlu0 %3481, %v291
    %v3483 = vpop.permute.xlu0 %3482
    %3486 = vset.pattern.permute.xlu0 0
    %3487 = vperm.xlu0 %3486, %v292
    %v3488 = vpop.permute.xlu0 %3487
    %3491 = vset.pattern.permute.xlu0 0
    %3492 = vperm.xlu0 %3491, %v293
    %v3493 = vpop.permute.xlu0 %3492
    %v3495 = vmul.f32 %v3453, %v3463
    %v3496 = vmul.f32 %v3454, %v3468
    %v3497 = vmul.f32 %v3455, %v3473
    %v3498 = vmul.f32 %v3456, %v3478
    %v3499 = vmul.f32 %v3457, %v3483
    %v3500 = vmul.f32 %v3458, %v3488
    %v3501 = vmul.f32 %v3459, %v3493
    %vm3502 = vcmask 261120
    %v3503 = vsel %vm3502, %v3495, 0.0
    %v3504 = vsel %vm3502, %v3496, 0.0
    %v3505 = vadd.f32 %v3503, %v3504
    %v3506 = vsel %vm3502, %v3497, 0.0
    %v3507 = vadd.f32 %v3505, %v3506
    %v3508 = vsel %vm3502, %v3498, 0.0
    %v3509 = vadd.f32 %v3507, %v3508
    %v3510 = vsel %vm3502, %v3499, 0.0
    %v3511 = vadd.f32 %v3509, %v3510
    %v3512 = vsel %vm3502, %v3500, 0.0
    %v3513 = vadd.f32 %v3511, %v3512
    %v3514 = vsel %vm3502, %v3501, 0.0
    %v3515 = vadd.f32 %v3513, %v3514
    %v3516 = vrot.slane %v3515, 4
    %v3517 = vadd.f32 %v3515, %v3516
    %v3518 = vrot.slane %v3517, 2
    %v3519 = vadd.f32 %v3517, %v3518
    %v3520 = vrot.slane %v3519, 1
    %v3521 = vadd.f32 %v3519, %v3520
    %v3522 = vld [vmem:[#allocation11] sm:$0xff]
    %v3523 = vld [vmem:[#allocation11 + $0x8] sm:$0xff]
    %v3524 = vld [vmem:[#allocation11 + $0x10] sm:$0xff]
    %v3525 = vld [vmem:[#allocation11 + $0x18] sm:$0xff]
    %v3527 = vsel %vm3502, %v3521, 0
    %3529 = vmatprep.subr.mxu0 0.0
    %3530 = vmatpush1.msra.mxu0 0.0
    %3531 = vmatprep.subr.mxu0 0.0
    %3532 = vmatpush1.msra.mxu0 0.0
    %3533 = vmatprep.subr.mxu0 0.0
    %3534 = vmatpush1.msra.mxu0 0.0
    %3535 = vmatprep.subr.mxu0 0.0
    %3536 = vmatpush1.msra.mxu0 0.0
    %3537 = vmatprep.subr.mxu0 0.0
    %3538 = vmatpush1.msra.mxu0 0.0
    %3539 = vmatprep.subr.mxu0 0.0
    %3540 = vmatpush1.msra.mxu0 0.0
    %3541 = vmatprep.subr.mxu0 0.0
    %3542 = vmatpush1.msra.mxu0 0.0
    %3543 = vmatprep.subr.mxu0 0.0
    %3544 = vmatpush1.msra.mxu0 0.0
    %3545 = vmatprep.subr.mxu0 0.0
    %3546 = vmatpush1.msra.mxu0 0.0
    %3547 = vmatprep.subr.mxu0 0.0
    %3548 = vmatpush1.msra.mxu0 0.0
    %3549 = vmatprep.subr.mxu0 0.0
    %3550 = vmatpush1.msra.mxu0 0.0
    %3551 = vmatprep.subr.mxu0 0.0
    %3552 = vmatpush1.msra.mxu0 0.0
    %3553 = vmatprep.subr.mxu0 0.0
    %3554 = vmatpush1.msra.mxu0 %v3525
    %3555 = vmatprep.subr.mxu0 0.0
    %3556 = vmatpush1.msra.mxu0 %v3524
    %3557 = vmatprep.subr.mxu0 0.0
    %3558 = vmatpush1.msra.mxu0 %v3523
    %3559 = vmatprep.subr.mxu0 0.0
    %3560 = vmatpush1.msra.mxu0 %v3522
    %3561 = vmatprep.subr.mxu0 0.0
    %3562 = vmatpush2.msra.mxu0 0.0
    %3563 = vmatprep.subr.mxu0 0.0
    %3564 = vmatpush2.msra.mxu0 0.0
    %3565 = vmatprep.subr.mxu0 0.0
    %3566 = vmatpush2.msra.mxu0 0.0
    %3567 = vmatprep.subr.mxu0 0.0
    %3568 = vmatpush2.msra.mxu0 0.0
    %3569 = vmatprep.subr.mxu0 0.0
    %3570 = vmatpush2.msra.mxu0 0.0
    %3571 = vmatprep.subr.mxu0 0.0
    %3572 = vmatpush2.msra.mxu0 0.0
    %3573 = vmatprep.subr.mxu0 0.0
    %3574 = vmatpush2.msra.mxu0 0.0
    %3575 = vmatprep.subr.mxu0 0.0
    %3576 = vmatpush2.msra.mxu0 0.0
    %3577 = vmatprep.subr.mxu0 0.0
    %3578 = vmatpush2.msra.mxu0 0.0
    %3579 = vmatprep.subr.mxu0 0.0
    %3580 = vmatpush2.msra.mxu0 0.0
    %3581 = vmatprep.subr.mxu0 0.0
    %3582 = vmatpush2.msra.mxu0 0.0
    %3583 = vmatprep.subr.mxu0 0.0
    %3584 = vmatpush2.msra.mxu0 0.0
    %3585 = vmatprep.subr.mxu0 0.0
    %3586 = vmatpush2.msra.mxu0 0.0
    %3587 = vmatprep.subr.mxu0 0.0
    %3588 = vmatpush2.msra.mxu0 0.0
    %3589 = vmatprep.subr.mxu0 0.0
    %3590 = vmatpush2.msra.mxu0 0.0
    %3591 = vmatprep.subr.mxu0 0.0
    %3592 = vmatpush2.msra.mxu0 0.0
    %3593 = vmatprep.mubr.f32.mxu0 0.0
    %3594 = vmatmul.mubr.f32.gmra.mxu0 %v3527
    %v3595 = vpop.f32.mrf.mxu0
    %v3596 = vadd.f32 0.0, %v3595
    %v3597 = vpop.f32.mrf.mxu0
    %3598 = vdwg.mxu0
    %v3599 = vmul.f32 %v3495, %v3453
    %v3600 = vmul.f32 %v3496, %v3454
    %v3601 = vmul.f32 %v3497, %v3455
    %v3602 = vmul.f32 %v3498, %v3456
    %v3603 = vmul.f32 %v3499, %v3457
    %v3604 = vmul.f32 %v3500, %v3458
    %v3605 = vmul.f32 %v3501, %v3459
    %v3606 = vsel %vm3502, %v3599, 0.0
    %v3607 = vsel %vm3502, %v3600, 0.0
    %v3608 = vadd.f32 %v3606, %v3607
    %v3609 = vsel %vm3502, %v3601, 0.0
    %v3610 = vadd.f32 %v3608, %v3609
    %v3611 = vsel %vm3502, %v3602, 0.0
    %v3612 = vadd.f32 %v3610, %v3611
    %v3613 = vsel %vm3502, %v3603, 0.0
    %v3614 = vadd.f32 %v3612, %v3613
    %v3615 = vsel %vm3502, %v3604, 0.0
    %v3616 = vadd.f32 %v3614, %v3615
    %v3617 = vsel %vm3502, %v3605, 0.0
    %v3618 = vadd.f32 %v3616, %v3617
    %v3619 = vrot.slane %v3618, 4
    %v3620 = vadd.f32 %v3618, %v3619
    %v3621 = vrot.slane %v3620, 2
    %v3622 = vadd.f32 %v3620, %v3621
    %v3623 = vrot.slane %v3622, 1
    %v3624 = vadd.f32 %v3622, %v3623
    %v3626 = vsel %vm3502, %v3624, 0
    %3628 = vmatprep.subr.mxu0 0.0
    %3629 = vmatpush1.msra.mxu0 0.0
    %3630 = vmatprep.subr.mxu0 0.0
    %3631 = vmatpush1.msra.mxu0 0.0
    %3632 = vmatprep.subr.mxu0 0.0
    %3633 = vmatpush1.msra.mxu0 0.0
    %3634 = vmatprep.subr.mxu0 0.0
    %3635 = vmatpush1.msra.mxu0 0.0
    %3636 = vmatprep.subr.mxu0 0.0
    %3637 = vmatpush1.msra.mxu0 0.0
    %3638 = vmatprep.subr.mxu0 0.0
    %3639 = vmatpush1.msra.mxu0 0.0
    %3640 = vmatprep.subr.mxu0 0.0
    %3641 = vmatpush1.msra.mxu0 0.0
    %3642 = vmatprep.subr.mxu0 0.0
    %3643 = vmatpush1.msra.mxu0 0.0
    %3644 = vmatprep.subr.mxu0 0.0
    %3645 = vmatpush1.msra.mxu0 0.0
    %3646 = vmatprep.subr.mxu0 0.0
    %3647 = vmatpush1.msra.mxu0 0.0
    %3648 = vmatprep.subr.mxu0 0.0
    %3649 = vmatpush1.msra.mxu0 0.0
    %3650 = vmatprep.subr.mxu0 0.0
    %3651 = vmatpush1.msra.mxu0 0.0
    %3652 = vmatprep.subr.mxu0 0.0
    %3653 = vmatpush1.msra.mxu0 %v3525
    %3654 = vmatprep.subr.mxu0 0.0
    %3655 = vmatpush1.msra.mxu0 %v3524
    %3656 = vmatprep.subr.mxu0 0.0
    %3657 = vmatpush1.msra.mxu0 %v3523
    %3658 = vmatprep.subr.mxu0 0.0
    %3659 = vmatpush1.msra.mxu0 %v3522
    %3660 = vmatprep.subr.mxu0 0.0
    %3661 = vmatpush2.msra.mxu0 0.0
    %3662 = vmatprep.subr.mxu0 0.0
    %3663 = vmatpush2.msra.mxu0 0.0
    %3664 = vmatprep.subr.mxu0 0.0
    %3665 = vmatpush2.msra.mxu0 0.0
    %3666 = vmatprep.subr.mxu0 0.0
    %3667 = vmatpush2.msra.mxu0 0.0
    %3668 = vmatprep.subr.mxu0 0.0
    %3669 = vmatpush2.msra.mxu0 0.0
    %3670 = vmatprep.subr.mxu0 0.0
    %3671 = vmatpush2.msra.mxu0 0.0
    %3672 = vmatprep.subr.mxu0 0.0
    %3673 = vmatpush2.msra.mxu0 0.0
    %3674 = vmatprep.subr.mxu0 0.0
    %3675 = vmatpush2.msra.mxu0 0.0
    %3676 = vmatprep.subr.mxu0 0.0
    %3677 = vmatpush2.msra.mxu0 0.0
    %3678 = vmatprep.subr.mxu0 0.0
    %3679 = vmatpush2.msra.mxu0 0.0
    %3680 = vmatprep.subr.mxu0 0.0
    %3681 = vmatpush2.msra.mxu0 0.0
    %3682 = vmatprep.subr.mxu0 0.0
    %3683 = vmatpush2.msra.mxu0 0.0
    %3684 = vmatprep.subr.mxu0 0.0
    %3685 = vmatpush2.msra.mxu0 0.0
    %3686 = vmatprep.subr.mxu0 0.0
    %3687 = vmatpush2.msra.mxu0 0.0
    %3688 = vmatprep.subr.mxu0 0.0
    %3689 = vmatpush2.msra.mxu0 0.0
    %3690 = vmatprep.subr.mxu0 0.0
    %3691 = vmatpush2.msra.mxu0 0.0
    %3692 = vmatprep.mubr.f32.mxu0 0.0
    %3693 = vmatmul.mubr.f32.gmra.mxu0 %v3626
    %v3694 = vpop.f32.mrf.mxu0
    %v3695 = vadd.f32 0.0, %v3694
    %v3696 = vpop.f32.mrf.mxu0
    %3697 = vdwg.mxu0
    %v3698 = vmul.f32 %v3596, 0.03125
    %v3699 = vmul.f32 %v3695, 0.03125
    %v3700 = vmul.f32 %v3698, %v3698
    %v3701 = vsub.f32 %v3699, %v3700
    %v3702 = vld [vmem:[#allocation19] sm:$0x1]
    %v3703 = vadd.f32 %v3701, 1e-05
    %v3704 = vrsqrt.pop %v3703
    %v3705 = vmul.f32 %v3702, %v3704
    %v3706 = vld [vmem:[#allocation20] sm:$0x1]
    %v3707 = vmul.f32 %v3698, %v3705
    %v3708 = vsub.f32 %v3706, %v3707
    %v3710 = vlaneseq
    %v3711 = vshrl.u32 %v3710, 7
    %v3712 = vsub.s32 0, %v3711
    %v3713 = vrot.slane %v3705, %v3712
    %v3715 = vmul.f32 %v3453, %v3713
    %v3716 = vmul.f32 %v3454, %v3713
    %v3717 = vmul.f32 %v3455, %v3713
    %v3718 = vmul.f32 %v3456, %v3713
    %v3719 = vmul.f32 %v3457, %v3713
    %v3720 = vmul.f32 %v3458, %v3713
    %v3721 = vmul.f32 %v3459, %v3713
    %v3723 = vlaneseq
    %v3724 = vshrl.u32 %v3723, 7
    %v3725 = vsub.s32 0, %v3724
    %v3726 = vrot.slane %v3708, %v3725
    %v3728 = vadd.f32 %v3715, %v3726
    %v3729 = vadd.f32 %v3716, %v3726
    %v3730 = vadd.f32 %v3717, %v3726
    %v3731 = vadd.f32 %v3718, %v3726
    %v3732 = vadd.f32 %v3719, %v3726
    %v3733 = vadd.f32 %v3720, %v3726
    %v3734 = vadd.f32 %v3721, %v3726
    %v3735 = vadd.f32 %v3728, 0.0
    %v3736 = vadd.f32 %v3729, 0.0
    %v3737 = vadd.f32 %v3730, 0.0
    %v3738 = vadd.f32 %v3731, 0.0
    %v3739 = vadd.f32 %v3732, 0.0
    %v3740 = vadd.f32 %v3733, 0.0
    %v3741 = vadd.f32 %v3734, 0.0
    %v3742 = vmax.f32 %v3735, -2.0
    %v3743 = vmax.f32 %v3736, -2.0
    %v3744 = vmax.f32 %v3737, -2.0
    %v3745 = vmax.f32 %v3738, -2.0
    %v3746 = vmax.f32 %v3739, -2.0
    %v3747 = vmax.f32 %v3740, -2.0
    %v3748 = vmax.f32 %v3741, -2.0
    %v3749 = vmin.f32 %v3742, 2.0
    %v3750 = vmin.f32 %v3743, 2.0
    %v3751 = vmin.f32 %v3744, 2.0
    %v3752 = vmin.f32 %v3745, 2.0
    %v3753 = vmin.f32 %v3746, 2.0
    %v3754 = vmin.f32 %v3747, 2.0
    %v3755 = vmin.f32 %v3748, 2.0
    %v3756 = vmul.f32 %v3749, %v3749
    %v3757 = vmul.f32 %v3750, %v3750
    %v3758 = vmul.f32 %v3751, %v3751
    %v3759 = vmul.f32 %v3752, %v3752
    %v3760 = vmul.f32 %v3753, %v3753
    %v3761 = vmul.f32 %v3754, %v3754
    %v3762 = vmul.f32 %v3755, %v3755
    %v3763 = vadd.f32 %v3756, %v3728
    %v3764 = vadd.f32 %v3757, %v3729
    %v3765 = vadd.f32 %v3758, %v3730
    %v3766 = vadd.f32 %v3759, %v3731
    %v3767 = vadd.f32 %v3760, %v3732
    %v3768 = vadd.f32 %v3761, %v3733
    %v3769 = vadd.f32 %v3762, %v3734
    %v3770 = vmax.f32 %v3763, -2.0
    %v3771 = vmax.f32 %v3764, -2.0
    %v3772 = vmax.f32 %v3765, -2.0
    %v3773 = vmax.f32 %v3766, -2.0
    %v3774 = vmax.f32 %v3767, -2.0
    %v3775 = vmax.f32 %v3768, -2.0
    %v3776 = vmax.f32 %v3769, -2.0
    %v3777 = vmin.f32 %v3770, 2.0
    %v3778 = vmin.f32 %v3771, 2.0
    %v3779 = vmin.f32 %v3772, 2.0
    %v3780 = vmin.f32 %v3773, 2.0
    %v3781 = vmin.f32 %v3774, 2.0
    %v3782 = vmin.f32 %v3775, 2.0
    %v3783 = vmin.f32 %v3776, 2.0
    %v3784 = vmul.f32 %v3777, %v3777
    %v3785 = vmul.f32 %v3778, %v3778
    %v3786 = vmul.f32 %v3779, %v3779
    %v3787 = vmul.f32 %v3780, %v3780
    %v3788 = vmul.f32 %v3781, %v3781
    %v3789 = vmul.f32 %v3782, %v3782
    %v3790 = vmul.f32 %v3783, %v3783
    %v3791 = vadd.f32 %v3784, %v3728
    %v3792 = vadd.f32 %v3785, %v3729
    %v3793 = vadd.f32 %v3786, %v3730
    %v3794 = vadd.f32 %v3787, %v3731
    %v3795 = vadd.f32 %v3788, %v3732
    %v3796 = vadd.f32 %v3789, %v3733
    %v3797 = vadd.f32 %v3790, %v3734
    %v3798 = vmax.f32 %v3791, -2.0
    %v3799 = vmax.f32 %v3792, -2.0
    %v3800 = vmax.f32 %v3793, -2.0
    %v3801 = vmax.f32 %v3794, -2.0
    %v3802 = vmax.f32 %v3795, -2.0
    %v3803 = vmax.f32 %v3796, -2.0
    %v3804 = vmax.f32 %v3797, -2.0
    %v3805 = vmin.f32 %v3798, 2.0
    %v3806 = vmin.f32 %v3799, 2.0
    %v3807 = vmin.f32 %v3800, 2.0
    %v3808 = vmin.f32 %v3801, 2.0
    %v3809 = vmin.f32 %v3802, 2.0
    %v3810 = vmin.f32 %v3803, 2.0
    %v3811 = vmin.f32 %v3804, 2.0
    %v3812 = vld [vmem:[%s19] sm:$0xf]
    %v3813 = vld [vmem:[%s19 + $0x4] sm:$0xf]
    %v3814 = vld [vmem:[%s19 + $0x8] sm:$0xf]
    %v3815 = vld [vmem:[%s19 + $0xc] sm:$0xf]
    %v3816 = vpack.c.bf16 %v3806, %v3805
    %v3817 = vpack.c.bf16 %v3808, %v3807
    %v3818 = vpack.c.bf16 %v3810, %v3809
    %v3819 = vpack.c.bf16 %v3811, %v3811
    %v3820 = vrot.slane %v3805, 4
    %v3821 = vrot.slane %v3806, 4
    %v3822 = vrot.slane %v3807, 4
    %v3823 = vrot.slane %v3808, 4
    %v3824 = vrot.slane %v3809, 4
    %v3825 = vrot.slane %v3810, 4
    %v3826 = vrot.slane %v3811, 4
    %v3827 = vsel %vm888, %v3825, %v3826
    %v3828 = vsel %vm888, %v3824, %v3825
    %v3829 = vsel %vm888, %v3823, %v3824
    %v3830 = vsel %vm888, %v3822, %v3823
    %v3831 = vsel %vm888, %v3821, %v3822
    %v3832 = vsel %vm888, %v3820, %v3821
    %v3833 = vsel %vm888, %v3826, %v3820
    %s3834 = scalar_lea.vmem %s19, 16
    %v3835 = vld [vmem:[%s3834] sm:$0xf]
    %v3836 = vld [vmem:[%s3834 + $0x4] sm:$0xf]
    %v3837 = vld [vmem:[%s3834 + $0x8] sm:$0xf]
    %v3838 = vld [vmem:[%s3834 + $0xc] sm:$0xf]
    %v3839 = vpack.c.bf16 %v3831, %v3832
    %v3840 = vpack.c.bf16 %v3829, %v3830
    %v3841 = vpack.c.bf16 %v3827, %v3828
    %v3842 = vpack.c.bf16 %v3833, %v3833
    %v3847 = vunpack.c.l.b16 %v3835
    %v3848 = vunpack.c.l.b16 %v3836
    %v3849 = vunpack.c.l.b16 %v3837
    %v3850 = vunpack.c.l.b16 %v3838
    %v3851 = vpack.c.b16 %v3848, %v3847
    %v3852 = vpack.c.b16 %v3850, %v3849
    %v3856 = vsel %vm3502, %v3839, 0
    %v3859 = vsel %vm3502, %v3840, 0
    %v3862 = vsel %vm3502, %v3841, 0
    %v3865 = vsel %vm3502, %v3842, 0
    %3867 = vmatprep.subr.bf16.mxu0 0
    %3868 = vmatpush1.bf16.msra.mxu0 0
    %3869 = vmatprep.subr.bf16.mxu0 0
    %3870 = vmatpush1.bf16.msra.mxu0 0
    %3871 = vmatprep.subr.bf16.mxu0 0
    %3872 = vmatpush1.bf16.msra.mxu0 0
    %3873 = vmatprep.subr.bf16.mxu0 0
    %3874 = vmatpush1.bf16.msra.mxu0 0
    %3875 = vmatprep.subr.bf16.mxu0 0
    %3876 = vmatpush1.bf16.msra.mxu0 0
    %3877 = vmatprep.subr.bf16.mxu0 0
    %3878 = vmatpush1.bf16.msra.mxu0 0
    %3879 = vmatprep.subr.bf16.mxu0 0
    %3880 = vmatpush1.bf16.msra.mxu0 %v3852
    %3881 = vmatprep.subr.bf16.mxu0 0
    %3882 = vmatpush1.bf16.msra.mxu0 %v3851
    %3883 = vmatprep.subr.bf16.mxu0 0
    %3884 = vmatpush2.bf16.msra.mxu0 0
    %3885 = vmatprep.subr.bf16.mxu0 0
    %3886 = vmatpush2.bf16.msra.mxu0 0
    %3887 = vmatprep.subr.bf16.mxu0 0
    %3888 = vmatpush2.bf16.msra.mxu0 0
    %3889 = vmatprep.subr.bf16.mxu0 0
    %3890 = vmatpush2.bf16.msra.mxu0 0
    %3891 = vmatprep.subr.bf16.mxu0 0
    %3892 = vmatpush2.bf16.msra.mxu0 0
    %3893 = vmatprep.subr.bf16.mxu0 0
    %3894 = vmatpush2.bf16.msra.mxu0 0
    %3895 = vmatprep.subr.bf16.mxu0 0
    %3896 = vmatpush2.bf16.msra.mxu0 0
    %3897 = vmatprep.subr.bf16.mxu0 0
    %3898 = vmatpush2.bf16.msra.mxu0 0
    %3899 = vmatprep.mubr.bf16.mxu0 0
    %3900 = vmatmul.mubr.bf16.gmra.mxu0 %v3856
    %v3901 = vpop.f32.mrf.mxu0
    %v3902 = vadd.f32 0.0, %v3901
    %v3903 = vpop.f32.mrf.mxu0
    %v3904 = vpop.f32.mrf.mxu0
    %v3905 = vadd.f32 0.0, %v3904
    %v3906 = vpop.f32.mrf.mxu0
    %3907 = vmatprep.mubr.bf16.mxu0 0
    %3908 = vmatmul.mubr.bf16.gmra.mxu0 %v3859
    %v3909 = vpop.f32.mrf.mxu0
    %v3910 = vadd.f32 0.0, %v3909
    %v3911 = vpop.f32.mrf.mxu0
    %v3912 = vpop.f32.mrf.mxu0
    %v3913 = vadd.f32 0.0, %v3912
    %v3914 = vpop.f32.mrf.mxu0
    %3915 = vmatprep.mubr.bf16.mxu0 0
    %3916 = vmatmul.mubr.bf16.gmra.mxu0 %v3862
    %v3917 = vpop.f32.mrf.mxu0
    %v3918 = vadd.f32 0.0, %v3917
    %v3919 = vpop.f32.mrf.mxu0
    %v3920 = vpop.f32.mrf.mxu0
    %v3921 = vadd.f32 0.0, %v3920
    %v3922 = vpop.f32.mrf.mxu0
    %3923 = vmatprep.mubr.bf16.mxu0 0
    %3924 = vmatmul.mubr.bf16.gmra.mxu0 %v3865
    %v3925 = vpop.f32.mrf.mxu0
    %v3926 = vadd.f32 0.0, %v3925
    %v3927 = vpop.f32.mrf.mxu0
    %v3928 = vpop.f32.mrf.mxu0
    %v3929 = vpop.f32.mrf.mxu0
    %3930 = vdwg.mxu0
    %v3935 = vunpack.c.l.b16 %v3812
    %v3936 = vunpack.c.l.b16 %v3813
    %v3937 = vunpack.c.l.b16 %v3814
    %v3938 = vunpack.c.l.b16 %v3815
    %v3939 = vpack.c.b16 %v3936, %v3935
    %v3940 = vpack.c.b16 %v3938, %v3937
    %v3944 = vsel %vm3502, %v3816, 0
    %v3947 = vsel %vm3502, %v3817, 0
    %v3950 = vsel %vm3502, %v3818, 0
    %v3953 = vsel %vm3502, %v3819, 0
    %3955 = vmatprep.subr.bf16.mxu0 0
    %3956 = vmatpush1.bf16.msra.mxu0 0
    %3957 = vmatprep.subr.bf16.mxu0 0
    %3958 = vmatpush1.bf16.msra.mxu0 0
    %3959 = vmatprep.subr.bf16.mxu0 0
    %3960 = vmatpush1.bf16.msra.mxu0 0
    %3961 = vmatprep.subr.bf16.mxu0 0
    %3962 = vmatpush1.bf16.msra.mxu0 0
    %3963 = vmatprep.subr.bf16.mxu0 0
    %3964 = vmatpush1.bf16.msra.mxu0 0
    %3965 = vmatprep.subr.bf16.mxu0 0
    %3966 = vmatpush1.bf16.msra.mxu0 0
    %3967 = vmatprep.subr.bf16.mxu0 0
    %3968 = vmatpush1.bf16.msra.mxu0 %v3940
    %3969 = vmatprep.subr.bf16.mxu0 0
    %3970 = vmatpush1.bf16.msra.mxu0 %v3939
    %3971 = vmatprep.subr.bf16.mxu0 0
    %3972 = vmatpush2.bf16.msra.mxu0 0
    %3973 = vmatprep.subr.bf16.mxu0 0
    %3974 = vmatpush2.bf16.msra.mxu0 0
    %3975 = vmatprep.subr.bf16.mxu0 0
    %3976 = vmatpush2.bf16.msra.mxu0 0
    %3977 = vmatprep.subr.bf16.mxu0 0
    %3978 = vmatpush2.bf16.msra.mxu0 0
    %3979 = vmatprep.subr.bf16.mxu0 0
    %3980 = vmatpush2.bf16.msra.mxu0 0
    %3981 = vmatprep.subr.bf16.mxu0 0
    %3982 = vmatpush2.bf16.msra.mxu0 0
    %3983 = vmatprep.subr.bf16.mxu0 0
    %3984 = vmatpush2.bf16.msra.mxu0 0
    %3985 = vmatprep.subr.bf16.mxu0 0
    %3986 = vmatpush2.bf16.msra.mxu0 0
    %3987 = vmatprep.mubr.bf16.mxu0 0
    %3988 = vmatmul.mubr.bf16.gmra.mxu0 %v3944
    %v3989 = vpop.f32.mrf.mxu0
    %v3990 = vadd.f32 %v3902, %v3989
    %v3991 = vpop.f32.mrf.mxu0
    %v3992 = vpop.f32.mrf.mxu0
    %v3993 = vadd.f32 %v3905, %v3992
    %v3994 = vpop.f32.mrf.mxu0
    %3995 = vmatprep.mubr.bf16.mxu0 0
    %3996 = vmatmul.mubr.bf16.gmra.mxu0 %v3947
    %v3997 = vpop.f32.mrf.mxu0
    %v3998 = vadd.f32 %v3910, %v3997
    %v3999 = vpop.f32.mrf.mxu0
    %v4000 = vpop.f32.mrf.mxu0
    %v4001 = vadd.f32 %v3913, %v4000
    %v4002 = vpop.f32.mrf.mxu0
    %4003 = vmatprep.mubr.bf16.mxu0 0
    %4004 = vmatmul.mubr.bf16.gmra.mxu0 %v3950
    %v4005 = vpop.f32.mrf.mxu0
    %v4006 = vadd.f32 %v3918, %v4005
    %v4007 = vpop.f32.mrf.mxu0
    %v4008 = vpop.f32.mrf.mxu0
    %v4009 = vadd.f32 %v3921, %v4008
    %v4010 = vpop.f32.mrf.mxu0
    %4011 = vmatprep.mubr.bf16.mxu0 0
    %4012 = vmatmul.mubr.bf16.gmra.mxu0 %v3953
    %v4013 = vpop.f32.mrf.mxu0
    %v4014 = vadd.f32 %v3926, %v4013
    %v4015 = vpop.f32.mrf.mxu0
    %v4016 = vpop.f32.mrf.mxu0
    %v4017 = vpop.f32.mrf.mxu0
    %4018 = vdwg.mxu0
    %s4019 = scalar_lea.vmem %s19, 32
    %v4020 = vld [vmem:[%s4019] sm:$0xf]
    %v4021 = vld [vmem:[%s4019 + $0x4] sm:$0xf]
    %v4022 = vld [vmem:[%s4019 + $0x8] sm:$0xf]
    %v4023 = vld [vmem:[%s4019 + $0xc] sm:$0xf]
    %v4024 = vpack.c.bf16 %v3807, %v3806
    %v4025 = vpack.c.bf16 %v3809, %v3808
    %v4026 = vpack.c.bf16 %v3811, %v3810
    %v4027 = vpack.c.bf16 %v3805, %v3805
    %v4032 = vunpack.c.l.b16 %v4020
    %v4033 = vunpack.c.l.b16 %v4021
    %v4034 = vunpack.c.l.b16 %v4022
    %v4035 = vunpack.c.l.b16 %v4023
    %v4036 = vpack.c.b16 %v4033, %v4032
    %v4037 = vpack.c.b16 %v4035, %v4034
    %v4041 = vsel %vm3502, %v4024, 0
    %v4044 = vsel %vm3502, %v4025, 0
    %v4047 = vsel %vm3502, %v4026, 0
    %v4050 = vsel %vm3502, %v4027, 0
    %4052 = vmatprep.subr.bf16.mxu0 0
    %4053 = vmatpush1.bf16.msra.mxu0 0
    %4054 = vmatprep.subr.bf16.mxu0 0
    %4055 = vmatpush1.bf16.msra.mxu0 0
    %4056 = vmatprep.subr.bf16.mxu0 0
    %4057 = vmatpush1.bf16.msra.mxu0 0
    %4058 = vmatprep.subr.bf16.mxu0 0
    %4059 = vmatpush1.bf16.msra.mxu0 0
    %4060 = vmatprep.subr.bf16.mxu0 0
    %4061 = vmatpush1.bf16.msra.mxu0 0
    %4062 = vmatprep.subr.bf16.mxu0 0
    %4063 = vmatpush1.bf16.msra.mxu0 0
    %4064 = vmatprep.subr.bf16.mxu0 0
    %4065 = vmatpush1.bf16.msra.mxu0 %v4037
    %4066 = vmatprep.subr.bf16.mxu0 0
    %4067 = vmatpush1.bf16.msra.mxu0 %v4036
    %4068 = vmatprep.subr.bf16.mxu0 0
    %4069 = vmatpush2.bf16.msra.mxu0 0
    %4070 = vmatprep.subr.bf16.mxu0 0
    %4071 = vmatpush2.bf16.msra.mxu0 0
    %4072 = vmatprep.subr.bf16.mxu0 0
    %4073 = vmatpush2.bf16.msra.mxu0 0
    %4074 = vmatprep.subr.bf16.mxu0 0
    %4075 = vmatpush2.bf16.msra.mxu0 0
    %4076 = vmatprep.subr.bf16.mxu0 0
    %4077 = vmatpush2.bf16.msra.mxu0 0
    %4078 = vmatprep.subr.bf16.mxu0 0
    %4079 = vmatpush2.bf16.msra.mxu0 0
    %4080 = vmatprep.subr.bf16.mxu0 0
    %4081 = vmatpush2.bf16.msra.mxu0 0
    %4082 = vmatprep.subr.bf16.mxu0 0
    %4083 = vmatpush2.bf16.msra.mxu0 0
    %4084 = vmatprep.mubr.bf16.mxu0 0
    %4085 = vmatmul.mubr.bf16.gmra.mxu0 %v4041
    %v4086 = vpop.f32.mrf.mxu0
    %v4087 = vadd.f32 0.0, %v4086
    %v4088 = vpop.f32.mrf.mxu0
    %v4089 = vpop.f32.mrf.mxu0
    %v4090 = vadd.f32 0.0, %v4089
    %v4091 = vpop.f32.mrf.mxu0
    %4092 = vmatprep.mubr.bf16.mxu0 0
    %4093 = vmatmul.mubr.bf16.gmra.mxu0 %v4044
    %v4094 = vpop.f32.mrf.mxu0
    %v4095 = vadd.f32 0.0, %v4094
    %v4096 = vpop.f32.mrf.mxu0
    %v4097 = vpop.f32.mrf.mxu0
    %v4098 = vadd.f32 0.0, %v4097
    %v4099 = vpop.f32.mrf.mxu0
    %4100 = vmatprep.mubr.bf16.mxu0 0
    %4101 = vmatmul.mubr.bf16.gmra.mxu0 %v4047
    %v4102 = vpop.f32.mrf.mxu0
    %v4103 = vadd.f32 0.0, %v4102
    %v4104 = vpop.f32.mrf.mxu0
    %v4105 = vpop.f32.mrf.mxu0
    %v4106 = vadd.f32 0.0, %v4105
    %v4107 = vpop.f32.mrf.mxu0
    %4108 = vmatprep.mubr.bf16.mxu0 0
    %4109 = vmatmul.mubr.bf16.gmra.mxu0 %v4050
    %v4110 = vpop.f32.mrf.mxu0
    %v4111 = vadd.f32 0.0, %v4110
    %v4112 = vpop.f32.mrf.mxu0
    %v4113 = vpop.f32.mrf.mxu0
    %v4114 = vpop.f32.mrf.mxu0
    %4115 = vdwg.mxu0
    %v4116 = vadd.f32 %v3990, %v4087
    %v4117 = vadd.f32 %v3993, %v4090
    %v4118 = vadd.f32 %v3998, %v4095
    %v4119 = vadd.f32 %v4001, %v4098
    %v4120 = vadd.f32 %v4006, %v4103
    %v4121 = vadd.f32 %v4009, %v4106
    %v4122 = vadd.f32 %v4014, %v4111
    %s4123 = scalar_lea.vmem %s19, 48
    %v4124 = vld [vmem:[%s4123] sm:$0xf]
    %v4125 = vld [vmem:[%s4123 + $0x4] sm:$0xf]
    %v4126 = vld [vmem:[%s4123 + $0x8] sm:$0xf]
    %v4127 = vld [vmem:[%s4123 + $0xc] sm:$0xf]
    %v4128 = vpack.c.bf16 %v3830, %v3831
    %v4129 = vpack.c.bf16 %v3828, %v3829
    %v4130 = vpack.c.bf16 %v3833, %v3827
    %v4131 = vpack.c.bf16 %v3832, %v3832
    %v4136 = vunpack.c.l.b16 %v4124
    %v4137 = vunpack.c.l.b16 %v4125
    %v4138 = vunpack.c.l.b16 %v4126
    %v4139 = vunpack.c.l.b16 %v4127
    %v4140 = vpack.c.b16 %v4137, %v4136
    %v4141 = vpack.c.b16 %v4139, %v4138
    %v4145 = vsel %vm3502, %v4128, 0
    %v4148 = vsel %vm3502, %v4129, 0
    %v4151 = vsel %vm3502, %v4130, 0
    %v4154 = vsel %vm3502, %v4131, 0
    %4156 = vmatprep.subr.bf16.mxu0 0
    %4157 = vmatpush1.bf16.msra.mxu0 0
    %4158 = vmatprep.subr.bf16.mxu0 0
    %4159 = vmatpush1.bf16.msra.mxu0 0
    %4160 = vmatprep.subr.bf16.mxu0 0
    %4161 = vmatpush1.bf16.msra.mxu0 0
    %4162 = vmatprep.subr.bf16.mxu0 0
    %4163 = vmatpush1.bf16.msra.mxu0 0
    %4164 = vmatprep.subr.bf16.mxu0 0
    %4165 = vmatpush1.bf16.msra.mxu0 0
    %4166 = vmatprep.subr.bf16.mxu0 0
    %4167 = vmatpush1.bf16.msra.mxu0 0
    %4168 = vmatprep.subr.bf16.mxu0 0
    %4169 = vmatpush1.bf16.msra.mxu0 %v4141
    %4170 = vmatprep.subr.bf16.mxu0 0
    %4171 = vmatpush1.bf16.msra.mxu0 %v4140
    %4172 = vmatprep.subr.bf16.mxu0 0
    %4173 = vmatpush2.bf16.msra.mxu0 0
    %4174 = vmatprep.subr.bf16.mxu0 0
    %4175 = vmatpush2.bf16.msra.mxu0 0
    %4176 = vmatprep.subr.bf16.mxu0 0
    %4177 = vmatpush2.bf16.msra.mxu0 0
    %4178 = vmatprep.subr.bf16.mxu0 0
    %4179 = vmatpush2.bf16.msra.mxu0 0
    %4180 = vmatprep.subr.bf16.mxu0 0
    %4181 = vmatpush2.bf16.msra.mxu0 0
    %4182 = vmatprep.subr.bf16.mxu0 0
    %4183 = vmatpush2.bf16.msra.mxu0 0
    %4184 = vmatprep.subr.bf16.mxu0 0
    %4185 = vmatpush2.bf16.msra.mxu0 0
    %4186 = vmatprep.subr.bf16.mxu0 0
    %4187 = vmatpush2.bf16.msra.mxu0 0
    %4188 = vmatprep.mubr.bf16.mxu0 0
    %4189 = vmatmul.mubr.bf16.gmra.mxu0 %v4145
    %v4190 = vpop.f32.mrf.mxu0
    %v4191 = vadd.f32 0.0, %v4190
    %v4192 = vpop.f32.mrf.mxu0
    %v4193 = vpop.f32.mrf.mxu0
    %v4194 = vadd.f32 0.0, %v4193
    %v4195 = vpop.f32.mrf.mxu0
    %4196 = vmatprep.mubr.bf16.mxu0 0
    %4197 = vmatmul.mubr.bf16.gmra.mxu0 %v4148
    %v4198 = vpop.f32.mrf.mxu0
    %v4199 = vadd.f32 0.0, %v4198
    %v4200 = vpop.f32.mrf.mxu0
    %v4201 = vpop.f32.mrf.mxu0
    %v4202 = vadd.f32 0.0, %v4201
    %v4203 = vpop.f32.mrf.mxu0
    %4204 = vmatprep.mubr.bf16.mxu0 0
    %4205 = vmatmul.mubr.bf16.gmra.mxu0 %v4151
    %v4206 = vpop.f32.mrf.mxu0
    %v4207 = vadd.f32 0.0, %v4206
    %v4208 = vpop.f32.mrf.mxu0
    %v4209 = vpop.f32.mrf.mxu0
    %v4210 = vadd.f32 0.0, %v4209
    %v4211 = vpop.f32.mrf.mxu0
    %4212 = vmatprep.mubr.bf16.mxu0 0
    %4213 = vmatmul.mubr.bf16.gmra.mxu0 %v4154
    %v4214 = vpop.f32.mrf.mxu0
    %v4215 = vadd.f32 0.0, %v4214
    %v4216 = vpop.f32.mrf.mxu0
    %v4217 = vpop.f32.mrf.mxu0
    %v4218 = vpop.f32.mrf.mxu0
    %4219 = vdwg.mxu0
    %v4220 = vadd.f32 %v4116, %v4191
    %v4221 = vadd.f32 %v4117, %v4194
    %v4222 = vadd.f32 %v4118, %v4199
    %v4223 = vadd.f32 %v4119, %v4202
    %v4224 = vadd.f32 %v4120, %v4207
    %v4225 = vadd.f32 %v4121, %v4210
    %v4226 = vadd.f32 %v4122, %v4215
    %v4227 = vld [vmem:[#allocation26] sm:$0x3]
    %v4228 = vld [vmem:[#allocation22] sm:$0x1]
    %v4230 = vlaneseq
    %v4231 = vshrl.u32 %v4230, 7
    %v4232 = vsub.s32 0, %v4231
    %v4233 = vrot.slane %v4228, %v4232
    %vm4235 = vcmask 457728
    %v4237 = vsel %vm4235, %v4227, 0
    %4239 = vmatprep.subr.mxu0 0.0
    %4240 = vmatpush1.msra.mxu0 0.0
    %4241 = vmatprep.subr.mxu0 0.0
    %4242 = vmatpush1.msra.mxu0 0.0
    %4243 = vmatprep.subr.mxu0 0.0
    %4244 = vmatpush1.msra.mxu0 0.0
    %4245 = vmatprep.subr.mxu0 0.0
    %4246 = vmatpush1.msra.mxu0 0.0
    %4247 = vmatprep.subr.mxu0 0.0
    %4248 = vmatpush1.msra.mxu0 0.0
    %4249 = vmatprep.subr.mxu0 0.0
    %4250 = vmatpush1.msra.mxu0 0.0
    %4251 = vmatprep.subr.mxu0 0.0
    %4252 = vmatpush1.msra.mxu0 0.0
    %4253 = vmatprep.subr.mxu0 0.0
    %4254 = vmatpush1.msra.mxu0 0.0
    %4255 = vmatprep.subr.mxu0 0.0
    %4256 = vmatpush1.msra.mxu0 0.0
    %4257 = vmatprep.subr.mxu0 0.0
    %4258 = vmatpush1.msra.mxu0 %v4226
    %4259 = vmatprep.subr.mxu0 0.0
    %4260 = vmatpush1.msra.mxu0 %v4225
    %4261 = vmatprep.subr.mxu0 0.0
    %4262 = vmatpush1.msra.mxu0 %v4224
    %4263 = vmatprep.subr.mxu0 0.0
    %4264 = vmatpush1.msra.mxu0 %v4223
    %4265 = vmatprep.subr.mxu0 0.0
    %4266 = vmatpush1.msra.mxu0 %v4222
    %4267 = vmatprep.subr.mxu0 0.0
    %4268 = vmatpush1.msra.mxu0 %v4221
    %4269 = vmatprep.subr.mxu0 0.0
    %4270 = vmatpush1.msra.mxu0 %v4220
    %4271 = vmatprep.subr.mxu0 0.0
    %4272 = vmatpush2.msra.mxu0 0.0
    %4273 = vmatprep.subr.mxu0 0.0
    %4274 = vmatpush2.msra.mxu0 0.0
    %4275 = vmatprep.subr.mxu0 0.0
    %4276 = vmatpush2.msra.mxu0 0.0
    %4277 = vmatprep.subr.mxu0 0.0
    %4278 = vmatpush2.msra.mxu0 0.0
    %4279 = vmatprep.subr.mxu0 0.0
    %4280 = vmatpush2.msra.mxu0 0.0
    %4281 = vmatprep.subr.mxu0 0.0
    %4282 = vmatpush2.msra.mxu0 0.0
    %4283 = vmatprep.subr.mxu0 0.0
    %4284 = vmatpush2.msra.mxu0 0.0
    %4285 = vmatprep.subr.mxu0 0.0
    %4286 = vmatpush2.msra.mxu0 0.0
    %4287 = vmatprep.subr.mxu0 0.0
    %4288 = vmatpush2.msra.mxu0 0.0
    %4289 = vmatprep.subr.mxu0 0.0
    %4290 = vmatpush2.msra.mxu0 0.0
    %4291 = vmatprep.subr.mxu0 0.0
    %4292 = vmatpush2.msra.mxu0 0.0
    %4293 = vmatprep.subr.mxu0 0.0
    %4294 = vmatpush2.msra.mxu0 0.0
    %4295 = vmatprep.subr.mxu0 0.0
    %4296 = vmatpush2.msra.mxu0 0.0
    %4297 = vmatprep.subr.mxu0 0.0
    %4298 = vmatpush2.msra.mxu0 0.0
    %4299 = vmatprep.subr.mxu0 0.0
    %4300 = vmatpush2.msra.mxu0 0.0
    %4301 = vmatprep.subr.mxu0 0.0
    %4302 = vmatpush2.msra.mxu0 0.0
    %4303 = vmatprep.mubr.f32.mxu0 0.0
    %4304 = vmatmul.mubr.f32.gmra.mxu0 %v4237
    %v4305 = vpop.f32.mrf.mxu0
    %v4306 = vadd.f32 %v4233, %v4305
    %v4307 = vpop.f32.mrf.mxu0
    %4308 = vdwg.mxu0
    %v4309 = vadd.f32 %v4306, 0.0
    %v4310 = vmax.f32 %v4309, -2.0
    %v4311 = vmin.f32 %v4310, 2.0
    %v4312 = vmul.f32 %v4311, %v4311
    %v4313 = vadd.f32 %v4312, %v4306
    %v4314 = vmax.f32 %v4313, -2.0
    %v4315 = vmin.f32 %v4314, 2.0
    %v4316 = vmul.f32 %v4315, %v4315
    %v4317 = vadd.f32 %v4316, %v4306
    %v4318 = vmax.f32 %v4317, -2.0
    %v4319 = vmin.f32 %v4318, 2.0
    %v4320 = vld [vmem:[%s21] sm:$0xf]
    %v4321 = vld [vmem:[%s21 + $0x4] sm:$0xf]
    %v4322 = vld [vmem:[%s21 + $0x8] sm:$0x3]
    %v4323 = vpack.c.bf16 %v4319, %v4319
    %v4324 = vld [vmem:[#allocation23] sm:$0x1]
    %v4326 = vlaneseq
    %v4327 = vshrl.u32 %v4326, 7
    %v4328 = vsub.s32 0, %v4327
    %v4329 = vrot.slane %v4324, %v4328
    %v4334 = vunpack.c.l.b16 %v4320
    %v4335 = vunpack.c.l.b16 %v4321
    %v4336 = vunpack.c.l.b16 %v4322
    %v4337 = vpack.c.b16 %v4335, %v4334
    %v4338 = vpack.c.b16 %v4336, %v4336
    %vm4340 = vcmask 162816
    %v4342 = vsel %vm4340, %v4323, 0
    %vm4344 = vcmask 1041408
    %v4346 = vsel %vm4344, %v4338, 0
    %4348 = vmatprep.subr.bf16.mxu0 0
    %4349 = vmatpush1.bf16.msra.mxu0 0
    %4350 = vmatprep.subr.bf16.mxu0 0
    %4351 = vmatpush1.bf16.msra.mxu0 0
    %4352 = vmatprep.subr.bf16.mxu0 0
    %4353 = vmatpush1.bf16.msra.mxu0 0
    %4354 = vmatprep.subr.bf16.mxu0 0
    %4355 = vmatpush1.bf16.msra.mxu0 0
    %4356 = vmatprep.subr.bf16.mxu0 0
    %4357 = vmatpush1.bf16.msra.mxu0 0
    %4358 = vmatprep.subr.bf16.mxu0 0
    %4359 = vmatpush1.bf16.msra.mxu0 0
    %4360 = vmatprep.subr.bf16.mxu0 0
    %4361 = vmatpush1.bf16.msra.mxu0 %v4346
    %4362 = vmatprep.subr.bf16.mxu0 0
    %4363 = vmatpush1.bf16.msra.mxu0 %v4337
    %4364 = vmatprep.subr.bf16.mxu0 0
    %4365 = vmatpush2.bf16.msra.mxu0 0
    %4366 = vmatprep.subr.bf16.mxu0 0
    %4367 = vmatpush2.bf16.msra.mxu0 0
    %4368 = vmatprep.subr.bf16.mxu0 0
    %4369 = vmatpush2.bf16.msra.mxu0 0
    %4370 = vmatprep.subr.bf16.mxu0 0
    %4371 = vmatpush2.bf16.msra.mxu0 0
    %4372 = vmatprep.subr.bf16.mxu0 0
    %4373 = vmatpush2.bf16.msra.mxu0 0
    %4374 = vmatprep.subr.bf16.mxu0 0
    %4375 = vmatpush2.bf16.msra.mxu0 0
    %4376 = vmatprep.subr.bf16.mxu0 0
    %4377 = vmatpush2.bf16.msra.mxu0 0
    %4378 = vmatprep.subr.bf16.mxu0 0
    %4379 = vmatpush2.bf16.msra.mxu0 0
    %4380 = vmatprep.mubr.bf16.mxu0 0
    %4381 = vmatmul.mubr.bf16.gmra.mxu0 %v4342
    %v4382 = vpop.f32.mrf.mxu0
    %v4383 = vadd.f32 %v4329, %v4382
    %v4384 = vpop.f32.mrf.mxu0
    %v4385 = vpop.f32.mrf.mxu0
    %v4386 = vpop.f32.mrf.mxu0
    %4387 = vdwg.mxu0
    %vm4388 = vcmask 74752
    %4389 = vst.msk [vmem:[#allocation28] sm:$0x3] %vm4388, %v4383
    // Predicated region
    $region170: #{neural_model_forward.1} parent=1 // pred_check
      _
    $region171: #{neural_model_forward.1} parent=1 // pred_check_branch
      %4391 = sbr.rel (0) target = $region173
    $region172: #{neural_model_forward.1} parent=1 // pred_region
      %s4393 = ssub.s32 32, 32
      %4394 = vsyncadd [#allocation4], %s4393
      %s4396 = sshll.u32 [#allocation28], 4
      %s4397 = int_to_ptr.vmem [resolvable:$true] %s4396
      %4399 = dma.vmem_to_hbm [thread:$0]  %s4397, 32, %s26, [#allocation4]
    $region173: #{neural_model_forward.1} parent=1 // pred_fallthru
      _
    // Predicated region
    $region174: #{neural_model_forward.1} parent=1 // pred_check
      _
    $region175: #{neural_model_forward.1} parent=1 // pred_check_branch
      %4401 = sbr.rel (0) target = $region177
    $region176: #{neural_model_forward.1} parent=1 // pred_region
      %4402 = dma.done [#allocation4], 32
    $region177: #{neural_model_forward.1} parent=1 // pred_fallthru
      _
    %4403 = vsyncpa [#allocation3], 1
    %4404 = vsyncpa [#allocation6], 1
    %4405 = vsyncpa [#allocation9], 1
    %4406 = vsyncpa [#allocation12], 1
    %4407 = vsyncpa [#allocation15], 1
    %4408 = vsyncpa [#allocation18], 1
    %4409 = vsyncpa [#allocation21], 1
    %4410 = vsyncpa [#allocation24], 1
    %4411 = vsyncpa [#allocation27], 1
    %4412 = vsyncpa [#allocation4], 1

</llo_original>
